<compile_context>
chip_gen: v7x
topology: tpu7x:2x2x1
jax: 0.10.0
libtpu: 0.0.40
codegen_flags: <defaults>
</compile_context>

<pallas_src>
import functools

import jax
import jax.numpy as jnp
from jax.experimental import pallas as pl
from jax.experimental.pallas import tpu as pltpu


def _round_up(x, m):
    return (x + m - 1) // m * m


def _penta_kernel(xh_ref, xl_ref, wm_ref, bm_ref, wtop_ref, *out_refs,
                  n_out_p, n_heads_h):
    """All 5 heads in one grid step.

    xh_ref, xl_ref : (tn, n_in)              f32   row tiles of h and l
    wm_ref         : (n_in, 5*n_out_p)       bf16  concatenated MLP weights
    bm_ref         : (1, 5*n_out_p)          f32   concatenated MLP biases
                                                    (ones-column bias == 1.0)
    wtop_ref       : (5*n_out_p, rank_p)     bf16  concatenated rank
                                                    projections (ones-row,
                                                    scaling, label-col-0 mask
                                                    already folded in)
    out_refs       : 5 x (tn, rank_p)
    """
    # Cast the streamed f32 tiles to bf16 once, in-kernel (rides under MXU).
    xh = xh_ref[...].astype(jnp.bfloat16)
    xl = xl_ref[...].astype(jnp.bfloat16)

    for i, o_ref in enumerate(out_refs):
        x = xh if i < n_heads_h else xl
        lo = i * n_out_p                                  # lane/sublane aligned
        # MLP linear (bf16 x bf16 -> f32 accumulate)
        a = jnp.dot(x, wm_ref[:, lo:lo + n_out_p],
                    preferred_element_type=jnp.float32)
        a = a + bm_ref[:, lo:lo + n_out_p]
        a = jnp.maximum(a, 0.1 * a)                       # LeakyReLU(0.1)
        a = a.astype(jnp.bfloat16)
        # Rank projection; the folded ones-column row supplies the "+1" term.
        z = jnp.dot(a, wtop_ref[lo:lo + n_out_p, :],
                    preferred_element_type=jnp.float32)
        o_ref[...] = z.astype(o_ref.dtype)


def _run_penta(xh2, xl2, wm_cat, bm_cat, wtop_cat, *, n_out_p, rank_p,
               n_heads, n_heads_h, row_tile, out_dtype,
               single_buffer_weights, vmem_limit_bytes):
    """xh2/xl2: (N, n_in) f32.  Returns (list of (N_p, rank_p) arrays, N_p)."""
    N, n_in = xh2.shape

    # Row tile: large (MXU-friendly, amortizes ~0.35us/step pipeline overhead),
    # multiple of 8; pad N up to a tile multiple instead of asserting.
    tn = max(8, min(row_tile, _round_up(N, 8)))
    # v7x megacore: make sure the single "parallel" axis has >= 2 steps
    # whenever N allows, so both TensorCores get work.
    if _round_up(N, tn) // tn < 2 and N > 8:
        tn = max(8, min(tn, _round_up((N + 1) // 2, 8)))
    N_p = _round_up(N, tn)
    if N_p != N:
        pad = ((0, N_p - N), (0, 0))
        xh2 = jnp.pad(xh2, pad)
        xl2 = jnp.pad(xl2, pad)

    def weight_spec(shape):
        if single_buffer_weights:
            # Constant across the grid -> one resident copy is enough.
            return pl.BlockSpec(shape, lambda i: (0, 0),
                                pipeline_mode=pl.Buffered(1))
        return pl.BlockSpec(shape, lambda i: (0, 0))

    in_specs = [
        pl.BlockSpec((tn, n_in), lambda i: (i, 0)),           # h row tile (f32)
        pl.BlockSpec((tn, n_in), lambda i: (i, 0)),           # l row tile (f32)
        weight_spec((n_in, n_heads * n_out_p)),               # fused MLP weights
        weight_spec((1, n_heads * n_out_p)),                  # fused MLP biases
        weight_spec((n_heads * n_out_p, rank_p)),             # fused rank proj.
    ]
    out_shape = tuple(jax.ShapeDtypeStruct((N_p, rank_p), out_dtype)
                      for _ in range(n_heads))
    out_specs = [pl.BlockSpec((tn, rank_p), lambda i: (i, 0))
                 for _ in range(n_heads)]

    kernel = functools.partial(_penta_kernel, n_out_p=n_out_p,
                               n_heads_h=n_heads_h)

    outs = pl.pallas_call(
        kernel,
        out_shape=out_shape,
        grid_spec=pltpu.PrefetchScalarGridSpec(
            num_scalar_prefetch=0,
            grid=(N_p // tn,),
            in_specs=in_specs,
            out_specs=out_specs,
        ),
        compiler_params=pltpu.CompilerParams(
            dimension_semantics=("parallel",),
            vmem_limit_bytes=vmem_limit_bytes,
        ),
    )(xh2, xl2, wm_cat, bm_cat, wtop_cat)
    return list(outs)


class DecomposedPentaAffineScorerPallas:
    """JAX/Pallas re-implementation of DecomposedPentaAffineScorer.forward
    (inference)."""

    def __init__(self, n_in=800, n_out=400, rank=500, scaling=False,
                 out_dtype=jnp.float32, key=None):
        self.n_in, self.n_out, self.rank, self.scaling = n_in, n_out, rank, scaling
        self.out_dtype = out_dtype
        key = jax.random.PRNGKey(0) if key is None else key
        ks = jax.random.split(key, 15)

        def linear(kw, kb):
            # PyTorch nn.Linear stores (n_out, n_in); we store the transpose.
            w = jax.random.normal(kw, (n_in, n_out), jnp.float32) * (1.0 / jnp.sqrt(n_in))
            b = jax.random.normal(kb, (1, n_out), jnp.float32) * 0.01
            return w, b

        # Order: l, m, r, label_1, label_2 (f32 params, used by the reference).
        self.mlps = [linear(ks[2 * i], ks[2 * i + 1]) for i in range(5)]
        # W_i have shape (n_out + 1, rank) in the PyTorch module (zero-init
        # there; random here so the test is non-trivial).
        self.W = [jax.random.normal(ks[10 + i], (n_out + 1, rank), jnp.float32) * 0.02
                  for i in range(5)]

        # Whether the running JAX build supports single-buffered constant
        # blocks; downgraded automatically on first failure.
        self._single_buffer_weights = True
        self._prepare_kernel_params()

    def _prepare_kernel_params(self):
        n_in, n_out, rank = self.n_in, self.n_out, self.rank
        # +1 reserves a lane for the folded "ones" column of cat(x, 1) @ W.
        n_out_p = _round_up(n_out + 1, 128)    # lane-aligned per-head slices
        rank_p = _round_up(rank, 128)          # lane-dense output stores
        self.n_out_p, self.rank_p = n_out_p, rank_p
        one_col = n_out                        # index of the folded ones column

        # Reference scaling: x /= rank ** 1 / 5  ==  x / (rank / 5)  (Python
        # precedence).  Folded into the rank-projection weights.
        inv_scale = (5.0 / float(rank)) if self.scaling else 1.0

        wms, bms, wtops = [], [], []
        for idx in range(5):
            wm, bm = self.mlps[idx]                             # (n_in,n_out),(1,n_out)
            wm_p = jnp.zeros((n_in, n_out_p), jnp.float32).at[:, :n_out].set(wm)
            bm_p = jnp.zeros((1, n_out_p), jnp.float32).at[:, :n_out].set(bm)
            # zero weight column + bias 1.0 -> LeakyReLU(1) == 1: the "ones" column
            bm_p = bm_p.at[:, one_col].set(1.0)

            W = self.W[idx] * inv_scale                         # (n_out+1, rank)
            wtop = jnp.zeros((n_out_p, rank_p), jnp.float32)
            wtop = wtop.at[:n_out, :rank].set(W[:n_out])
            wtop = wtop.at[one_col, :rank].set(W[n_out])        # ones-column row
            if idx >= 3:                                        # label_1 / label_2
                wtop = wtop.at[:, 0].set(0.0)                   # fold "[...,0]=0"
            wms.append(wm_p)
            bms.append(bm_p)
            wtops.append(wtop)

        self.wm_cat = jnp.concatenate(wms, axis=1).astype(jnp.bfloat16)     # (n_in, 5*n_out_p)
        self.bm_cat = jnp.concatenate(bms, axis=1)                          # (1, 5*n_out_p) f32
        self.wtop_cat = jnp.concatenate(wtops, axis=0).astype(jnp.bfloat16) # (5*n_out_p, rank_p)

    def __call__(self, h, l, row_tile=512, vmem_limit_bytes=56 * 1024 * 1024):
        B, S, _ = h.shape
        N = B * S
        # Keep inputs f32: the bf16 cast happens inside the kernel (one HBM read).
        h2 = h.reshape(N, self.n_in)
        l2 = l.reshape(N, self.n_in)

        def run(single_buffer):
            return _run_penta(
                h2, l2, self.wm_cat, self.bm_cat, self.wtop_cat,
                n_out_p=self.n_out_p, rank_p=self.rank_p,
                n_heads=5, n_heads_h=3,
                row_tile=row_tile, out_dtype=self.out_dtype,
                single_buffer_weights=single_buffer,
                vmem_limit_bytes=vmem_limit_bytes)

        try:
            outs = run(self._single_buffer_weights)
        except Exception:
            if not self._single_buffer_weights:
                raise
            # This JAX build rejected pipeline_mode=pl.Buffered(1); fall back
            # to default double-buffered weights so the kernel still runs.
            self._single_buffer_weights = False
            outs = run(False)

        # Single combined row/rank trim (one slice pass, not two).
        return tuple(o[:N, :self.rank].reshape(B, S, self.rank) for o in outs)

    # pure-JAX f32 reference for verification
    def reference(self, h, l):
        inv_scale = (5.0 / float(self.rank)) if self.scaling else None

        def head(x, idx, zero_first):
            wm, bm = self.mlps[idx]
            y = x.astype(jnp.float32) @ wm + bm[0]
            y = jnp.where(y > 0, y, 0.1 * y)                  # LeakyReLU(0.1)
            y1 = jnp.concatenate([y, jnp.ones_like(y[..., :1])], -1)
            z = y1 @ self.W[idx]
            if zero_first:
                z = z.at[..., 0].set(0.0)
            if inv_scale is not None:
                z = z * inv_scale
            return z

        return (head(h, 0, False), head(h, 1, False), head(h, 2, False),
                head(l, 3, True), head(l, 4, True))


if __name__ == "__main__":
    # small, forward-consistent shapes: batch=2, seq=8, n_in=32, n_out=16, rank=20
    B, S, n_in, n_out, rank = 2, 8, 32, 16, 20
    key = jax.random.PRNGKey(0)
    kh, kl, kp = jax.random.split(key, 3)
    h = jax.random.normal(kh, (B, S, n_in), jnp.float32)
    l = jax.random.normal(kl, (B, S, n_in), jnp.float32)

    scorer = DecomposedPentaAffineScorerPallas(n_in=n_in, n_out=n_out, rank=rank,
                                               scaling=False, key=kp)

    outs = scorer(h, l)
    outs = jax.block_until_ready(outs)

    refs = scorer.reference(h, l)
    for o, r in zip(outs, refs):
        assert o.shape == (B, S, rank)
        # kernel matmuls run in bf16 with f32 accumulation -> loose tolerance
        assert jnp.allclose(o, r, atol=2e-2, rtol=2e-2), "mismatch vs JAX reference"
    # label heads must have first rank-column exactly zeroed
    assert float(jnp.abs(outs[3][..., 0]).max()) == 0.0
    assert float(jnp.abs(outs[4][..., 0]).max()) == 0.0

    print("KERNEL_OK")
</pallas_src>

<mosaic_0001>
module attributes {stable_mosaic.version = 11 : i64} {
  func.func @_penta_kernel(%arg0: i32, %arg1: memref<8x32xf32, #tpu.memory_space<vmem>>, %arg2: memref<8x32xf32, #tpu.memory_space<vmem>>, %arg3: memref<32x640xbf16, #tpu.memory_space<vmem>>, %arg4: memref<1x640xf32, #tpu.memory_space<vmem>>, %arg5: memref<640x128xbf16, #tpu.memory_space<vmem>>, %arg6: memref<8x128xf32, #tpu.memory_space<vmem>>, %arg7: memref<8x128xf32, #tpu.memory_space<vmem>>, %arg8: memref<8x128xf32, #tpu.memory_space<vmem>>, %arg9: memref<8x128xf32, #tpu.memory_space<vmem>>, %arg10: memref<8x128xf32, #tpu.memory_space<vmem>>) attributes {dimension_semantics = [#tpu.dimension_semantics<parallel>], iteration_bounds = array<i64: 2>, scalar_prefetch = 0 : i64, scratch_operands = 0 : i64, tpu.core_type = #tpu.core_type<tc>, window_params = [{transform_indices = @transform_0, window_bounds = array<i64: 8, 32>}, {transform_indices = @transform_1, window_bounds = array<i64: 8, 32>}, {pipeline_mode = #tpu.pipeline_mode<synchronous>, transform_indices = @transform_2, window_bounds = array<i64: 32, 640>}, {pipeline_mode = #tpu.pipeline_mode<synchronous>, transform_indices = @transform_3, window_bounds = array<i64: 1, 640>}, {pipeline_mode = #tpu.pipeline_mode<synchronous>, transform_indices = @transform_4, window_bounds = array<i64: 640, 128>}, {transform_indices = @transform_5, window_bounds = array<i64: 8, 128>}, {transform_indices = @transform_6, window_bounds = array<i64: 8, 128>}, {transform_indices = @transform_7, window_bounds = array<i64: 8, 128>}, {transform_indices = @transform_8, window_bounds = array<i64: 8, 128>}, {transform_indices = @transform_9, window_bounds = array<i64: 8, 128>}]} {
    %c0 = arith.constant 0 : index
    %c0_0 = arith.constant 0 : index
    %0 = vector.load %arg1[%c0, %c0_0] : memref<8x32xf32, #tpu.memory_space<vmem>>, vector<8x32xf32>
    %1 = arith.truncf %0 : vector<8x32xf32> to vector<8x32xbf16>
    %c0_1 = arith.constant 0 : index
    %c0_2 = arith.constant 0 : index
    %2 = vector.load %arg2[%c0_1, %c0_2] : memref<8x32xf32, #tpu.memory_space<vmem>>, vector<8x32xf32>
    %3 = arith.truncf %2 : vector<8x32xf32> to vector<8x32xbf16>
    %c0_3 = arith.constant 0 : index
    %c0_4 = arith.constant 0 : index
    %4 = vector.load %arg3[%c0_3, %c0_4] : memref<32x640xbf16, #tpu.memory_space<vmem>>, vector<32x128xbf16>
    %cst = arith.constant dense<0.000000e+00> : vector<8x128xf32>
    %5 = tpu.matmul %1, %4, %cst {dimension_numbers = #tpu.dot_dimension_numbers<[1], [0], [0], [1], [0, 0, 1, 1], [], []>} : vector<8x32xbf16>, vector<32x128xbf16>, vector<8x128xf32> -> vector<8x128xf32>
    %c0_5 = arith.constant 0 : index
    %c0_6 = arith.constant 0 : index
    %6 = vector.load %arg4[%c0_5, %c0_6] : memref<1x640xf32, #tpu.memory_space<vmem>>, vector<1x128xf32>
    %7 = vector.broadcast %6 : vector<1x128xf32> to vector<8x128xf32>
    %8 = arith.addf %5, %7 : vector<8x128xf32>
    %cst_7 = arith.constant 1.000000e-01 : f32
    %9 = vector.broadcast %cst_7 : f32 to vector<8x128xf32>
    %10 = arith.mulf %9, %8 : vector<8x128xf32>
    %11 = arith.maximumf %8, %10 : vector<8x128xf32>
    %12 = arith.truncf %11 : vector<8x128xf32> to vector<8x128xbf16>
    %c0_8 = arith.constant 0 : index
    %c0_9 = arith.constant 0 : index
    %13 = vector.load %arg5[%c0_8, %c0_9] : memref<640x128xbf16, #tpu.memory_space<vmem>>, vector<128x128xbf16>
    %cst_10 = arith.constant dense<0.000000e+00> : vector<8x128xf32>
    %14 = tpu.matmul %12, %13, %cst_10 {dimension_numbers = #tpu.dot_dimension_numbers<[1], [0], [0], [1], [0, 0, 1, 1], [], []>} : vector<8x128xbf16>, vector<128x128xbf16>, vector<8x128xf32> -> vector<8x128xf32>
    %c0_11 = arith.constant 0 : index
    %c0_12 = arith.constant 0 : index
    %15 = vector.load %arg6[%c0_11, %c0_12] : memref<8x128xf32, #tpu.memory_space<vmem>>, vector<8x128xf32>
    tpu.vector_store %arg6[%c0_11, %c0_12], %14 {strides = array<i32>} : memref<8x128xf32, #tpu.memory_space<vmem>>, vector<8x128xf32>,
    %c0_13 = arith.constant 0 : index
    %c128 = arith.constant 128 : index
    %16 = vector.load %arg3[%c0_13, %c128] : memref<32x640xbf16, #tpu.memory_space<vmem>>, vector<32x128xbf16>
    %cst_14 = arith.constant dense<0.000000e+00> : vector<8x128xf32>
    %17 = tpu.matmul %1, %16, %cst_14 {dimension_numbers = #tpu.dot_dimension_numbers<[1], [0], [0], [1], [0, 0, 1, 1], [], []>} : vector<8x32xbf16>, vector<32x128xbf16>, vector<8x128xf32> -> vector<8x128xf32>
    %c0_15 = arith.constant 0 : index
    %c128_16 = arith.constant 128 : index
    %18 = vector.load %arg4[%c0_15, %c128_16] : memref<1x640xf32, #tpu.memory_space<vmem>>, vector<1x128xf32>
    %19 = vector.broadcast %18 : vector<1x128xf32> to vector<8x128xf32>
    %20 = arith.addf %17, %19 : vector<8x128xf32>
    %cst_17 = arith.constant 1.000000e-01 : f32
    %21 = vector.broadcast %cst_17 : f32 to vector<8x128xf32>
    %22 = arith.mulf %21, %20 : vector<8x128xf32>
    %23 = arith.maximumf %20, %22 : vector<8x128xf32>
    %24 = arith.truncf %23 : vector<8x128xf32> to vector<8x128xbf16>
    %c128_18 = arith.constant 128 : index
    %c0_19 = arith.constant 0 : index
    %25 = vector.load %arg5[%c128_18, %c0_19] : memref<640x128xbf16, #tpu.memory_space<vmem>>, vector<128x128xbf16>
    %cst_20 = arith.constant dense<0.000000e+00> : vector<8x128xf32>
    %26 = tpu.matmul %24, %25, %cst_20 {dimension_numbers = #tpu.dot_dimension_numbers<[1], [0], [0], [1], [0, 0, 1, 1], [], []>} : vector<8x128xbf16>, vector<128x128xbf16>, vector<8x128xf32> -> vector<8x128xf32>
    %c0_21 = arith.constant 0 : index
    %c0_22 = arith.constant 0 : index
    %27 = vector.load %arg7[%c0_21, %c0_22] : memref<8x128xf32, #tpu.memory_space<vmem>>, vector<8x128xf32>
    tpu.vector_store %arg7[%c0_21, %c0_22], %26 {strides = array<i32>} : memref<8x128xf32, #tpu.memory_space<vmem>>, vector<8x128xf32>,
    %c0_23 = arith.constant 0 : index
    %c256 = arith.constant 256 : index
    %28 = vector.load %arg3[%c0_23, %c256] : memref<32x640xbf16, #tpu.memory_space<vmem>>, vector<32x128xbf16>
    %cst_24 = arith.constant dense<0.000000e+00> : vector<8x128xf32>
    %29 = tpu.matmul %1, %28, %cst_24 {dimension_numbers = #tpu.dot_dimension_numbers<[1], [0], [0], [1], [0, 0, 1, 1], [], []>} : vector<8x32xbf16>, vector<32x128xbf16>, vector<8x128xf32> -> vector<8x128xf32>
    %c0_25 = arith.constant 0 : index
    %c256_26 = arith.constant 256 : index
    %30 = vector.load %arg4[%c0_25, %c256_26] : memref<1x640xf32, #tpu.memory_space<vmem>>, vector<1x128xf32>
    %31 = vector.broadcast %30 : vector<1x128xf32> to vector<8x128xf32>
    %32 = arith.addf %29, %31 : vector<8x128xf32>
    %cst_27 = arith.constant 1.000000e-01 : f32
    %33 = vector.broadcast %cst_27 : f32 to vector<8x128xf32>
    %34 = arith.mulf %33, %32 : vector<8x128xf32>
    %35 = arith.maximumf %32, %34 : vector<8x128xf32>
    %36 = arith.truncf %35 : vector<8x128xf32> to vector<8x128xbf16>
    %c256_28 = arith.constant 256 : index
    %c0_29 = arith.constant 0 : index
    %37 = vector.load %arg5[%c256_28, %c0_29] : memref<640x128xbf16, #tpu.memory_space<vmem>>, vector<128x128xbf16>
    %cst_30 = arith.constant dense<0.000000e+00> : vector<8x128xf32>
    %38 = tpu.matmul %36, %37, %cst_30 {dimension_numbers = #tpu.dot_dimension_numbers<[1], [0], [0], [1], [0, 0, 1, 1], [], []>} : vector<8x128xbf16>, vector<128x128xbf16>, vector<8x128xf32> -> vector<8x128xf32>
    %c0_31 = arith.constant 0 : index
    %c0_32 = arith.constant 0 : index
    %39 = vector.load %arg8[%c0_31, %c0_32] : memref<8x128xf32, #tpu.memory_space<vmem>>, vector<8x128xf32>
    tpu.vector_store %arg8[%c0_31, %c0_32], %38 {strides = array<i32>} : memref<8x128xf32, #tpu.memory_space<vmem>>, vector<8x128xf32>,
    %c0_33 = arith.constant 0 : index
    %c384 = arith.constant 384 : index
    %40 = vector.load %arg3[%c0_33, %c384] : memref<32x640xbf16, #tpu.memory_space<vmem>>, vector<32x128xbf16>
    %cst_34 = arith.constant dense<0.000000e+00> : vector<8x128xf32>
    %41 = tpu.matmul %3, %40, %cst_34 {dimension_numbers = #tpu.dot_dimension_numbers<[1], [0], [0], [1], [0, 0, 1, 1], [], []>} : vector<8x32xbf16>, vector<32x128xbf16>, vector<8x128xf32> -> vector<8x128xf32>
    %c0_35 = arith.constant 0 : index
    %c384_36 = arith.constant 384 : index
    %42 = vector.load %arg4[%c0_35, %c384_36] : memref<1x640xf32, #tpu.memory_space<vmem>>, vector<1x128xf32>
    %43 = vector.broadcast %42 : vector<1x128xf32> to vector<8x128xf32>
    %44 = arith.addf %41, %43 : vector<8x128xf32>
    %cst_37 = arith.constant 1.000000e-01 : f32
    %45 = vector.broadcast %cst_37 : f32 to vector<8x128xf32>
    %46 = arith.mulf %45, %44 : vector<8x128xf32>
    %47 = arith.maximumf %44, %46 : vector<8x128xf32>
    %48 = arith.truncf %47 : vector<8x128xf32> to vector<8x128xbf16>
    %c384_38 = arith.constant 384 : index
    %c0_39 = arith.constant 0 : index
    %49 = vector.load %arg5[%c384_38, %c0_39] : memref<640x128xbf16, #tpu.memory_space<vmem>>, vector<128x128xbf16>
    %cst_40 = arith.constant dense<0.000000e+00> : vector<8x128xf32>
    %50 = tpu.matmul %48, %49, %cst_40 {dimension_numbers = #tpu.dot_dimension_numbers<[1], [0], [0], [1], [0, 0, 1, 1], [], []>} : vector<8x128xbf16>, vector<128x128xbf16>, vector<8x128xf32> -> vector<8x128xf32>
    %c0_41 = arith.constant 0 : index
    %c0_42 = arith.constant 0 : index
    %51 = vector.load %arg9[%c0_41, %c0_42] : memref<8x128xf32, #tpu.memory_space<vmem>>, vector<8x128xf32>
    tpu.vector_store %arg9[%c0_41, %c0_42], %50 {strides = array<i32>} : memref<8x128xf32, #tpu.memory_space<vmem>>, vector<8x128xf32>,
    %c0_43 = arith.constant 0 : index
    %c512 = arith.constant 512 : index
    %52 = vector.load %arg3[%c0_43, %c512] : memref<32x640xbf16, #tpu.memory_space<vmem>>, vector<32x128xbf16>
    %cst_44 = arith.constant dense<0.000000e+00> : vector<8x128xf32>
    %53 = tpu.matmul %3, %52, %cst_44 {dimension_numbers = #tpu.dot_dimension_numbers<[1], [0], [0], [1], [0, 0, 1, 1], [], []>} : vector<8x32xbf16>, vector<32x128xbf16>, vector<8x128xf32> -> vector<8x128xf32>
    %c0_45 = arith.constant 0 : index
    %c512_46 = arith.constant 512 : index
    %54 = vector.load %arg4[%c0_45, %c512_46] : memref<1x640xf32, #tpu.memory_space<vmem>>, vector<1x128xf32>
    %55 = vector.broadcast %54 : vector<1x128xf32> to vector<8x128xf32>
    %56 = arith.addf %53, %55 : vector<8x128xf32>
    %cst_47 = arith.constant 1.000000e-01 : f32
    %57 = vector.broadcast %cst_47 : f32 to vector<8x128xf32>
    %58 = arith.mulf %57, %56 : vector<8x128xf32>
    %59 = arith.maximumf %56, %58 : vector<8x128xf32>
    %60 = arith.truncf %59 : vector<8x128xf32> to vector<8x128xbf16>
    %c512_48 = arith.constant 512 : index
    %c0_49 = arith.constant 0 : index
    %61 = vector.load %arg5[%c512_48, %c0_49] : memref<640x128xbf16, #tpu.memory_space<vmem>>, vector<128x128xbf16>
    %cst_50 = arith.constant dense<0.000000e+00> : vector<8x128xf32>
    %62 = tpu.matmul %60, %61, %cst_50 {dimension_numbers = #tpu.dot_dimension_numbers<[1], [0], [0], [1], [0, 0, 1, 1], [], []>} : vector<8x128xbf16>, vector<128x128xbf16>, vector<8x128xf32> -> vector<8x128xf32>
    %c0_51 = arith.constant 0 : index
    %c0_52 = arith.constant 0 : index
    %63 = vector.load %arg10[%c0_51, %c0_52] : memref<8x128xf32, #tpu.memory_space<vmem>>, vector<8x128xf32>
    tpu.vector_store %arg10[%c0_51, %c0_52], %62 {strides = array<i32>} : memref<8x128xf32, #tpu.memory_space<vmem>>, vector<8x128xf32>,
    return
  }
  func.func @transform_0(%arg0: i32) -> (i32, i32) {
    %c0_i32 = arith.constant 0 : i32
    %c0_i32_0 = arith.constant 0 : i32
    return %arg0, %c0_i32 : i32, i32
  }
  func.func @transform_1(%arg0: i32) -> (i32, i32) {
    %c0_i32 = arith.constant 0 : i32
    %c0_i32_0 = arith.constant 0 : i32
    return %arg0, %c0_i32 : i32, i32
  }
  func.func @transform_2(%arg0: i32) -> (i32, i32) {
    %c0_i32 = arith.constant 0 : i32
    %c0_i32_0 = arith.constant 0 : i32
    %c0_i32_1 = arith.constant 0 : i32
    return %c0_i32, %c0_i32_0 : i32, i32
  }
  func.func @transform_3(%arg0: i32) -> (i32, i32) {
    %c0_i32 = arith.constant 0 : i32
    %c0_i32_0 = arith.constant 0 : i32
    %c0_i32_1 = arith.constant 0 : i32
    return %c0_i32, %c0_i32_0 : i32, i32
  }
  func.func @transform_4(%arg0: i32) -> (i32, i32) {
    %c0_i32 = arith.constant 0 : i32
    %c0_i32_0 = arith.constant 0 : i32
    %c0_i32_1 = arith.constant 0 : i32
    return %c0_i32, %c0_i32_0 : i32, i32
  }
  func.func @transform_5(%arg0: i32) -> (i32, i32) {
    %c0_i32 = arith.constant 0 : i32
    %c0_i32_0 = arith.constant 0 : i32
    return %arg0, %c0_i32 : i32, i32
  }
  func.func @transform_6(%arg0: i32) -> (i32, i32) {
    %c0_i32 = arith.constant 0 : i32
    %c0_i32_0 = arith.constant 0 : i32
    return %arg0, %c0_i32 : i32, i32
  }
  func.func @transform_7(%arg0: i32) -> (i32, i32) {
    %c0_i32 = arith.constant 0 : i32
    %c0_i32_0 = arith.constant 0 : i32
    return %arg0, %c0_i32 : i32, i32
  }
  func.func @transform_8(%arg0: i32) -> (i32, i32) {
    %c0_i32 = arith.constant 0 : i32
    %c0_i32_0 = arith.constant 0 : i32
    return %arg0, %c0_i32 : i32, i32
  }
  func.func @transform_9(%arg0: i32) -> (i32, i32) {
    %c0_i32 = arith.constant 0 : i32
    %c0_i32_0 = arith.constant 0 : i32
    return %arg0, %c0_i32 : i32, i32
  }
}

module attributes {stable_mosaic.version = 11 : i64} {
  func.func @_penta_kernel(%arg0: i32, %arg1: memref<8x32xf32, #tpu.memory_space<vmem>>, %arg2: memref<8x32xf32, #tpu.memory_space<vmem>>, %arg3: memref<32x640xbf16, #tpu.memory_space<vmem>>, %arg4: memref<1x640xf32, #tpu.memory_space<vmem>>, %arg5: memref<640x128xbf16, #tpu.memory_space<vmem>>, %arg6: memref<8x128xf32, #tpu.memory_space<vmem>>, %arg7: memref<8x128xf32, #tpu.memory_space<vmem>>, %arg8: memref<8x128xf32, #tpu.memory_space<vmem>>, %arg9: memref<8x128xf32, #tpu.memory_space<vmem>>, %arg10: memref<8x128xf32, #tpu.memory_space<vmem>>) attributes {dimension_semantics = [#tpu.dimension_semantics<parallel>], iteration_bounds = array<i64: 2>, scalar_prefetch = 0 : i64, scratch_operands = 0 : i64, tpu.core_type = #tpu.core_type<tc>, window_params = [{transform_indices = @transform_0, window_bounds = array<i64: 8, 32>}, {transform_indices = @transform_1, window_bounds = array<i64: 8, 32>}, {pipeline_mode = #tpu.pipeline_mode<synchronous>, transform_indices = @transform_2, window_bounds = array<i64: 32, 640>}, {pipeline_mode = #tpu.pipeline_mode<synchronous>, transform_indices = @transform_3, window_bounds = array<i64: 1, 640>}, {pipeline_mode = #tpu.pipeline_mode<synchronous>, transform_indices = @transform_4, window_bounds = array<i64: 640, 128>}, {transform_indices = @transform_5, window_bounds = array<i64: 8, 128>}, {transform_indices = @transform_6, window_bounds = array<i64: 8, 128>}, {transform_indices = @transform_7, window_bounds = array<i64: 8, 128>}, {transform_indices = @transform_8, window_bounds = array<i64: 8, 128>}, {transform_indices = @transform_9, window_bounds = array<i64: 8, 128>}]} {
    %c0 = arith.constant 0 : index
    %c0_0 = arith.constant 0 : index
    %0 = vector.load %arg1[%c0, %c0_0] : memref<8x32xf32, #tpu.memory_space<vmem>>, vector<8x32xf32>
    %1 = arith.truncf %0 : vector<8x32xf32> to vector<8x32xbf16>
    %c0_1 = arith.constant 0 : index
    %c0_2 = arith.constant 0 : index
    %2 = vector.load %arg2[%c0_1, %c0_2] : memref<8x32xf32, #tpu.memory_space<vmem>>, vector<8x32xf32>
    %3 = arith.truncf %2 : vector<8x32xf32> to vector<8x32xbf16>
    %c0_3 = arith.constant 0 : index
    %c0_4 = arith.constant 0 : index
    %4 = vector.load %arg3[%c0_3, %c0_4] : memref<32x640xbf16, #tpu.memory_space<vmem>>, vector<32x128xbf16>
    %cst = arith.constant dense<0.000000e+00> : vector<8x128xf32>
    %5 = tpu.matmul %1, %4, %cst {dimension_numbers = #tpu.dot_dimension_numbers<[1], [0], [0], [1], [0, 0, 1, 1], [], []>} : vector<8x32xbf16>, vector<32x128xbf16>, vector<8x128xf32> -> vector<8x128xf32>
    %c0_5 = arith.constant 0 : index
    %c0_6 = arith.constant 0 : index
    %6 = vector.load %arg4[%c0_5, %c0_6] : memref<1x640xf32, #tpu.memory_space<vmem>>, vector<1x128xf32>
    %7 = vector.broadcast %6 : vector<1x128xf32> to vector<8x128xf32>
    %8 = arith.addf %5, %7 : vector<8x128xf32>
    %cst_7 = arith.constant 1.000000e-01 : f32
    %9 = vector.broadcast %cst_7 : f32 to vector<8x128xf32>
    %10 = arith.mulf %9, %8 : vector<8x128xf32>
    %11 = arith.maximumf %8, %10 : vector<8x128xf32>
    %12 = arith.truncf %11 : vector<8x128xf32> to vector<8x128xbf16>
    %c0_8 = arith.constant 0 : index
    %c0_9 = arith.constant 0 : index
    %13 = vector.load %arg5[%c0_8, %c0_9] : memref<640x128xbf16, #tpu.memory_space<vmem>>, vector<128x128xbf16>
    %cst_10 = arith.constant dense<0.000000e+00> : vector<8x128xf32>
    %14 = tpu.matmul %12, %13, %cst_10 {dimension_numbers = #tpu.dot_dimension_numbers<[1], [0], [0], [1], [0, 0, 1, 1], [], []>} : vector<8x128xbf16>, vector<128x128xbf16>, vector<8x128xf32> -> vector<8x128xf32>
    %c0_11 = arith.constant 0 : index
    %c0_12 = arith.constant 0 : index
    %15 = vector.load %arg6[%c0_11, %c0_12] : memref<8x128xf32, #tpu.memory_space<vmem>>, vector<8x128xf32>
    tpu.vector_store %arg6[%c0_11, %c0_12], %14 {strides = array<i32>} : memref<8x128xf32, #tpu.memory_space<vmem>>, vector<8x128xf32>,
    %c0_13 = arith.constant 0 : index
    %c128 = arith.constant 128 : index
    %16 = vector.load %arg3[%c0_13, %c128] : memref<32x640xbf16, #tpu.memory_space<vmem>>, vector<32x128xbf16>
    %cst_14 = arith.constant dense<0.000000e+00> : vector<8x128xf32>
    %17 = tpu.matmul %1, %16, %cst_14 {dimension_numbers = #tpu.dot_dimension_numbers<[1], [0], [0], [1], [0, 0, 1, 1], [], []>} : vector<8x32xbf16>, vector<32x128xbf16>, vector<8x128xf32> -> vector<8x128xf32>
    %c0_15 = arith.constant 0 : index
    %c128_16 = arith.constant 128 : index
    %18 = vector.load %arg4[%c0_15, %c128_16] : memref<1x640xf32, #tpu.memory_space<vmem>>, vector<1x128xf32>
    %19 = vector.broadcast %18 : vector<1x128xf32> to vector<8x128xf32>
    %20 = arith.addf %17, %19 : vector<8x128xf32>
    %cst_17 = arith.constant 1.000000e-01 : f32
    %21 = vector.broadcast %cst_17 : f32 to vector<8x128xf32>
    %22 = arith.mulf %21, %20 : vector<8x128xf32>
    %23 = arith.maximumf %20, %22 : vector<8x128xf32>
    %24 = arith.truncf %23 : vector<8x128xf32> to vector<8x128xbf16>
    %c128_18 = arith.constant 128 : index
    %c0_19 = arith.constant 0 : index
    %25 = vector.load %arg5[%c128_18, %c0_19] : memref<640x128xbf16, #tpu.memory_space<vmem>>, vector<128x128xbf16>
    %cst_20 = arith.constant dense<0.000000e+00> : vector<8x128xf32>
    %26 = tpu.matmul %24, %25, %cst_20 {dimension_numbers = #tpu.dot_dimension_numbers<[1], [0], [0], [1], [0, 0, 1, 1], [], []>} : vector<8x128xbf16>, vector<128x128xbf16>, vector<8x128xf32> -> vector<8x128xf32>
    %c0_21 = arith.constant 0 : index
    %c0_22 = arith.constant 0 : index
    %27 = vector.load %arg7[%c0_21, %c0_22] : memref<8x128xf32, #tpu.memory_space<vmem>>, vector<8x128xf32>
    tpu.vector_store %arg7[%c0_21, %c0_22], %26 {strides = array<i32>} : memref<8x128xf32, #tpu.memory_space<vmem>>, vector<8x128xf32>,
    %c0_23 = arith.constant 0 : index
    %c256 = arith.constant 256 : index
    %28 = vector.load %arg3[%c0_23, %c256] : memref<32x640xbf16, #tpu.memory_space<vmem>>, vector<32x128xbf16>
    %cst_24 = arith.constant dense<0.000000e+00> : vector<8x128xf32>
    %29 = tpu.matmul %1, %28, %cst_24 {dimension_numbers = #tpu.dot_dimension_numbers<[1], [0], [0], [1], [0, 0, 1, 1], [], []>} : vector<8x32xbf16>, vector<32x128xbf16>, vector<8x128xf32> -> vector<8x128xf32>
    %c0_25 = arith.constant 0 : index
    %c256_26 = arith.constant 256 : index
    %30 = vector.load %arg4[%c0_25, %c256_26] : memref<1x640xf32, #tpu.memory_space<vmem>>, vector<1x128xf32>
    %31 = vector.broadcast %30 : vector<1x128xf32> to vector<8x128xf32>
    %32 = arith.addf %29, %31 : vector<8x128xf32>
    %cst_27 = arith.constant 1.000000e-01 : f32
    %33 = vector.broadcast %cst_27 : f32 to vector<8x128xf32>
    %34 = arith.mulf %33, %32 : vector<8x128xf32>
    %35 = arith.maximumf %32, %34 : vector<8x128xf32>
    %36 = arith.truncf %35 : vector<8x128xf32> to vector<8x128xbf16>
    %c256_28 = arith.constant 256 : index
    %c0_29 = arith.constant 0 : index
    %37 = vector.load %arg5[%c256_28, %c0_29] : memref<640x128xbf16, #tpu.memory_space<vmem>>, vector<128x128xbf16>
    %cst_30 = arith.constant dense<0.000000e+00> : vector<8x128xf32>
    %38 = tpu.matmul %36, %37, %cst_30 {dimension_numbers = #tpu.dot_dimension_numbers<[1], [0], [0], [1], [0, 0, 1, 1], [], []>} : vector<8x128xbf16>, vector<128x128xbf16>, vector<8x128xf32> -> vector<8x128xf32>
    %c0_31 = arith.constant 0 : index
    %c0_32 = arith.constant 0 : index
    %39 = vector.load %arg8[%c0_31, %c0_32] : memref<8x128xf32, #tpu.memory_space<vmem>>, vector<8x128xf32>
    tpu.vector_store %arg8[%c0_31, %c0_32], %38 {strides = array<i32>} : memref<8x128xf32, #tpu.memory_space<vmem>>, vector<8x128xf32>,
    %c0_33 = arith.constant 0 : index
    %c384 = arith.constant 384 : index
    %40 = vector.load %arg3[%c0_33, %c384] : memref<32x640xbf16, #tpu.memory_space<vmem>>, vector<32x128xbf16>
    %cst_34 = arith.constant dense<0.000000e+00> : vector<8x128xf32>
    %41 = tpu.matmul %3, %40, %cst_34 {dimension_numbers = #tpu.dot_dimension_numbers<[1], [0], [0], [1], [0, 0, 1, 1], [], []>} : vector<8x32xbf16>, vector<32x128xbf16>, vector<8x128xf32> -> vector<8x128xf32>
    %c0_35 = arith.constant 0 : index
    %c384_36 = arith.constant 384 : index
    %42 = vector.load %arg4[%c0_35, %c384_36] : memref<1x640xf32, #tpu.memory_space<vmem>>, vector<1x128xf32>
    %43 = vector.broadcast %42 : vector<1x128xf32> to vector<8x128xf32>
    %44 = arith.addf %41, %43 : vector<8x128xf32>
    %cst_37 = arith.constant 1.000000e-01 : f32
    %45 = vector.broadcast %cst_37 : f32 to vector<8x128xf32>
    %46 = arith.mulf %45, %44 : vector<8x128xf32>
    %47 = arith.maximumf %44, %46 : vector<8x128xf32>
    %48 = arith.truncf %47 : vector<8x128xf32> to vector<8x128xbf16>
    %c384_38 = arith.constant 384 : index
    %c0_39 = arith.constant 0 : index
    %49 = vector.load %arg5[%c384_38, %c0_39] : memref<640x128xbf16, #tpu.memory_space<vmem>>, vector<128x128xbf16>
    %cst_40 = arith.constant dense<0.000000e+00> : vector<8x128xf32>
    %50 = tpu.matmul %48, %49, %cst_40 {dimension_numbers = #tpu.dot_dimension_numbers<[1], [0], [0], [1], [0, 0, 1, 1], [], []>} : vector<8x128xbf16>, vector<128x128xbf16>, vector<8x128xf32> -> vector<8x128xf32>
    %c0_41 = arith.constant 0 : index
    %c0_42 = arith.constant 0 : index
    %51 = vector.load %arg9[%c0_41, %c0_42] : memref<8x128xf32, #tpu.memory_space<vmem>>, vector<8x128xf32>
    tpu.vector_store %arg9[%c0_41, %c0_42], %50 {strides = array<i32>} : memref<8x128xf32, #tpu.memory_space<vmem>>, vector<8x128xf32>,
    %c0_43 = arith.constant 0 : index
    %c512 = arith.constant 512 : index
    %52 = vector.load %arg3[%c0_43, %c512] : memref<32x640xbf16, #tpu.memory_space<vmem>>, vector<32x128xbf16>
    %cst_44 = arith.constant dense<0.000000e+00> : vector<8x128xf32>
    %53 = tpu.matmul %3, %52, %cst_44 {dimension_numbers = #tpu.dot_dimension_numbers<[1], [0], [0], [1], [0, 0, 1, 1], [], []>} : vector<8x32xbf16>, vector<32x128xbf16>, vector<8x128xf32> -> vector<8x128xf32>
    %c0_45 = arith.constant 0 : index
    %c512_46 = arith.constant 512 : index
    %54 = vector.load %arg4[%c0_45, %c512_46] : memref<1x640xf32, #tpu.memory_space<vmem>>, vector<1x128xf32>
    %55 = vector.broadcast %54 : vector<1x128xf32> to vector<8x128xf32>
    %56 = arith.addf %53, %55 : vector<8x128xf32>
    %cst_47 = arith.constant 1.000000e-01 : f32
    %57 = vector.broadcast %cst_47 : f32 to vector<8x128xf32>
    %58 = arith.mulf %57, %56 : vector<8x128xf32>
    %59 = arith.maximumf %56, %58 : vector<8x128xf32>
    %60 = arith.truncf %59 : vector<8x128xf32> to vector<8x128xbf16>
    %c512_48 = arith.constant 512 : index
    %c0_49 = arith.constant 0 : index
    %61 = vector.load %arg5[%c512_48, %c0_49] : memref<640x128xbf16, #tpu.memory_space<vmem>>, vector<128x128xbf16>
    %cst_50 = arith.constant dense<0.000000e+00> : vector<8x128xf32>
    %62 = tpu.matmul %60, %61, %cst_50 {dimension_numbers = #tpu.dot_dimension_numbers<[1], [0], [0], [1], [0, 0, 1, 1], [], []>} : vector<8x128xbf16>, vector<128x128xbf16>, vector<8x128xf32> -> vector<8x128xf32>
    %c0_51 = arith.constant 0 : index
    %c0_52 = arith.constant 0 : index
    %63 = vector.load %arg10[%c0_51, %c0_52] : memref<8x128xf32, #tpu.memory_space<vmem>>, vector<8x128xf32>
    tpu.vector_store %arg10[%c0_51, %c0_52], %62 {strides = array<i32>} : memref<8x128xf32, #tpu.memory_space<vmem>>, vector<8x128xf32>,
    return
  }
  func.func @transform_0(%arg0: i32) -> (i32, i32) {
    %c0_i32 = arith.constant 0 : i32
    %c0_i32_0 = arith.constant 0 : i32
    return %arg0, %c0_i32 : i32, i32
  }
  func.func @transform_1(%arg0: i32) -> (i32, i32) {
    %c0_i32 = arith.constant 0 : i32
    %c0_i32_0 = arith.constant 0 : i32
    return %arg0, %c0_i32 : i32, i32
  }
  func.func @transform_2(%arg0: i32) -> (i32, i32) {
    %c0_i32 = arith.constant 0 : i32
    %c0_i32_0 = arith.constant 0 : i32
    %c0_i32_1 = arith.constant 0 : i32
    return %c0_i32, %c0_i32_0 : i32, i32
  }
  func.func @transform_3(%arg0: i32) -> (i32, i32) {
    %c0_i32 = arith.constant 0 : i32
    %c0_i32_0 = arith.constant 0 : i32
    %c0_i32_1 = arith.constant 0 : i32
    return %c0_i32, %c0_i32_0 : i32, i32
  }
  func.func @transform_4(%arg0: i32) -> (i32, i32) {
    %c0_i32 = arith.constant 0 : i32
    %c0_i32_0 = arith.constant 0 : i32
    %c0_i32_1 = arith.constant 0 : i32
    return %c0_i32, %c0_i32_0 : i32, i32
  }
  func.func @transform_5(%arg0: i32) -> (i32, i32) {
    %c0_i32 = arith.constant 0 : i32
    %c0_i32_0 = arith.constant 0 : i32
    return %arg0, %c0_i32 : i32, i32
  }
  func.func @transform_6(%arg0: i32) -> (i32, i32) {
    %c0_i32 = arith.constant 0 : i32
    %c0_i32_0 = arith.constant 0 : i32
    return %arg0, %c0_i32 : i32, i32
  }
  func.func @transform_7(%arg0: i32) -> (i32, i32) {
    %c0_i32 = arith.constant 0 : i32
    %c0_i32_0 = arith.constant 0 : i32
    return %arg0, %c0_i32 : i32, i32
  }
  func.func @transform_8(%arg0: i32) -> (i32, i32) {
    %c0_i32 = arith.constant 0 : i32
    %c0_i32_0 = arith.constant 0 : i32
    return %arg0, %c0_i32 : i32, i32
  }
  func.func @transform_9(%arg0: i32) -> (i32, i32) {
    %c0_i32 = arith.constant 0 : i32
    %c0_i32_0 = arith.constant 0 : i32
    return %arg0, %c0_i32 : i32, i32
  }
}

</mosaic_0001>

<llo_original>
// kernel: tpu_custom_call.1
$region0: #{tpu_custom_call.1}
  #allocation0 [shape = 'u32[]', space=smem, size = 0x4, offset = 0x4, fixed_abs, tag = 'smem constant byte address 0x4 - core index']
  #allocation1 [shape = 'u32[144,128]{1,0:T(1,128)}', space=vmem, size = 0x12000, scoped, tag = 'internal scratch']
  %s0 = inlined_call_operand.hbm [shape: f32[16,32], index: 0, kind: input, shape index: {}]
  %s1 = inlined_call_operand.hbm [shape: f32[16,32], index: 1, kind: input, shape index: {}]
  %s2 = inlined_call_operand.hbm [shape: bf16[32,640], index: 2, kind: input, shape index: {}]
  %s3 = inlined_call_operand.vmem [shape: f32[1,640], index: 3, kind: input, shape index: {}]
  %s4 = inlined_call_operand.hbm [shape: bf16[640,128], index: 4, kind: input, shape index: {}]
  %s5 = inlined_call_operand.hbm [shape: f32[16,128], index: 5, kind: output, shape index: {0}]
  %s6 = inlined_call_operand.hbm [shape: f32[16,128], index: 6, kind: output, shape index: {1}]
  %s7 = inlined_call_operand.hbm [shape: f32[16,128], index: 7, kind: output, shape index: {2}]
  %s8 = inlined_call_operand.hbm [shape: f32[16,128], index: 8, kind: output, shape index: {3}]
  %s9 = inlined_call_operand.hbm [shape: f32[16,128], index: 9, kind: output, shape index: {4}]
  %10 = xla_tuple %s5, %s6, %s7, %s8, %s9
  %s11 = sld [smem:[#allocation0]]
  $region101: #{tpu_custom_call.1} parent=0
    _
  %s13 = ssub.s32 1, %s11
  %s14 = scalar_select 0, %s13, %s11
  $region1: #{tpu_custom_call.1} parent=0
    #allocation2 [shape = 'u8[8192]{0}', space=vmem, size = 0x2000, scoped, tag = 'input window, operand 0']
    #allocation3 [shape = 's32[2]{0}', space=sflag, size = 0x8, scoped, tag = 'scoped memory for tpu_custom_call.1']
    #allocation4 [shape = 's32[2]{0}', space=sflag, size = 0x8, scoped, tag = 'scoped memory for tpu_custom_call.1']
    #allocation5 [shape = 'u8[8192]{0}', space=vmem, size = 0x2000, scoped, tag = 'input window, operand 1']
    #allocation6 [shape = 's32[2]{0}', space=sflag, size = 0x8, scoped, tag = 'scoped memory for tpu_custom_call.1']
    #allocation7 [shape = 'u8[40960]{0}', space=vmem, size = 0xa000, scoped, tag = 'input window, operand 2, single buffered']
    #allocation8 [shape = 'u8[163840]{0}', space=vmem, size = 0x28000, scoped, tag = 'input window, operand 4, single buffered']
    #allocation9 [shape = 's32[1]{0}', space=sflag, size = 0x4, scoped, tag = 'scoped memory for tpu_custom_call.1']
    #allocation10 [shape = 'u8[8192]{0}', space=vmem, size = 0x2000, scoped, tag = 'output window, operand 0']
    #allocation11 [shape = 'u8[8192]{0}', space=vmem, size = 0x2000, scoped, tag = 'output window, operand 1']
    #allocation12 [shape = 's32[2]{0}', space=sflag, size = 0x8, scoped, tag = 'scoped memory for tpu_custom_call.1']
    #allocation13 [shape = 'u8[8192]{0}', space=vmem, size = 0x2000, scoped, tag = 'output window, operand 2']
    #allocation14 [shape = 'u8[8192]{0}', space=vmem, size = 0x2000, scoped, tag = 'output window, operand 3']
    #allocation15 [shape = 's32[2]{0}', space=sflag, size = 0x8, scoped, tag = 'scoped memory for tpu_custom_call.1']
    #allocation16 [shape = 'u8[8192]{0}', space=vmem, size = 0x2000, scoped, tag = 'output window, operand 4']
    %15 = vsyncpa [#allocation3], 0
    %s16 = scalar_lea.sflag [#allocation3], 1
    %17 = vsyncpa %s16, 0
    %18 = vsyncpa [#allocation6], 0
    %s19 = scalar_lea.sflag [#allocation6], 1
    %20 = vsyncpa %s19, 0
    %21 = vsyncpa [#allocation9], 0
    %22 = vsyncpa [#allocation4], 0
    %s23 = scalar_lea.sflag [#allocation4], 1
    %24 = vsyncpa %s23, 0
    %25 = vsyncpa [#allocation12], 0
    %s26 = scalar_lea.sflag [#allocation12], 1
    %27 = vsyncpa %s26, 0
    %28 = vsyncpa [#allocation15], 0
    %s29 = scalar_lea.sflag [#allocation15], 1
    %30 = vsyncpa %s29, 0
    loop: start=0, step=1, limit=4
    $region2: #{tpu_custom_call.1} parent=1 // loop_pre_header
      _
    $region3: #{tpu_custom_call.1} parent=1 // loop_header
      %s32 = sphi 0, %s36
      %p33 = scmp.ge.s32.totalorder %s32, 4
      %s42 = sphi 0, %s44
      %s45 = sphi 0, %s42
      %s46 = sphi 0, %s45
      %s62 = sphi 0, %s46
      %s68 = sphi 0, %s70
      %s71 = sphi 0, %s68
      %s72 = sphi 0, %s71
      %s88 = sphi 0, %s72
      %s92 = sphi 0, %s92
      %s94 = sphi 0, %s92
      %s95 = sphi 0, %s94
      %s109 = sphi 0, %s95
      %s113 = sphi 0, %s113
      %s115 = sphi 0, %s113
      %s116 = sphi 0, %s115
      %s130 = sphi 0, %s116
      %s134 = sphi 0, %s134
      %s136 = sphi 0, %s134
      %s137 = sphi 0, %s136
      %s151 = sphi 0, %s137
      %s157 = sphi 0, %s159
      %s160 = sphi 0, %s157
      %s161 = sphi 0, %s160
      %s177 = sphi 0, %s161
      %s183 = sphi 0, %s185
      %s186 = sphi 0, %s183
      %s187 = sphi 0, %s186
      %s203 = sphi 0, %s187
      %s209 = sphi 0, %s211
      %s212 = sphi 0, %s209
      %s213 = sphi 0, %s212
      %s229 = sphi 0, %s213
      %s235 = sphi 0, %s237
      %s238 = sphi 0, %s235
      %s239 = sphi 0, %s238
      %s255 = sphi 0, %s239
      %s261 = sphi 0, %s263
      %s264 = sphi 0, %s261
      %s265 = sphi 0, %s264
      %s281 = sphi 0, %s265
    $region4: #{tpu_custom_call.1} parent=1 // loop_header_branch
      %35 = sbr.rel (%p33) target = $region8
    $region5: #{tpu_custom_call.1} parent=1 // loop_body
      %s37 = ssub.s32 %s32, 1
      %s38 = ssub.s32 %s32, 2
      %s39 = sadd.s32 %s32, 1
      %s40 = ssub.s32 %s32, %s39
      %p41 = scmp.eq.s32.totalorder %s40, 0
      %s43 = sadd.s32 %s42, 1
      %s44 = scalar_select %p41, %s42, %s43
      %p47 = pneg %p41
      %p48 = scmp.eq.s32.totalorder %s32, 1
      %p49 = por %p47, %p48
      %p50 = scmp.ne.s32.totalorder %s42, %s45
      %p51 = scmp.eq.s32.totalorder %s32, 0
      %p52 = por %p50, %p51
      %p53 = scmp.ne.s32.totalorder %s42, %s45
      %p54 = scmp.eq.s32.totalorder %s37, 1
      %p55 = por %p53, %p54
      %p56 = scmp.ne.s32.totalorder %s45, %s46
      %p57 = scmp.eq.s32.totalorder %s37, 0
      %p58 = por %p56, %p57
      %p59 = scmp.ne.s32.totalorder %s45, %s46
      %p60 = scmp.eq.s32.totalorder %s38, 1
      %p61 = por %p59, %p60
      %p63 = scmp.ne.s32.totalorder %s46, %s62
      %p64 = scmp.eq.s32.totalorder %s38, 0
      %p65 = por %p63, %p64
      %s66 = ssub.s32 %s32, %s39
      %p67 = scmp.eq.s32.totalorder %s66, 0
      %s69 = sadd.s32 %s68, 1
      %s70 = scalar_select %p67, %s68, %s69
      %p73 = pneg %p67
      %p74 = scmp.eq.s32.totalorder %s32, 1
      %p75 = por %p73, %p74
      %p76 = scmp.ne.s32.totalorder %s68, %s71
      %p77 = scmp.eq.s32.totalorder %s32, 0
      %p78 = por %p76, %p77
      %p79 = scmp.ne.s32.totalorder %s68, %s71
      %p80 = scmp.eq.s32.totalorder %s37, 1
      %p81 = por %p79, %p80
      %p82 = scmp.ne.s32.totalorder %s71, %s72
      %p83 = scmp.eq.s32.totalorder %s37, 0
      %p84 = por %p82, %p83
      %p85 = scmp.ne.s32.totalorder %s71, %s72
      %p86 = scmp.eq.s32.totalorder %s38, 1
      %p87 = por %p85, %p86
      %p89 = scmp.ne.s32.totalorder %s72, %s88
      %p90 = scmp.eq.s32.totalorder %s38, 0
      %p91 = por %p89, %p90
      %s93 = sadd.s32 %s92, 1
      %p96 = scmp.eq.s32.totalorder %s32, 1
      %p97 = scmp.ne.s32.totalorder %s92, %s94
      %p98 = scmp.eq.s32.totalorder %s32, 0
      %p99 = por %p97, %p98
      %p100 = scmp.ne.s32.totalorder %s92, %s94
      %p101 = scmp.eq.s32.totalorder %s37, 1
      %p102 = por %p100, %p101
      %p103 = scmp.ne.s32.totalorder %s94, %s95
      %p104 = scmp.eq.s32.totalorder %s37, 0
      %p105 = por %p103, %p104
      %p106 = scmp.ne.s32.totalorder %s94, %s95
      %p107 = scmp.eq.s32.totalorder %s38, 1
      %p108 = por %p106, %p107
      %p110 = scmp.ne.s32.totalorder %s95, %s109
      %p111 = scmp.eq.s32.totalorder %s38, 0
      %p112 = por %p110, %p111
      %s114 = sadd.s32 %s113, 1
      %p117 = scmp.eq.s32.totalorder %s32, 1
      %p118 = scmp.ne.s32.totalorder %s113, %s115
      %p119 = scmp.eq.s32.totalorder %s32, 0
      %p120 = por %p118, %p119
      %p121 = scmp.ne.s32.totalorder %s113, %s115
      %p122 = scmp.eq.s32.totalorder %s37, 1
      %p123 = por %p121, %p122
      %p124 = scmp.ne.s32.totalorder %s115, %s116
      %p125 = scmp.eq.s32.totalorder %s37, 0
      %p126 = por %p124, %p125
      %p127 = scmp.ne.s32.totalorder %s115, %s116
      %p128 = scmp.eq.s32.totalorder %s38, 1
      %p129 = por %p127, %p128
      %p131 = scmp.ne.s32.totalorder %s116, %s130
      %p132 = scmp.eq.s32.totalorder %s38, 0
      %p133 = por %p131, %p132
      %s135 = sadd.s32 %s134, 1
      %p138 = scmp.eq.s32.totalorder %s32, 1
      %p139 = scmp.ne.s32.totalorder %s134, %s136
      %p140 = scmp.eq.s32.totalorder %s32, 0
      %p141 = por %p139, %p140
      %p142 = scmp.ne.s32.totalorder %s134, %s136
      %p143 = scmp.eq.s32.totalorder %s37, 1
      %p144 = por %p142, %p143
      %p145 = scmp.ne.s32.totalorder %s136, %s137
      %p146 = scmp.eq.s32.totalorder %s37, 0
      %p147 = por %p145, %p146
      %p148 = scmp.ne.s32.totalorder %s136, %s137
      %p149 = scmp.eq.s32.totalorder %s38, 1
      %p150 = por %p148, %p149
      %p152 = scmp.ne.s32.totalorder %s137, %s151
      %p153 = scmp.eq.s32.totalorder %s38, 0
      %p154 = por %p152, %p153
      %s155 = ssub.s32 %s32, %s39
      %p156 = scmp.eq.s32.totalorder %s155, 0
      %s158 = sadd.s32 %s157, 1
      %s159 = scalar_select %p156, %s157, %s158
      %p162 = pneg %p156
      %p163 = scmp.eq.s32.totalorder %s32, 1
      %p164 = por %p162, %p163
      %p165 = scmp.ne.s32.totalorder %s157, %s160
      %p166 = scmp.eq.s32.totalorder %s32, 0
      %p167 = por %p165, %p166
      %p168 = scmp.ne.s32.totalorder %s157, %s160
      %p169 = scmp.eq.s32.totalorder %s37, 1
      %p170 = por %p168, %p169
      %p171 = scmp.ne.s32.totalorder %s160, %s161
      %p172 = scmp.eq.s32.totalorder %s37, 0
      %p173 = por %p171, %p172
      %p174 = scmp.ne.s32.totalorder %s160, %s161
      %p175 = scmp.eq.s32.totalorder %s38, 1
      %p176 = por %p174, %p175
      %p178 = scmp.ne.s32.totalorder %s161, %s177
      %p179 = scmp.eq.s32.totalorder %s38, 0
      %p180 = por %p178, %p179
      %s181 = ssub.s32 %s32, %s39
      %p182 = scmp.eq.s32.totalorder %s181, 0
      %s184 = sadd.s32 %s183, 1
      %s185 = scalar_select %p182, %s183, %s184
      %p188 = pneg %p182
      %p189 = scmp.eq.s32.totalorder %s32, 1
      %p190 = por %p188, %p189
      %p191 = scmp.ne.s32.totalorder %s183, %s186
      %p192 = scmp.eq.s32.totalorder %s32, 0
      %p193 = por %p191, %p192
      %p194 = scmp.ne.s32.totalorder %s183, %s186
      %p195 = scmp.eq.s32.totalorder %s37, 1
      %p196 = por %p194, %p195
      %p197 = scmp.ne.s32.totalorder %s186, %s187
      %p198 = scmp.eq.s32.totalorder %s37, 0
      %p199 = por %p197, %p198
      %p200 = scmp.ne.s32.totalorder %s186, %s187
      %p201 = scmp.eq.s32.totalorder %s38, 1
      %p202 = por %p200, %p201
      %p204 = scmp.ne.s32.totalorder %s187, %s203
      %p205 = scmp.eq.s32.totalorder %s38, 0
      %p206 = por %p204, %p205
      %s207 = ssub.s32 %s32, %s39
      %p208 = scmp.eq.s32.totalorder %s207, 0
      %s210 = sadd.s32 %s209, 1
      %s211 = scalar_select %p208, %s209, %s210
      %p214 = pneg %p208
      %p215 = scmp.eq.s32.totalorder %s32, 1
      %p216 = por %p214, %p215
      %p217 = scmp.ne.s32.totalorder %s209, %s212
      %p218 = scmp.eq.s32.totalorder %s32, 0
      %p219 = por %p217, %p218
      %p220 = scmp.ne.s32.totalorder %s209, %s212
      %p221 = scmp.eq.s32.totalorder %s37, 1
      %p222 = por %p220, %p221
      %p223 = scmp.ne.s32.totalorder %s212, %s213
      %p224 = scmp.eq.s32.totalorder %s37, 0
      %p225 = por %p223, %p224
      %p226 = scmp.ne.s32.totalorder %s212, %s213
      %p227 = scmp.eq.s32.totalorder %s38, 1
      %p228 = por %p226, %p227
      %p230 = scmp.ne.s32.totalorder %s213, %s229
      %p231 = scmp.eq.s32.totalorder %s38, 0
      %p232 = por %p230, %p231
      %s233 = ssub.s32 %s32, %s39
      %p234 = scmp.eq.s32.totalorder %s233, 0
      %s236 = sadd.s32 %s235, 1
      %s237 = scalar_select %p234, %s235, %s236
      %p240 = pneg %p234
      %p241 = scmp.eq.s32.totalorder %s32, 1
      %p242 = por %p240, %p241
      %p243 = scmp.ne.s32.totalorder %s235, %s238
      %p244 = scmp.eq.s32.totalorder %s32, 0
      %p245 = por %p243, %p244
      %p246 = scmp.ne.s32.totalorder %s235, %s238
      %p247 = scmp.eq.s32.totalorder %s37, 1
      %p248 = por %p246, %p247
      %p249 = scmp.ne.s32.totalorder %s238, %s239
      %p250 = scmp.eq.s32.totalorder %s37, 0
      %p251 = por %p249, %p250
      %p252 = scmp.ne.s32.totalorder %s238, %s239
      %p253 = scmp.eq.s32.totalorder %s38, 1
      %p254 = por %p252, %p253
      %p256 = scmp.ne.s32.totalorder %s239, %s255
      %p257 = scmp.eq.s32.totalorder %s38, 0
      %p258 = por %p256, %p257
      %s259 = ssub.s32 %s32, %s39
      %p260 = scmp.eq.s32.totalorder %s259, 0
      %s262 = sadd.s32 %s261, 1
      %s263 = scalar_select %p260, %s261, %s262
      %p266 = pneg %p260
      %p267 = scmp.eq.s32.totalorder %s32, 1
      %p268 = por %p266, %p267
      %p269 = scmp.ne.s32.totalorder %s261, %s264
      %p270 = scmp.eq.s32.totalorder %s32, 0
      %p271 = por %p269, %p270
      %p272 = scmp.ne.s32.totalorder %s261, %s264
      %p273 = scmp.eq.s32.totalorder %s37, 1
      %p274 = por %p272, %p273
      %p275 = scmp.ne.s32.totalorder %s264, %s265
      %p276 = scmp.eq.s32.totalorder %s37, 0
      %p277 = por %p275, %p276
      %p278 = scmp.ne.s32.totalorder %s264, %s265
      %p279 = scmp.eq.s32.totalorder %s38, 1
      %p280 = por %p278, %p279
      %p282 = scmp.ne.s32.totalorder %s265, %s281
      %p283 = scmp.eq.s32.totalorder %s38, 0
      %p284 = por %p282, %p283
      %p285 = scmp.le.s32.totalorder 1, %s32
      %p286 = scmp.lt.s32.totalorder %s32, 3
      %p287 = pnand %p285, %p286
      %p288 = pneg %p287
      // Predicated region
      $region9: #{tpu_custom_call.1} parent=5 // pred_check
        _
      $region10: #{tpu_custom_call.1} parent=5 // pred_check_branch
        %290 = sbr.rel (%p287) target = $region12
      $region11: #{tpu_custom_call.1} parent=5 // pred_region
        %s291 = ssub.s32 %s32, 1
        // Predicated region
        $region13: #{tpu_custom_call.1} parent=11 // pred_check
          %p292 = pneg %p105
        $region14: #{tpu_custom_call.1} parent=11 // pred_check_branch
          %294 = sbr.rel (%p292) target = $region16
        $region15: #{tpu_custom_call.1} parent=11 // pred_region
          %s296 = ssub.s32 1280, 1280
          %297 = vsyncadd [#allocation6], %s296
          %s298 = sshll.u32 [#allocation7], 4
          %s299 = int_to_ptr.vmem [resolvable:$true] %s298
          %304 = dma.hbm_to_vmem [thread:$0]  %s2, 1280, %s299, [#allocation6], 320, 320, 20
        $region16: #{tpu_custom_call.1} parent=11 // pred_fallthru
          _
        // Predicated region
        $region17: #{tpu_custom_call.1} parent=11 // pred_check
          %p305 = pneg %p126
        $region18: #{tpu_custom_call.1} parent=11 // pred_check_branch
          %307 = sbr.rel (%p305) target = $region20
        $region19: #{tpu_custom_call.1} parent=11 // pred_region
          _
        $region20: #{tpu_custom_call.1} parent=11 // pred_fallthru
          _
        // Predicated region
        $region21: #{tpu_custom_call.1} parent=11 // pred_check
          %p308 = pneg %p147
        $region22: #{tpu_custom_call.1} parent=11 // pred_check_branch
          %310 = sbr.rel (%p308) target = $region24
        $region23: #{tpu_custom_call.1} parent=11 // pred_region
          %s312 = ssub.s32 5120, 5120
          %313 = vsyncadd [#allocation9], %s312
          %s314 = sshll.u32 [#allocation8], 4
          %s315 = int_to_ptr.vmem [resolvable:$true] %s314
          %320 = dma.hbm_to_vmem [thread:$0]  %s4, 5120, %s315, [#allocation9], 64, 64, 4
        $region24: #{tpu_custom_call.1} parent=11 // pred_fallthru
          _
      $region12: #{tpu_custom_call.1} parent=5 // pred_fallthru
        _
      %p321 = scmp.lt.s32.totalorder %s32, 2
      // Predicated region
      $region25: #{tpu_custom_call.1} parent=5 // pred_check
        %p322 = pneg %p321
      $region26: #{tpu_custom_call.1} parent=5 // pred_check_branch
        %324 = sbr.rel (%p322) target = $region28
      $region27: #{tpu_custom_call.1} parent=5 // pred_region
        // Predicated region
        $region29: #{tpu_custom_call.1} parent=27 // pred_check
          %p325 = pneg %p52
        $region30: #{tpu_custom_call.1} parent=27 // pred_check_branch
          %327 = sbr.rel (%p325) target = $region32
        $region31: #{tpu_custom_call.1} parent=27 // pred_region
          %s328 = sand.u32 %s42, 1
          %s329 = scalar_lea.sflag [#allocation3], %s328
          %s330 = sand.u32 %s42, 1
          %s331 = smul.addr %s330, 8
          %s332 = scalar_lea.vmem [#allocation2], %s331
          %s334 = ssub.s32 128, 128
          %335 = vsyncadd %s329, %s334
          %s336 = smul.addr %s32, 128
          %s337 = scalar_lea.hbm %s0, %s336
          %s339 = sshll.u32 %s332, 4
          %s340 = int_to_ptr.vmem [resolvable:$true] %s339
          %342 = dma.hbm_to_vmem [thread:$0]  %s337, 128, %s340, %s329
        $region32: #{tpu_custom_call.1} parent=27 // pred_fallthru
          _
        // Predicated region
        $region33: #{tpu_custom_call.1} parent=27 // pred_check
          %p343 = pneg %p78
        $region34: #{tpu_custom_call.1} parent=27 // pred_check_branch
          %345 = sbr.rel (%p343) target = $region36
        $region35: #{tpu_custom_call.1} parent=27 // pred_region
          %s346 = sand.u32 %s32, 1
          %s347 = scalar_lea.sflag [#allocation6], %s346
          %s348 = sand.u32 %s68, 1
          %s349 = smul.addr %s348, 8
          %s350 = scalar_lea.vmem [#allocation5], %s349
          %s352 = ssub.s32 128, 128
          %353 = vsyncadd %s347, %s352
          %s354 = smul.addr %s32, 128
          %s355 = scalar_lea.hbm %s1, %s354
          %s357 = sshll.u32 %s350, 4
          %s358 = int_to_ptr.vmem [resolvable:$true] %s357
          %360 = dma.hbm_to_vmem [thread:$0]  %s355, 128, %s358, %s347
        $region36: #{tpu_custom_call.1} parent=27 // pred_fallthru
          _
      $region28: #{tpu_custom_call.1} parent=5 // pred_fallthru
        _
      %p361 = scmp.le.s32.totalorder 1, %s32
      %p362 = scmp.lt.s32.totalorder %s32, 3
      %p363 = pnand %p361, %p362
      %p364 = pneg %p363
      // Predicated region
      $region37: #{tpu_custom_call.1} parent=5 // pred_check
        _
      $region38: #{tpu_custom_call.1} parent=5 // pred_check_branch
        %366 = sbr.rel (%p363) target = $region40
      $region39: #{tpu_custom_call.1} parent=5 // pred_region
        %s367 = ssub.s32 %s32, 1
        %s368 = sand.u32 %s45, 1
        %s369 = scalar_lea.sflag [#allocation3], %s368
        %s370 = sand.u32 %s45, 1
        %s371 = smul.addr %s370, 8
        %s372 = scalar_lea.vmem [#allocation2], %s371
        // Predicated region
        $region41: #{tpu_custom_call.1} parent=39 // pred_check
          %p373 = pneg %p58
        $region42: #{tpu_custom_call.1} parent=39 // pred_check_branch
          %375 = sbr.rel (%p373) target = $region44
        $region43: #{tpu_custom_call.1} parent=39 // pred_region
          %376 = dma.done %s369, 128
        $region44: #{tpu_custom_call.1} parent=39 // pred_fallthru
          _
        %s377 = sand.u32 %s37, 1
        %s378 = scalar_lea.sflag [#allocation6], %s377
        %s379 = sand.u32 %s71, 1
        %s380 = smul.addr %s379, 8
        %s381 = scalar_lea.vmem [#allocation5], %s380
        // Predicated region
        $region45: #{tpu_custom_call.1} parent=39 // pred_check
          %p382 = pneg %p84
        $region46: #{tpu_custom_call.1} parent=39 // pred_check_branch
          %384 = sbr.rel (%p382) target = $region48
        $region47: #{tpu_custom_call.1} parent=39 // pred_region
          %385 = dma.done %s378, 128
        $region48: #{tpu_custom_call.1} parent=39 // pred_fallthru
          _
        // Predicated region
        $region49: #{tpu_custom_call.1} parent=39 // pred_check
          %p386 = pneg %p105
        $region50: #{tpu_custom_call.1} parent=39 // pred_check_branch
          %388 = sbr.rel (%p386) target = $region52
        $region51: #{tpu_custom_call.1} parent=39 // pred_region
          %389 = dma.done [#allocation6], 1280
        $region52: #{tpu_custom_call.1} parent=39 // pred_fallthru
          _
        // Predicated region
        $region53: #{tpu_custom_call.1} parent=39 // pred_check
          %p390 = pneg %p147
        $region54: #{tpu_custom_call.1} parent=39 // pred_check_branch
          %392 = sbr.rel (%p390) target = $region56
        $region55: #{tpu_custom_call.1} parent=39 // pred_region
          %393 = dma.done [#allocation9], 5120
        $region56: #{tpu_custom_call.1} parent=39 // pred_fallthru
          _
        %s394 = sand.u32 %s45, 1
        %s395 = scalar_lea.sflag [#allocation3], %s394
        %s396 = sand.u32 %s45, 1
        %s397 = smul.addr %s396, 8
        %s398 = scalar_lea.vmem [#allocation2], %s397
        %p399 = pneg %p58
        %p400 = pneg %p55
        %s401 = sand.u32 %s37, 1
        %s402 = scalar_lea.sflag [#allocation6], %s401
        %s403 = sand.u32 %s71, 1
        %s404 = smul.addr %s403, 8
        %s405 = scalar_lea.vmem [#allocation5], %s404
        %p406 = pneg %p84
        %p407 = pneg %p81
        %p408 = pneg %p105
        %p409 = pneg %p102
        %p410 = pneg %p126
        %p411 = pneg %p123
        %p412 = pneg %p147
        %p413 = pneg %p144
        %p414 = pneg %p173
        %p415 = pneg %p170
        %s416 = sand.u32 %s160, 1
        %s417 = scalar_lea.sflag [#allocation4], %s416
        %s418 = sand.u32 %s160, 1
        %s419 = smul.addr %s418, 8
        %s420 = scalar_lea.vmem [#allocation10], %s419
        %p421 = pneg %p199
        %p422 = pneg %p196
        %s423 = sand.u32 %s37, 1
        %s424 = scalar_lea.sflag [#allocation12], %s423
        %s425 = sand.u32 %s186, 1
        %s426 = smul.addr %s425, 8
        %s427 = scalar_lea.vmem [#allocation11], %s426
        %p428 = pneg %p225
        %p429 = pneg %p222
        %s430 = sand.u32 %s37, 1
        %s431 = scalar_lea.sflag [#allocation12], %s430
        %s432 = sand.u32 %s212, 1
        %s433 = smul.addr %s432, 8
        %s434 = scalar_lea.vmem [#allocation13], %s433
        %p435 = pneg %p251
        %p436 = pneg %p248
        %s437 = sand.u32 %s37, 1
        %s438 = scalar_lea.sflag [#allocation15], %s437
        %s439 = sand.u32 %s238, 1
        %s440 = smul.addr %s439, 8
        %s441 = scalar_lea.vmem [#allocation14], %s440
        %p442 = pneg %p277
        %p443 = pneg %p274
        %s444 = sand.u32 %s37, 1
        %s445 = scalar_lea.sflag [#allocation15], %s444
        %s446 = sand.u32 %s264, 1
        %s447 = smul.addr %s446, 8
        %s448 = scalar_lea.vmem [#allocation16], %s447
        %v450 = vld [vmem:[%s372] sm:$0xff]
        %v451 = vpack.c.bf16 %v450, %v450
        %v452 = vld [vmem:[%s381] sm:$0xff]
        %v453 = vpack.c.bf16 %v452, %v452
        %v454 = vld [vmem:[#allocation7] sm:$0xf]
        %v455 = vld [vmem:[#allocation7 + $0x14] sm:$0xf]
        %v456 = vld [vmem:[#allocation7 + $0x28] sm:$0xf]
        %v457 = vld [vmem:[#allocation7 + $0x3c] sm:$0xf]
        %v458 = vld [vmem:[%s3] sm:$0x1]
        %v460 = vlaneseq
        %v461 = vshrl.u32 %v460, 7
        %v462 = vsub.s32 0, %v461
        %v463 = vrot.slane %v458, %v462
        %v469 = vunpack.c.l.b16 %v454
        %v470 = vunpack.c.l.b16 %v455
        %v471 = vunpack.c.l.b16 %v456
        %v472 = vunpack.c.l.b16 %v457
        %v473 = vpack.c.b16 %v470, %v469
        %v474 = vpack.c.b16 %v472, %v471
        %vm477 = vcmask 261120
        %v479 = vsel %vm477, %v451, 0
        %481 = vmatprep.subr.bf16.mxu0 0
        %482 = vmatpush1.bf16.msra.mxu0 %v473
        %483 = vmatprep.subr.bf16.mxu0 0
        %484 = vmatpush1.bf16.msra.mxu0 %v474
        %485 = vmatprep.subr.bf16.mxu0 0
        %486 = vmatpush1.bf16.msra.mxu0 0
        %487 = vmatprep.subr.bf16.mxu0 0
        %488 = vmatpush1.bf16.msra.mxu0 0
        %489 = vmatprep.subr.bf16.mxu0 0
        %490 = vmatpush1.bf16.msra.mxu0 0
        %491 = vmatprep.subr.bf16.mxu0 0
        %492 = vmatpush1.bf16.msra.mxu0 0
        %493 = vmatprep.subr.bf16.mxu0 0
        %494 = vmatpush1.bf16.msra.mxu0 0
        %495 = vmatprep.subr.bf16.mxu0 0
        %496 = vmatpush1.bf16.msra.mxu0 0
        %497 = vmatprep.subr.bf16.mxu0 0
        %498 = vmatpush1.bf16.msra.mxu0 0
        %499 = vmatprep.subr.bf16.mxu0 0
        %500 = vmatpush1.bf16.msra.mxu0 0
        %501 = vmatprep.subr.bf16.mxu0 0
        %502 = vmatpush1.bf16.msra.mxu0 0
        %503 = vmatprep.subr.bf16.mxu0 0
        %504 = vmatpush1.bf16.msra.mxu0 0
        %505 = vmatprep.subr.bf16.mxu0 0
        %506 = vmatpush1.bf16.msra.mxu0 0
        %507 = vmatprep.subr.bf16.mxu0 0
        %508 = vmatpush1.bf16.msra.mxu0 0
        %509 = vmatprep.subr.bf16.mxu0 0
        %510 = vmatpush1.bf16.msra.mxu0 0
        %511 = vmatprep.subr.bf16.mxu0 0
        %512 = vmatpush1.bf16.msra.mxu0 0
        %513 = vmatprep.mubr.bf16.mxu0 0
        %514 = vmatmul.mubr.bf16.gmra.mrb[0].mxu0 %v479
        %v515 = vpop.f32.mrb[0].mxu0
        %v516 = vadd.f32 %v463, %v515
        %v517 = vpop.f32.mrb[0].mxu0
        %v518 = vpop.f32.mrb[0].mxu0
        %v519 = vpop.f32.mrb[0].mxu0
        %520 = vdwg.mxu0
        %v521 = vmul.f32 %v516, 0.1
        %v522 = vmax.f32 %v516, %v521
        %v523 = vpack.c.bf16 %v522, %v522
        %v524 = vld [vmem:[#allocation8] sm:$0xf]
        %v525 = vld [vmem:[#allocation8 + $0x4] sm:$0xf]
        %v526 = vld [vmem:[#allocation8 + $0x8] sm:$0xf]
        %v527 = vld [vmem:[#allocation8 + $0xc] sm:$0xf]
        %v528 = vld [vmem:[#allocation8 + $0x10] sm:$0xf]
        %v529 = vld [vmem:[#allocation8 + $0x14] sm:$0xf]
        %v530 = vld [vmem:[#allocation8 + $0x18] sm:$0xf]
        %v531 = vld [vmem:[#allocation8 + $0x1c] sm:$0xf]
        %v532 = vld [vmem:[#allocation8 + $0x20] sm:$0xf]
        %v533 = vld [vmem:[#allocation8 + $0x24] sm:$0xf]
        %v534 = vld [vmem:[#allocation8 + $0x28] sm:$0xf]
        %v535 = vld [vmem:[#allocation8 + $0x2c] sm:$0xf]
        %v536 = vld [vmem:[#allocation8 + $0x30] sm:$0xf]
        %v537 = vld [vmem:[#allocation8 + $0x34] sm:$0xf]
        %v538 = vld [vmem:[#allocation8 + $0x38] sm:$0xf]
        %v539 = vld [vmem:[#allocation8 + $0x3c] sm:$0xf]
        %v556 = vunpack.c.l.b16 %v524
        %v557 = vunpack.c.l.b16 %v525
        %v558 = vunpack.c.l.b16 %v526
        %v559 = vunpack.c.l.b16 %v527
        %v560 = vunpack.c.l.b16 %v528
        %v561 = vunpack.c.l.b16 %v529
        %v562 = vunpack.c.l.b16 %v530
        %v563 = vunpack.c.l.b16 %v531
        %v564 = vunpack.c.l.b16 %v532
        %v565 = vunpack.c.l.b16 %v533
        %v566 = vunpack.c.l.b16 %v534
        %v567 = vunpack.c.l.b16 %v535
        %v568 = vunpack.c.l.b16 %v536
        %v569 = vunpack.c.l.b16 %v537
        %v570 = vunpack.c.l.b16 %v538
        %v571 = vunpack.c.l.b16 %v539
        %v572 = vpack.c.b16 %v557, %v556
        %v573 = vpack.c.b16 %v559, %v558
        %v574 = vpack.c.b16 %v561, %v560
        %v575 = vpack.c.b16 %v563, %v562
        %v576 = vpack.c.b16 %v565, %v564
        %v577 = vpack.c.b16 %v567, %v566
        %v578 = vpack.c.b16 %v569, %v568
        %v579 = vpack.c.b16 %v571, %v570
        %588 = vmatprep.subr.bf16.mxu0 0
        %589 = vmatpush1.bf16.msra.mxu0 %v572
        %590 = vmatprep.subr.bf16.mxu0 0
        %591 = vmatpush1.bf16.msra.mxu0 %v573
        %592 = vmatprep.subr.bf16.mxu0 0
        %593 = vmatpush1.bf16.msra.mxu0 %v574
        %594 = vmatprep.subr.bf16.mxu0 0
        %595 = vmatpush1.bf16.msra.mxu0 %v575
        %596 = vmatprep.subr.bf16.mxu0 0
        %597 = vmatpush1.bf16.msra.mxu0 %v576
        %598 = vmatprep.subr.bf16.mxu0 0
        %599 = vmatpush1.bf16.msra.mxu0 %v577
        %600 = vmatprep.subr.bf16.mxu0 0
        %601 = vmatpush1.bf16.msra.mxu0 %v578
        %602 = vmatprep.subr.bf16.mxu0 0
        %603 = vmatpush1.bf16.msra.mxu0 %v579
        %604 = vmatprep.subr.bf16.mxu0 0
        %605 = vmatpush1.bf16.msra.mxu0 0
        %606 = vmatprep.subr.bf16.mxu0 0
        %607 = vmatpush1.bf16.msra.mxu0 0
        %608 = vmatprep.subr.bf16.mxu0 0
        %609 = vmatpush1.bf16.msra.mxu0 0
        %610 = vmatprep.subr.bf16.mxu0 0
        %611 = vmatpush1.bf16.msra.mxu0 0
        %612 = vmatprep.subr.bf16.mxu0 0
        %613 = vmatpush1.bf16.msra.mxu0 0
        %614 = vmatprep.subr.bf16.mxu0 0
        %615 = vmatpush1.bf16.msra.mxu0 0
        %616 = vmatprep.subr.bf16.mxu0 0
        %617 = vmatpush1.bf16.msra.mxu0 0
        %618 = vmatprep.subr.bf16.mxu0 0
        %619 = vmatpush1.bf16.msra.mxu0 0
        %620 = vmatprep.mubr.bf16.mxu0 0
        %621 = vmatmul.mubr.bf16.gmra.mrb[0].mxu0 %v523
        %v622 = vpop.f32.mrb[0].mxu0
        %v623 = vadd.f32 0.0, %v622
        %v624 = vpop.f32.mrb[0].mxu0
        %v625 = vpop.f32.mrb[0].mxu0
        %v626 = vpop.f32.mrb[0].mxu0
        %627 = vdwg.mxu0
        %628 = vst [vmem:[%s420] sm:$0xff] %v623
        %v629 = vld [vmem:[#allocation7 + $0x4] sm:$0xf]
        %v630 = vld [vmem:[#allocation7 + $0x18] sm:$0xf]
        %v631 = vld [vmem:[#allocation7 + $0x2c] sm:$0xf]
        %v632 = vld [vmem:[#allocation7 + $0x40] sm:$0xf]
        %v633 = vld [vmem:[%s3 + $0x1] sm:$0x1]
        %v635 = vlaneseq
        %v636 = vshrl.u32 %v635, 7
        %v637 = vsub.s32 0, %v636
        %v638 = vrot.slane %v633, %v637
        %v644 = vunpack.c.l.b16 %v629
        %v645 = vunpack.c.l.b16 %v630
        %v646 = vunpack.c.l.b16 %v631
        %v647 = vunpack.c.l.b16 %v632
        %v648 = vpack.c.b16 %v645, %v644
        %v649 = vpack.c.b16 %v647, %v646
        %652 = vmatprep.subr.bf16.mxu0 0
        %653 = vmatpush1.bf16.msra.mxu0 %v648
        %654 = vmatprep.subr.bf16.mxu0 0
        %655 = vmatpush1.bf16.msra.mxu0 %v649
        %656 = vmatprep.subr.bf16.mxu0 0
        %657 = vmatpush1.bf16.msra.mxu0 0
        %658 = vmatprep.subr.bf16.mxu0 0
        %659 = vmatpush1.bf16.msra.mxu0 0
        %660 = vmatprep.subr.bf16.mxu0 0
        %661 = vmatpush1.bf16.msra.mxu0 0
        %662 = vmatprep.subr.bf16.mxu0 0
        %663 = vmatpush1.bf16.msra.mxu0 0
        %664 = vmatprep.subr.bf16.mxu0 0
        %665 = vmatpush1.bf16.msra.mxu0 0
        %666 = vmatprep.subr.bf16.mxu0 0
        %667 = vmatpush1.bf16.msra.mxu0 0
        %668 = vmatprep.subr.bf16.mxu0 0
        %669 = vmatpush1.bf16.msra.mxu0 0
        %670 = vmatprep.subr.bf16.mxu0 0
        %671 = vmatpush1.bf16.msra.mxu0 0
        %672 = vmatprep.subr.bf16.mxu0 0
        %673 = vmatpush1.bf16.msra.mxu0 0
        %674 = vmatprep.subr.bf16.mxu0 0
        %675 = vmatpush1.bf16.msra.mxu0 0
        %676 = vmatprep.subr.bf16.mxu0 0
        %677 = vmatpush1.bf16.msra.mxu0 0
        %678 = vmatprep.subr.bf16.mxu0 0
        %679 = vmatpush1.bf16.msra.mxu0 0
        %680 = vmatprep.subr.bf16.mxu0 0
        %681 = vmatpush1.bf16.msra.mxu0 0
        %682 = vmatprep.subr.bf16.mxu0 0
        %683 = vmatpush1.bf16.msra.mxu0 0
        %684 = vmatprep.mubr.bf16.mxu0 0
        %685 = vmatmul.mubr.bf16.gmra.mrb[0].mxu0 %v479
        %v686 = vpop.f32.mrb[0].mxu0
        %v687 = vadd.f32 %v638, %v686
        %v688 = vpop.f32.mrb[0].mxu0
        %v689 = vpop.f32.mrb[0].mxu0
        %v690 = vpop.f32.mrb[0].mxu0
        %691 = vdwg.mxu0
        %v692 = vmul.f32 %v687, 0.1
        %v693 = vmax.f32 %v687, %v692
        %v694 = vpack.c.bf16 %v693, %v693
        %v695 = vld [vmem:[#allocation8 + $0x40] sm:$0xf]
        %v696 = vld [vmem:[#allocation8 + $0x44] sm:$0xf]
        %v697 = vld [vmem:[#allocation8 + $0x48] sm:$0xf]
        %v698 = vld [vmem:[#allocation8 + $0x4c] sm:$0xf]
        %v699 = vld [vmem:[#allocation8 + $0x50] sm:$0xf]
        %v700 = vld [vmem:[#allocation8 + $0x54] sm:$0xf]
        %v701 = vld [vmem:[#allocation8 + $0x58] sm:$0xf]
        %v702 = vld [vmem:[#allocation8 + $0x5c] sm:$0xf]
        %v703 = vld [vmem:[#allocation8 + $0x60] sm:$0xf]
        %v704 = vld [vmem:[#allocation8 + $0x64] sm:$0xf]
        %v705 = vld [vmem:[#allocation8 + $0x68] sm:$0xf]
        %v706 = vld [vmem:[#allocation8 + $0x6c] sm:$0xf]
        %v707 = vld [vmem:[#allocation8 + $0x70] sm:$0xf]
        %v708 = vld [vmem:[#allocation8 + $0x74] sm:$0xf]
        %v709 = vld [vmem:[#allocation8 + $0x78] sm:$0xf]
        %v710 = vld [vmem:[#allocation8 + $0x7c] sm:$0xf]
        %v727 = vunpack.c.l.b16 %v695
        %v728 = vunpack.c.l.b16 %v696
        %v729 = vunpack.c.l.b16 %v697
        %v730 = vunpack.c.l.b16 %v698
        %v731 = vunpack.c.l.b16 %v699
        %v732 = vunpack.c.l.b16 %v700
        %v733 = vunpack.c.l.b16 %v701
        %v734 = vunpack.c.l.b16 %v702
        %v735 = vunpack.c.l.b16 %v703
        %v736 = vunpack.c.l.b16 %v704
        %v737 = vunpack.c.l.b16 %v705
        %v738 = vunpack.c.l.b16 %v706
        %v739 = vunpack.c.l.b16 %v707
        %v740 = vunpack.c.l.b16 %v708
        %v741 = vunpack.c.l.b16 %v709
        %v742 = vunpack.c.l.b16 %v710
        %v743 = vpack.c.b16 %v728, %v727
        %v744 = vpack.c.b16 %v730, %v729
        %v745 = vpack.c.b16 %v732, %v731
        %v746 = vpack.c.b16 %v734, %v733
        %v747 = vpack.c.b16 %v736, %v735
        %v748 = vpack.c.b16 %v738, %v737
        %v749 = vpack.c.b16 %v740, %v739
        %v750 = vpack.c.b16 %v742, %v741
        %759 = vmatprep.subr.bf16.mxu0 0
        %760 = vmatpush1.bf16.msra.mxu0 %v743
        %761 = vmatprep.subr.bf16.mxu0 0
        %762 = vmatpush1.bf16.msra.mxu0 %v744
        %763 = vmatprep.subr.bf16.mxu0 0
        %764 = vmatpush1.bf16.msra.mxu0 %v745
        %765 = vmatprep.subr.bf16.mxu0 0
        %766 = vmatpush1.bf16.msra.mxu0 %v746
        %767 = vmatprep.subr.bf16.mxu0 0
        %768 = vmatpush1.bf16.msra.mxu0 %v747
        %769 = vmatprep.subr.bf16.mxu0 0
        %770 = vmatpush1.bf16.msra.mxu0 %v748
        %771 = vmatprep.subr.bf16.mxu0 0
        %772 = vmatpush1.bf16.msra.mxu0 %v749
        %773 = vmatprep.subr.bf16.mxu0 0
        %774 = vmatpush1.bf16.msra.mxu0 %v750
        %775 = vmatprep.subr.bf16.mxu0 0
        %776 = vmatpush1.bf16.msra.mxu0 0
        %777 = vmatprep.subr.bf16.mxu0 0
        %778 = vmatpush1.bf16.msra.mxu0 0
        %779 = vmatprep.subr.bf16.mxu0 0
        %780 = vmatpush1.bf16.msra.mxu0 0
        %781 = vmatprep.subr.bf16.mxu0 0
        %782 = vmatpush1.bf16.msra.mxu0 0
        %783 = vmatprep.subr.bf16.mxu0 0
        %784 = vmatpush1.bf16.msra.mxu0 0
        %785 = vmatprep.subr.bf16.mxu0 0
        %786 = vmatpush1.bf16.msra.mxu0 0
        %787 = vmatprep.subr.bf16.mxu0 0
        %788 = vmatpush1.bf16.msra.mxu0 0
        %789 = vmatprep.subr.bf16.mxu0 0
        %790 = vmatpush1.bf16.msra.mxu0 0
        %791 = vmatprep.mubr.bf16.mxu0 0
        %792 = vmatmul.mubr.bf16.gmra.mrb[0].mxu0 %v694
        %v793 = vpop.f32.mrb[0].mxu0
        %v794 = vadd.f32 0.0, %v793
        %v795 = vpop.f32.mrb[0].mxu0
        %v796 = vpop.f32.mrb[0].mxu0
        %v797 = vpop.f32.mrb[0].mxu0
        %798 = vdwg.mxu0
        %799 = vst [vmem:[%s427] sm:$0xff] %v794
        %v800 = vld [vmem:[#allocation7 + $0x8] sm:$0xf]
        %v801 = vld [vmem:[#allocation7 + $0x1c] sm:$0xf]
        %v802 = vld [vmem:[#allocation7 + $0x30] sm:$0xf]
        %v803 = vld [vmem:[#allocation7 + $0x44] sm:$0xf]
        %v804 = vld [vmem:[%s3 + $0x2] sm:$0x1]
        %v806 = vlaneseq
        %v807 = vshrl.u32 %v806, 7
        %v808 = vsub.s32 0, %v807
        %v809 = vrot.slane %v804, %v808
        %v815 = vunpack.c.l.b16 %v800
        %v816 = vunpack.c.l.b16 %v801
        %v817 = vunpack.c.l.b16 %v802
        %v818 = vunpack.c.l.b16 %v803
        %v819 = vpack.c.b16 %v816, %v815
        %v820 = vpack.c.b16 %v818, %v817
        %823 = vmatprep.subr.bf16.mxu0 0
        %824 = vmatpush1.bf16.msra.mxu0 %v819
        %825 = vmatprep.subr.bf16.mxu0 0
        %826 = vmatpush1.bf16.msra.mxu0 %v820
        %827 = vmatprep.subr.bf16.mxu0 0
        %828 = vmatpush1.bf16.msra.mxu0 0
        %829 = vmatprep.subr.bf16.mxu0 0
        %830 = vmatpush1.bf16.msra.mxu0 0
        %831 = vmatprep.subr.bf16.mxu0 0
        %832 = vmatpush1.bf16.msra.mxu0 0
        %833 = vmatprep.subr.bf16.mxu0 0
        %834 = vmatpush1.bf16.msra.mxu0 0
        %835 = vmatprep.subr.bf16.mxu0 0
        %836 = vmatpush1.bf16.msra.mxu0 0
        %837 = vmatprep.subr.bf16.mxu0 0
        %838 = vmatpush1.bf16.msra.mxu0 0
        %839 = vmatprep.subr.bf16.mxu0 0
        %840 = vmatpush1.bf16.msra.mxu0 0
        %841 = vmatprep.subr.bf16.mxu0 0
        %842 = vmatpush1.bf16.msra.mxu0 0
        %843 = vmatprep.subr.bf16.mxu0 0
        %844 = vmatpush1.bf16.msra.mxu0 0
        %845 = vmatprep.subr.bf16.mxu0 0
        %846 = vmatpush1.bf16.msra.mxu0 0
        %847 = vmatprep.subr.bf16.mxu0 0
        %848 = vmatpush1.bf16.msra.mxu0 0
        %849 = vmatprep.subr.bf16.mxu0 0
        %850 = vmatpush1.bf16.msra.mxu0 0
        %851 = vmatprep.subr.bf16.mxu0 0
        %852 = vmatpush1.bf16.msra.mxu0 0
        %853 = vmatprep.subr.bf16.mxu0 0
        %854 = vmatpush1.bf16.msra.mxu0 0
        %855 = vmatprep.mubr.bf16.mxu0 0
        %856 = vmatmul.mubr.bf16.gmra.mrb[0].mxu0 %v479
        %v857 = vpop.f32.mrb[0].mxu0
        %v858 = vadd.f32 %v809, %v857
        %v859 = vpop.f32.mrb[0].mxu0
        %v860 = vpop.f32.mrb[0].mxu0
        %v861 = vpop.f32.mrb[0].mxu0
        %862 = vdwg.mxu0
        %v863 = vmul.f32 %v858, 0.1
        %v864 = vmax.f32 %v858, %v863
        %v865 = vpack.c.bf16 %v864, %v864
        %v866 = vld [vmem:[#allocation8 + $0x80] sm:$0xf]
        %v867 = vld [vmem:[#allocation8 + $0x84] sm:$0xf]
        %v868 = vld [vmem:[#allocation8 + $0x88] sm:$0xf]
        %v869 = vld [vmem:[#allocation8 + $0x8c] sm:$0xf]
        %v870 = vld [vmem:[#allocation8 + $0x90] sm:$0xf]
        %v871 = vld [vmem:[#allocation8 + $0x94] sm:$0xf]
        %v872 = vld [vmem:[#allocation8 + $0x98] sm:$0xf]
        %v873 = vld [vmem:[#allocation8 + $0x9c] sm:$0xf]
        %v874 = vld [vmem:[#allocation8 + $0xa0] sm:$0xf]
        %v875 = vld [vmem:[#allocation8 + $0xa4] sm:$0xf]
        %v876 = vld [vmem:[#allocation8 + $0xa8] sm:$0xf]
        %v877 = vld [vmem:[#allocation8 + $0xac] sm:$0xf]
        %v878 = vld [vmem:[#allocation8 + $0xb0] sm:$0xf]
        %v879 = vld [vmem:[#allocation8 + $0xb4] sm:$0xf]
        %v880 = vld [vmem:[#allocation8 + $0xb8] sm:$0xf]
        %v881 = vld [vmem:[#allocation8 + $0xbc] sm:$0xf]
        %v898 = vunpack.c.l.b16 %v866
        %v899 = vunpack.c.l.b16 %v867
        %v900 = vunpack.c.l.b16 %v868
        %v901 = vunpack.c.l.b16 %v869
        %v902 = vunpack.c.l.b16 %v870
        %v903 = vunpack.c.l.b16 %v871
        %v904 = vunpack.c.l.b16 %v872
        %v905 = vunpack.c.l.b16 %v873
        %v906 = vunpack.c.l.b16 %v874
        %v907 = vunpack.c.l.b16 %v875
        %v908 = vunpack.c.l.b16 %v876
        %v909 = vunpack.c.l.b16 %v877
        %v910 = vunpack.c.l.b16 %v878
        %v911 = vunpack.c.l.b16 %v879
        %v912 = vunpack.c.l.b16 %v880
        %v913 = vunpack.c.l.b16 %v881
        %v914 = vpack.c.b16 %v899, %v898
        %v915 = vpack.c.b16 %v901, %v900
        %v916 = vpack.c.b16 %v903, %v902
        %v917 = vpack.c.b16 %v905, %v904
        %v918 = vpack.c.b16 %v907, %v906
        %v919 = vpack.c.b16 %v909, %v908
        %v920 = vpack.c.b16 %v911, %v910
        %v921 = vpack.c.b16 %v913, %v912
        %930 = vmatprep.subr.bf16.mxu0 0
        %931 = vmatpush1.bf16.msra.mxu0 %v914
        %932 = vmatprep.subr.bf16.mxu0 0
        %933 = vmatpush1.bf16.msra.mxu0 %v915
        %934 = vmatprep.subr.bf16.mxu0 0
        %935 = vmatpush1.bf16.msra.mxu0 %v916
        %936 = vmatprep.subr.bf16.mxu0 0
        %937 = vmatpush1.bf16.msra.mxu0 %v917
        %938 = vmatprep.subr.bf16.mxu0 0
        %939 = vmatpush1.bf16.msra.mxu0 %v918
        %940 = vmatprep.subr.bf16.mxu0 0
        %941 = vmatpush1.bf16.msra.mxu0 %v919
        %942 = vmatprep.subr.bf16.mxu0 0
        %943 = vmatpush1.bf16.msra.mxu0 %v920
        %944 = vmatprep.subr.bf16.mxu0 0
        %945 = vmatpush1.bf16.msra.mxu0 %v921
        %946 = vmatprep.subr.bf16.mxu0 0
        %947 = vmatpush1.bf16.msra.mxu0 0
        %948 = vmatprep.subr.bf16.mxu0 0
        %949 = vmatpush1.bf16.msra.mxu0 0
        %950 = vmatprep.subr.bf16.mxu0 0
        %951 = vmatpush1.bf16.msra.mxu0 0
        %952 = vmatprep.subr.bf16.mxu0 0
        %953 = vmatpush1.bf16.msra.mxu0 0
        %954 = vmatprep.subr.bf16.mxu0 0
        %955 = vmatpush1.bf16.msra.mxu0 0
        %956 = vmatprep.subr.bf16.mxu0 0
        %957 = vmatpush1.bf16.msra.mxu0 0
        %958 = vmatprep.subr.bf16.mxu0 0
        %959 = vmatpush1.bf16.msra.mxu0 0
        %960 = vmatprep.subr.bf16.mxu0 0
        %961 = vmatpush1.bf16.msra.mxu0 0
        %962 = vmatprep.mubr.bf16.mxu0 0
        %963 = vmatmul.mubr.bf16.gmra.mrb[0].mxu0 %v865
        %v964 = vpop.f32.mrb[0].mxu0
        %v965 = vadd.f32 0.0, %v964
        %v966 = vpop.f32.mrb[0].mxu0
        %v967 = vpop.f32.mrb[0].mxu0
        %v968 = vpop.f32.mrb[0].mxu0
        %969 = vdwg.mxu0
        %970 = vst [vmem:[%s434] sm:$0xff] %v965
        %v971 = vld [vmem:[#allocation7 + $0xc] sm:$0xf]
        %v972 = vld [vmem:[#allocation7 + $0x20] sm:$0xf]
        %v973 = vld [vmem:[#allocation7 + $0x34] sm:$0xf]
        %v974 = vld [vmem:[#allocation7 + $0x48] sm:$0xf]
        %v975 = vld [vmem:[%s3 + $0x3] sm:$0x1]
        %v977 = vlaneseq
        %v978 = vshrl.u32 %v977, 7
        %v979 = vsub.s32 0, %v978
        %v980 = vrot.slane %v975, %v979
        %v986 = vunpack.c.l.b16 %v971
        %v987 = vunpack.c.l.b16 %v972
        %v988 = vunpack.c.l.b16 %v973
        %v989 = vunpack.c.l.b16 %v974
        %v990 = vpack.c.b16 %v987, %v986
        %v991 = vpack.c.b16 %v989, %v988
        %v995 = vsel %vm477, %v453, 0
        %997 = vmatprep.subr.bf16.mxu0 0
        %998 = vmatpush1.bf16.msra.mxu0 %v990
        %999 = vmatprep.subr.bf16.mxu0 0
        %1000 = vmatpush1.bf16.msra.mxu0 %v991
        %1001 = vmatprep.subr.bf16.mxu0 0
        %1002 = vmatpush1.bf16.msra.mxu0 0
        %1003 = vmatprep.subr.bf16.mxu0 0
        %1004 = vmatpush1.bf16.msra.mxu0 0
        %1005 = vmatprep.subr.bf16.mxu0 0
        %1006 = vmatpush1.bf16.msra.mxu0 0
        %1007 = vmatprep.subr.bf16.mxu0 0
        %1008 = vmatpush1.bf16.msra.mxu0 0
        %1009 = vmatprep.subr.bf16.mxu0 0
        %1010 = vmatpush1.bf16.msra.mxu0 0
        %1011 = vmatprep.subr.bf16.mxu0 0
        %1012 = vmatpush1.bf16.msra.mxu0 0
        %1013 = vmatprep.subr.bf16.mxu0 0
        %1014 = vmatpush1.bf16.msra.mxu0 0
        %1015 = vmatprep.subr.bf16.mxu0 0
        %1016 = vmatpush1.bf16.msra.mxu0 0
        %1017 = vmatprep.subr.bf16.mxu0 0
        %1018 = vmatpush1.bf16.msra.mxu0 0
        %1019 = vmatprep.subr.bf16.mxu0 0
        %1020 = vmatpush1.bf16.msra.mxu0 0
        %1021 = vmatprep.subr.bf16.mxu0 0
        %1022 = vmatpush1.bf16.msra.mxu0 0
        %1023 = vmatprep.subr.bf16.mxu0 0
        %1024 = vmatpush1.bf16.msra.mxu0 0
        %1025 = vmatprep.subr.bf16.mxu0 0
        %1026 = vmatpush1.bf16.msra.mxu0 0
        %1027 = vmatprep.subr.bf16.mxu0 0
        %1028 = vmatpush1.bf16.msra.mxu0 0
        %1029 = vmatprep.mubr.bf16.mxu0 0
        %1030 = vmatmul.mubr.bf16.gmra.mrb[0].mxu0 %v995
        %v1031 = vpop.f32.mrb[0].mxu0
        %v1032 = vadd.f32 %v980, %v1031
        %v1033 = vpop.f32.mrb[0].mxu0
        %v1034 = vpop.f32.mrb[0].mxu0
        %v1035 = vpop.f32.mrb[0].mxu0
        %1036 = vdwg.mxu0
        %v1037 = vmul.f32 %v1032, 0.1
        %v1038 = vmax.f32 %v1032, %v1037
        %v1039 = vpack.c.bf16 %v1038, %v1038
        %v1040 = vld [vmem:[#allocation8 + $0xc0] sm:$0xf]
        %v1041 = vld [vmem:[#allocation8 + $0xc4] sm:$0xf]
        %v1042 = vld [vmem:[#allocation8 + $0xc8] sm:$0xf]
        %v1043 = vld [vmem:[#allocation8 + $0xcc] sm:$0xf]
        %v1044 = vld [vmem:[#allocation8 + $0xd0] sm:$0xf]
        %v1045 = vld [vmem:[#allocation8 + $0xd4] sm:$0xf]
        %v1046 = vld [vmem:[#allocation8 + $0xd8] sm:$0xf]
        %v1047 = vld [vmem:[#allocation8 + $0xdc] sm:$0xf]
        %v1048 = vld [vmem:[#allocation8 + $0xe0] sm:$0xf]
        %v1049 = vld [vmem:[#allocation8 + $0xe4] sm:$0xf]
        %v1050 = vld [vmem:[#allocation8 + $0xe8] sm:$0xf]
        %v1051 = vld [vmem:[#allocation8 + $0xec] sm:$0xf]
        %v1052 = vld [vmem:[#allocation8 + $0xf0] sm:$0xf]
        %v1053 = vld [vmem:[#allocation8 + $0xf4] sm:$0xf]
        %v1054 = vld [vmem:[#allocation8 + $0xf8] sm:$0xf]
        %v1055 = vld [vmem:[#allocation8 + $0xfc] sm:$0xf]
        %v1072 = vunpack.c.l.b16 %v1040
        %v1073 = vunpack.c.l.b16 %v1041
        %v1074 = vunpack.c.l.b16 %v1042
        %v1075 = vunpack.c.l.b16 %v1043
        %v1076 = vunpack.c.l.b16 %v1044
        %v1077 = vunpack.c.l.b16 %v1045
        %v1078 = vunpack.c.l.b16 %v1046
        %v1079 = vunpack.c.l.b16 %v1047
        %v1080 = vunpack.c.l.b16 %v1048
        %v1081 = vunpack.c.l.b16 %v1049
        %v1082 = vunpack.c.l.b16 %v1050
        %v1083 = vunpack.c.l.b16 %v1051
        %v1084 = vunpack.c.l.b16 %v1052
        %v1085 = vunpack.c.l.b16 %v1053
        %v1086 = vunpack.c.l.b16 %v1054
        %v1087 = vunpack.c.l.b16 %v1055
        %v1088 = vpack.c.b16 %v1073, %v1072
        %v1089 = vpack.c.b16 %v1075, %v1074
        %v1090 = vpack.c.b16 %v1077, %v1076
        %v1091 = vpack.c.b16 %v1079, %v1078
        %v1092 = vpack.c.b16 %v1081, %v1080
        %v1093 = vpack.c.b16 %v1083, %v1082
        %v1094 = vpack.c.b16 %v1085, %v1084
        %v1095 = vpack.c.b16 %v1087, %v1086
        %1104 = vmatprep.subr.bf16.mxu0 0
        %1105 = vmatpush1.bf16.msra.mxu0 %v1088
        %1106 = vmatprep.subr.bf16.mxu0 0
        %1107 = vmatpush1.bf16.msra.mxu0 %v1089
        %1108 = vmatprep.subr.bf16.mxu0 0
        %1109 = vmatpush1.bf16.msra.mxu0 %v1090
        %1110 = vmatprep.subr.bf16.mxu0 0
        %1111 = vmatpush1.bf16.msra.mxu0 %v1091
        %1112 = vmatprep.subr.bf16.mxu0 0
        %1113 = vmatpush1.bf16.msra.mxu0 %v1092
        %1114 = vmatprep.subr.bf16.mxu0 0
        %1115 = vmatpush1.bf16.msra.mxu0 %v1093
        %1116 = vmatprep.subr.bf16.mxu0 0
        %1117 = vmatpush1.bf16.msra.mxu0 %v1094
        %1118 = vmatprep.subr.bf16.mxu0 0
        %1119 = vmatpush1.bf16.msra.mxu0 %v1095
        %1120 = vmatprep.subr.bf16.mxu0 0
        %1121 = vmatpush1.bf16.msra.mxu0 0
        %1122 = vmatprep.subr.bf16.mxu0 0
        %1123 = vmatpush1.bf16.msra.mxu0 0
        %1124 = vmatprep.subr.bf16.mxu0 0
        %1125 = vmatpush1.bf16.msra.mxu0 0
        %1126 = vmatprep.subr.bf16.mxu0 0
        %1127 = vmatpush1.bf16.msra.mxu0 0
        %1128 = vmatprep.subr.bf16.mxu0 0
        %1129 = vmatpush1.bf16.msra.mxu0 0
        %1130 = vmatprep.subr.bf16.mxu0 0
        %1131 = vmatpush1.bf16.msra.mxu0 0
        %1132 = vmatprep.subr.bf16.mxu0 0
        %1133 = vmatpush1.bf16.msra.mxu0 0
        %1134 = vmatprep.subr.bf16.mxu0 0
        %1135 = vmatpush1.bf16.msra.mxu0 0
        %1136 = vmatprep.mubr.bf16.mxu0 0
        %1137 = vmatmul.mubr.bf16.gmra.mrb[0].mxu0 %v1039
        %v1138 = vpop.f32.mrb[0].mxu0
        %v1139 = vadd.f32 0.0, %v1138
        %v1140 = vpop.f32.mrb[0].mxu0
        %v1141 = vpop.f32.mrb[0].mxu0
        %v1142 = vpop.f32.mrb[0].mxu0
        %1143 = vdwg.mxu0
        %1144 = vst [vmem:[%s441] sm:$0xff] %v1139
        %v1145 = vld [vmem:[#allocation7 + $0x10] sm:$0xf]
        %v1146 = vld [vmem:[#allocation7 + $0x24] sm:$0xf]
        %v1147 = vld [vmem:[#allocation7 + $0x38] sm:$0xf]
        %v1148 = vld [vmem:[#allocation7 + $0x4c] sm:$0xf]
        %v1149 = vld [vmem:[%s3 + $0x4] sm:$0x1]
        %v1151 = vlaneseq
        %v1152 = vshrl.u32 %v1151, 7
        %v1153 = vsub.s32 0, %v1152
        %v1154 = vrot.slane %v1149, %v1153
        %v1160 = vunpack.c.l.b16 %v1145
        %v1161 = vunpack.c.l.b16 %v1146
        %v1162 = vunpack.c.l.b16 %v1147
        %v1163 = vunpack.c.l.b16 %v1148
        %v1164 = vpack.c.b16 %v1161, %v1160
        %v1165 = vpack.c.b16 %v1163, %v1162
        %1168 = vmatprep.subr.bf16.mxu0 0
        %1169 = vmatpush1.bf16.msra.mxu0 %v1164
        %1170 = vmatprep.subr.bf16.mxu0 0
        %1171 = vmatpush1.bf16.msra.mxu0 %v1165
        %1172 = vmatprep.subr.bf16.mxu0 0
        %1173 = vmatpush1.bf16.msra.mxu0 0
        %1174 = vmatprep.subr.bf16.mxu0 0
        %1175 = vmatpush1.bf16.msra.mxu0 0
        %1176 = vmatprep.subr.bf16.mxu0 0
        %1177 = vmatpush1.bf16.msra.mxu0 0
        %1178 = vmatprep.subr.bf16.mxu0 0
        %1179 = vmatpush1.bf16.msra.mxu0 0
        %1180 = vmatprep.subr.bf16.mxu0 0
        %1181 = vmatpush1.bf16.msra.mxu0 0
        %1182 = vmatprep.subr.bf16.mxu0 0
        %1183 = vmatpush1.bf16.msra.mxu0 0
        %1184 = vmatprep.subr.bf16.mxu0 0
        %1185 = vmatpush1.bf16.msra.mxu0 0
        %1186 = vmatprep.subr.bf16.mxu0 0
        %1187 = vmatpush1.bf16.msra.mxu0 0
        %1188 = vmatprep.subr.bf16.mxu0 0
        %1189 = vmatpush1.bf16.msra.mxu0 0
        %1190 = vmatprep.subr.bf16.mxu0 0
        %1191 = vmatpush1.bf16.msra.mxu0 0
        %1192 = vmatprep.subr.bf16.mxu0 0
        %1193 = vmatpush1.bf16.msra.mxu0 0
        %1194 = vmatprep.subr.bf16.mxu0 0
        %1195 = vmatpush1.bf16.msra.mxu0 0
        %1196 = vmatprep.subr.bf16.mxu0 0
        %1197 = vmatpush1.bf16.msra.mxu0 0
        %1198 = vmatprep.subr.bf16.mxu0 0
        %1199 = vmatpush1.bf16.msra.mxu0 0
        %1200 = vmatprep.mubr.bf16.mxu0 0
        %1201 = vmatmul.mubr.bf16.gmra.mrb[0].mxu0 %v995
        %v1202 = vpop.f32.mrb[0].mxu0
        %v1203 = vadd.f32 %v1154, %v1202
        %v1204 = vpop.f32.mrb[0].mxu0
        %v1205 = vpop.f32.mrb[0].mxu0
        %v1206 = vpop.f32.mrb[0].mxu0
        %1207 = vdwg.mxu0
        %v1208 = vmul.f32 %v1203, 0.1
        %v1209 = vmax.f32 %v1203, %v1208
        %v1210 = vpack.c.bf16 %v1209, %v1209
        %v1211 = vld [vmem:[#allocation8 + $0x100] sm:$0xf]
        %v1212 = vld [vmem:[#allocation8 + $0x104] sm:$0xf]
        %v1213 = vld [vmem:[#allocation8 + $0x108] sm:$0xf]
        %v1214 = vld [vmem:[#allocation8 + $0x10c] sm:$0xf]
        %v1215 = vld [vmem:[#allocation8 + $0x110] sm:$0xf]
        %v1216 = vld [vmem:[#allocation8 + $0x114] sm:$0xf]
        %v1217 = vld [vmem:[#allocation8 + $0x118] sm:$0xf]
        %v1218 = vld [vmem:[#allocation8 + $0x11c] sm:$0xf]
        %v1219 = vld [vmem:[#allocation8 + $0x120] sm:$0xf]
        %v1220 = vld [vmem:[#allocation8 + $0x124] sm:$0xf]
        %v1221 = vld [vmem:[#allocation8 + $0x128] sm:$0xf]
        %v1222 = vld [vmem:[#allocation8 + $0x12c] sm:$0xf]
        %v1223 = vld [vmem:[#allocation8 + $0x130] sm:$0xf]
        %v1224 = vld [vmem:[#allocation8 + $0x134] sm:$0xf]
        %v1225 = vld [vmem:[#allocation8 + $0x138] sm:$0xf]
        %v1226 = vld [vmem:[#allocation8 + $0x13c] sm:$0xf]
        %v1243 = vunpack.c.l.b16 %v1211
        %v1244 = vunpack.c.l.b16 %v1212
        %v1245 = vunpack.c.l.b16 %v1213
        %v1246 = vunpack.c.l.b16 %v1214
        %v1247 = vunpack.c.l.b16 %v1215
        %v1248 = vunpack.c.l.b16 %v1216
        %v1249 = vunpack.c.l.b16 %v1217
        %v1250 = vunpack.c.l.b16 %v1218
        %v1251 = vunpack.c.l.b16 %v1219
        %v1252 = vunpack.c.l.b16 %v1220
        %v1253 = vunpack.c.l.b16 %v1221
        %v1254 = vunpack.c.l.b16 %v1222
        %v1255 = vunpack.c.l.b16 %v1223
        %v1256 = vunpack.c.l.b16 %v1224
        %v1257 = vunpack.c.l.b16 %v1225
        %v1258 = vunpack.c.l.b16 %v1226
        %v1259 = vpack.c.b16 %v1244, %v1243
        %v1260 = vpack.c.b16 %v1246, %v1245
        %v1261 = vpack.c.b16 %v1248, %v1247
        %v1262 = vpack.c.b16 %v1250, %v1249
        %v1263 = vpack.c.b16 %v1252, %v1251
        %v1264 = vpack.c.b16 %v1254, %v1253
        %v1265 = vpack.c.b16 %v1256, %v1255
        %v1266 = vpack.c.b16 %v1258, %v1257
        %1275 = vmatprep.subr.bf16.mxu0 0
        %1276 = vmatpush1.bf16.msra.mxu0 %v1259
        %1277 = vmatprep.subr.bf16.mxu0 0
        %1278 = vmatpush1.bf16.msra.mxu0 %v1260
        %1279 = vmatprep.subr.bf16.mxu0 0
        %1280 = vmatpush1.bf16.msra.mxu0 %v1261
        %1281 = vmatprep.subr.bf16.mxu0 0
        %1282 = vmatpush1.bf16.msra.mxu0 %v1262
        %1283 = vmatprep.subr.bf16.mxu0 0
        %1284 = vmatpush1.bf16.msra.mxu0 %v1263
        %1285 = vmatprep.subr.bf16.mxu0 0
        %1286 = vmatpush1.bf16.msra.mxu0 %v1264
        %1287 = vmatprep.subr.bf16.mxu0 0
        %1288 = vmatpush1.bf16.msra.mxu0 %v1265
        %1289 = vmatprep.subr.bf16.mxu0 0
        %1290 = vmatpush1.bf16.msra.mxu0 %v1266
        %1291 = vmatprep.subr.bf16.mxu0 0
        %1292 = vmatpush1.bf16.msra.mxu0 0
        %1293 = vmatprep.subr.bf16.mxu0 0
        %1294 = vmatpush1.bf16.msra.mxu0 0
        %1295 = vmatprep.subr.bf16.mxu0 0
        %1296 = vmatpush1.bf16.msra.mxu0 0
        %1297 = vmatprep.subr.bf16.mxu0 0
        %1298 = vmatpush1.bf16.msra.mxu0 0
        %1299 = vmatprep.subr.bf16.mxu0 0
        %1300 = vmatpush1.bf16.msra.mxu0 0
        %1301 = vmatprep.subr.bf16.mxu0 0
        %1302 = vmatpush1.bf16.msra.mxu0 0
        %1303 = vmatprep.subr.bf16.mxu0 0
        %1304 = vmatpush1.bf16.msra.mxu0 0
        %1305 = vmatprep.subr.bf16.mxu0 0
        %1306 = vmatpush1.bf16.msra.mxu0 0
        %1307 = vmatprep.mubr.bf16.mxu0 0
        %1308 = vmatmul.mubr.bf16.gmra.mrb[0].mxu0 %v1210
        %v1309 = vpop.f32.mrb[0].mxu0
        %v1310 = vadd.f32 0.0, %v1309
        %v1311 = vpop.f32.mrb[0].mxu0
        %v1312 = vpop.f32.mrb[0].mxu0
        %v1313 = vpop.f32.mrb[0].mxu0
        %1314 = vdwg.mxu0
        %1315 = vst [vmem:[%s448] sm:$0xff] %v1310
        %s1316 = sand.u32 %s160, 1
        %s1317 = scalar_lea.sflag [#allocation4], %s1316
        %s1318 = sand.u32 %s160, 1
        %s1319 = smul.addr %s1318, 8
        %s1320 = scalar_lea.vmem [#allocation10], %s1319
        %s1321 = sand.u32 %s37, 1
        %s1322 = scalar_lea.sflag [#allocation12], %s1321
        %s1323 = sand.u32 %s186, 1
        %s1324 = smul.addr %s1323, 8
        %s1325 = scalar_lea.vmem [#allocation11], %s1324
        %s1326 = sand.u32 %s37, 1
        %s1327 = scalar_lea.sflag [#allocation12], %s1326
        %s1328 = sand.u32 %s212, 1
        %s1329 = smul.addr %s1328, 8
        %s1330 = scalar_lea.vmem [#allocation13], %s1329
        %s1331 = sand.u32 %s37, 1
        %s1332 = scalar_lea.sflag [#allocation15], %s1331
        %s1333 = sand.u32 %s238, 1
        %s1334 = smul.addr %s1333, 8
        %s1335 = scalar_lea.vmem [#allocation14], %s1334
        %s1336 = sand.u32 %s37, 1
        %s1337 = scalar_lea.sflag [#allocation15], %s1336
        %s1338 = sand.u32 %s264, 1
        %s1339 = smul.addr %s1338, 8
        %s1340 = scalar_lea.vmem [#allocation16], %s1339
        // Predicated region
        $region57: #{tpu_custom_call.1} parent=39 // pred_check
          %p1341 = pneg %p170
        $region58: #{tpu_custom_call.1} parent=39 // pred_check_branch
          %1343 = sbr.rel (%p1341) target = $region60
        $region59: #{tpu_custom_call.1} parent=39 // pred_region
          %s1345 = ssub.s32 128, 128
          %1346 = vsyncadd %s1317, %s1345
          %s1347 = smul.addr %s37, 128
          %s1348 = scalar_lea.hbm %s5, %s1347
          %s1350 = sshll.u32 %s1320, 4
          %s1351 = int_to_ptr.vmem [resolvable:$true] %s1350
          %1353 = dma.vmem_to_hbm [thread:$0]  %s1351, 128, %s1348, %s1317
        $region60: #{tpu_custom_call.1} parent=39 // pred_fallthru
          _
        // Predicated region
        $region61: #{tpu_custom_call.1} parent=39 // pred_check
          %p1354 = pneg %p196
        $region62: #{tpu_custom_call.1} parent=39 // pred_check_branch
          %1356 = sbr.rel (%p1354) target = $region64
        $region63: #{tpu_custom_call.1} parent=39 // pred_region
          %s1358 = ssub.s32 128, 128
          %1359 = vsyncadd %s1322, %s1358
          %s1360 = smul.addr %s37, 128
          %s1361 = scalar_lea.hbm %s6, %s1360
          %s1363 = sshll.u32 %s1325, 4
          %s1364 = int_to_ptr.vmem [resolvable:$true] %s1363
          %1366 = dma.vmem_to_hbm [thread:$0]  %s1364, 128, %s1361, %s1322
        $region64: #{tpu_custom_call.1} parent=39 // pred_fallthru
          _
        // Predicated region
        $region65: #{tpu_custom_call.1} parent=39 // pred_check
          %p1367 = pneg %p222
        $region66: #{tpu_custom_call.1} parent=39 // pred_check_branch
          %1369 = sbr.rel (%p1367) target = $region68
        $region67: #{tpu_custom_call.1} parent=39 // pred_region
          %s1371 = ssub.s32 128, 128
          %1372 = vsyncadd %s1327, %s1371
          %s1373 = smul.addr %s37, 128
          %s1374 = scalar_lea.hbm %s7, %s1373
          %s1376 = sshll.u32 %s1330, 4
          %s1377 = int_to_ptr.vmem [resolvable:$true] %s1376
          %1379 = dma.vmem_to_hbm [thread:$0]  %s1377, 128, %s1374, %s1327
        $region68: #{tpu_custom_call.1} parent=39 // pred_fallthru
          _
        // Predicated region
        $region69: #{tpu_custom_call.1} parent=39 // pred_check
          %p1380 = pneg %p248
        $region70: #{tpu_custom_call.1} parent=39 // pred_check_branch
          %1382 = sbr.rel (%p1380) target = $region72
        $region71: #{tpu_custom_call.1} parent=39 // pred_region
          %s1384 = ssub.s32 128, 128
          %1385 = vsyncadd %s1332, %s1384
          %s1386 = smul.addr %s37, 128
          %s1387 = scalar_lea.hbm %s8, %s1386
          %s1389 = sshll.u32 %s1335, 4
          %s1390 = int_to_ptr.vmem [resolvable:$true] %s1389
          %1392 = dma.vmem_to_hbm [thread:$0]  %s1390, 128, %s1387, %s1332
        $region72: #{tpu_custom_call.1} parent=39 // pred_fallthru
          _
        // Predicated region
        $region73: #{tpu_custom_call.1} parent=39 // pred_check
          %p1393 = pneg %p274
        $region74: #{tpu_custom_call.1} parent=39 // pred_check_branch
          %1395 = sbr.rel (%p1393) target = $region76
        $region75: #{tpu_custom_call.1} parent=39 // pred_region
          %s1397 = ssub.s32 128, 128
          %1398 = vsyncadd %s1337, %s1397
          %s1399 = smul.addr %s37, 128
          %s1400 = scalar_lea.hbm %s9, %s1399
          %s1402 = sshll.u32 %s1340, 4
          %s1403 = int_to_ptr.vmem [resolvable:$true] %s1402
          %1405 = dma.vmem_to_hbm [thread:$0]  %s1403, 128, %s1400, %s1337
        $region76: #{tpu_custom_call.1} parent=39 // pred_fallthru
          _
      $region40: #{tpu_custom_call.1} parent=5 // pred_fallthru
        _
      %p1406 = scmp.le.s32.totalorder 2, %s32
      // Predicated region
      $region77: #{tpu_custom_call.1} parent=5 // pred_check
        %p1407 = pneg %p1406
      $region78: #{tpu_custom_call.1} parent=5 // pred_check_branch
        %1409 = sbr.rel (%p1407) target = $region80
      $region79: #{tpu_custom_call.1} parent=5 // pred_region
        %s1410 = ssub.s32 %s32, 2
        // Predicated region
        $region81: #{tpu_custom_call.1} parent=79 // pred_check
          %p1411 = pneg %p176
        $region82: #{tpu_custom_call.1} parent=79 // pred_check_branch
          %1413 = sbr.rel (%p1411) target = $region84
        $region83: #{tpu_custom_call.1} parent=79 // pred_region
          %s1414 = sand.u32 %s161, 1
          %s1415 = scalar_lea.sflag [#allocation4], %s1414
          %s1416 = sand.u32 %s161, 1
          %s1417 = smul.addr %s1416, 8
          %s1418 = scalar_lea.vmem [#allocation10], %s1417
          %1419 = dma.done %s1415, 128
        $region84: #{tpu_custom_call.1} parent=79 // pred_fallthru
          _
        // Predicated region
        $region85: #{tpu_custom_call.1} parent=79 // pred_check
          %p1420 = pneg %p202
        $region86: #{tpu_custom_call.1} parent=79 // pred_check_branch
          %1422 = sbr.rel (%p1420) target = $region88
        $region87: #{tpu_custom_call.1} parent=79 // pred_region
          %s1423 = sand.u32 %s38, 1
          %s1424 = scalar_lea.sflag [#allocation12], %s1423
          %s1425 = sand.u32 %s187, 1
          %s1426 = smul.addr %s1425, 8
          %s1427 = scalar_lea.vmem [#allocation11], %s1426
          %1428 = dma.done %s1424, 128
        $region88: #{tpu_custom_call.1} parent=79 // pred_fallthru
          _
        // Predicated region
        $region89: #{tpu_custom_call.1} parent=79 // pred_check
          %p1429 = pneg %p228
        $region90: #{tpu_custom_call.1} parent=79 // pred_check_branch
          %1431 = sbr.rel (%p1429) target = $region92
        $region91: #{tpu_custom_call.1} parent=79 // pred_region
          %s1432 = sand.u32 %s38, 1
          %s1433 = scalar_lea.sflag [#allocation12], %s1432
          %s1434 = sand.u32 %s213, 1
          %s1435 = smul.addr %s1434, 8
          %s1436 = scalar_lea.vmem [#allocation13], %s1435
          %1437 = dma.done %s1433, 128
        $region92: #{tpu_custom_call.1} parent=79 // pred_fallthru
          _
        // Predicated region
        $region93: #{tpu_custom_call.1} parent=79 // pred_check
          %p1438 = pneg %p254
        $region94: #{tpu_custom_call.1} parent=79 // pred_check_branch
          %1440 = sbr.rel (%p1438) target = $region96
        $region95: #{tpu_custom_call.1} parent=79 // pred_region
          %s1441 = sand.u32 %s38, 1
          %s1442 = scalar_lea.sflag [#allocation15], %s1441
          %s1443 = sand.u32 %s239, 1
          %s1444 = smul.addr %s1443, 8
          %s1445 = scalar_lea.vmem [#allocation14], %s1444
          %1446 = dma.done %s1442, 128
        $region96: #{tpu_custom_call.1} parent=79 // pred_fallthru
          _
        // Predicated region
        $region97: #{tpu_custom_call.1} parent=79 // pred_check
          %p1447 = pneg %p280
        $region98: #{tpu_custom_call.1} parent=79 // pred_check_branch
          %1449 = sbr.rel (%p1447) target = $region100
        $region99: #{tpu_custom_call.1} parent=79 // pred_region
          %s1450 = sand.u32 %s38, 1
          %s1451 = scalar_lea.sflag [#allocation15], %s1450
          %s1452 = sand.u32 %s265, 1
          %s1453 = smul.addr %s1452, 8
          %s1454 = scalar_lea.vmem [#allocation16], %s1453
          %1455 = dma.done %s1451, 128
        $region100: #{tpu_custom_call.1} parent=79 // pred_fallthru
          _
      $region80: #{tpu_custom_call.1} parent=5 // pred_fallthru
        _
    $region6: #{tpu_custom_call.1} parent=1 // loop_footer
      %s36 = sadd.s32 1, %s32
    $region7: #{tpu_custom_call.1} parent=1 // loop_footer_branch
      %31 = sbr.rel target = $region3
    $region8: #{tpu_custom_call.1} parent=1 // loop_exit
      _
    %1456 = vsyncpa [#allocation3], 1
    %s1457 = scalar_lea.sflag [#allocation3], 1
    %1458 = vsyncpa %s1457, 1
    %1459 = vsyncpa [#allocation6], 1
    %s1460 = scalar_lea.sflag [#allocation6], 1
    %1461 = vsyncpa %s1460, 1
    %1462 = vsyncpa [#allocation9], 1
    %1463 = vsyncpa [#allocation4], 1
    %s1464 = scalar_lea.sflag [#allocation4], 1
    %1465 = vsyncpa %s1464, 1
    %1466 = vsyncpa [#allocation12], 1
    %s1467 = scalar_lea.sflag [#allocation12], 1
    %1468 = vsyncpa %s1467, 1
    %1469 = vsyncpa [#allocation15], 1
    %s1470 = scalar_lea.sflag [#allocation15], 1
    %1471 = vsyncpa %s1470, 1

// kernel: tpu_custom_call.1
$region0: #{tpu_custom_call.1}
  #allocation0 [shape = 'u32[]', space=smem, size = 0x4, offset = 0x4, fixed_abs, tag = 'smem constant byte address 0x4 - core index']
  #allocation1 [shape = 'u32[144,128]{1,0:T(1,128)}', space=vmem, size = 0x12000, scoped, tag = 'internal scratch']
  %s0 = inlined_call_operand.hbm [shape: f32[16,32], index: 0, kind: input, shape index: {}]
  %s1 = inlined_call_operand.hbm [shape: f32[16,32], index: 1, kind: input, shape index: {}]
  %s2 = inlined_call_operand.hbm [shape: bf16[32,640], index: 2, kind: input, shape index: {}]
  %s3 = inlined_call_operand.vmem [shape: f32[1,640], index: 3, kind: input, shape index: {}]
  %s4 = inlined_call_operand.hbm [shape: bf16[640,128], index: 4, kind: input, shape index: {}]
  %s5 = inlined_call_operand.hbm [shape: f32[16,128], index: 5, kind: output, shape index: {0}]
  %s6 = inlined_call_operand.hbm [shape: f32[16,128], index: 6, kind: output, shape index: {1}]
  %s7 = inlined_call_operand.hbm [shape: f32[16,128], index: 7, kind: output, shape index: {2}]
  %s8 = inlined_call_operand.hbm [shape: f32[16,128], index: 8, kind: output, shape index: {3}]
  %s9 = inlined_call_operand.hbm [shape: f32[16,128], index: 9, kind: output, shape index: {4}]
  %10 = xla_tuple %s5, %s6, %s7, %s8, %s9
  %s11 = sld [smem:[#allocation0]]
  $region101: #{tpu_custom_call.1} parent=0
    _
  %s13 = ssub.s32 1, %s11
  %s14 = scalar_select 0, %s13, %s11
  $region1: #{tpu_custom_call.1} parent=0
    #allocation2 [shape = 'u8[8192]{0}', space=vmem, size = 0x2000, scoped, tag = 'input window, operand 0']
    #allocation3 [shape = 's32[2]{0}', space=sflag, size = 0x8, scoped, tag = 'scoped memory for tpu_custom_call.1']
    #allocation4 [shape = 's32[2]{0}', space=sflag, size = 0x8, scoped, tag = 'scoped memory for tpu_custom_call.1']
    #allocation5 [shape = 'u8[8192]{0}', space=vmem, size = 0x2000, scoped, tag = 'input window, operand 1']
    #allocation6 [shape = 's32[2]{0}', space=sflag, size = 0x8, scoped, tag = 'scoped memory for tpu_custom_call.1']
    #allocation7 [shape = 'u8[40960]{0}', space=vmem, size = 0xa000, scoped, tag = 'input window, operand 2, single buffered']
    #allocation8 [shape = 'u8[163840]{0}', space=vmem, size = 0x28000, scoped, tag = 'input window, operand 4, single buffered']
    #allocation9 [shape = 's32[1]{0}', space=sflag, size = 0x4, scoped, tag = 'scoped memory for tpu_custom_call.1']
    #allocation10 [shape = 'u8[8192]{0}', space=vmem, size = 0x2000, scoped, tag = 'output window, operand 0']
    #allocation11 [shape = 'u8[8192]{0}', space=vmem, size = 0x2000, scoped, tag = 'output window, operand 1']
    #allocation12 [shape = 's32[2]{0}', space=sflag, size = 0x8, scoped, tag = 'scoped memory for tpu_custom_call.1']
    #allocation13 [shape = 'u8[8192]{0}', space=vmem, size = 0x2000, scoped, tag = 'output window, operand 2']
    #allocation14 [shape = 'u8[8192]{0}', space=vmem, size = 0x2000, scoped, tag = 'output window, operand 3']
    #allocation15 [shape = 's32[2]{0}', space=sflag, size = 0x8, scoped, tag = 'scoped memory for tpu_custom_call.1']
    #allocation16 [shape = 'u8[8192]{0}', space=vmem, size = 0x2000, scoped, tag = 'output window, operand 4']
    %15 = vsyncpa [#allocation3], 0
    %s16 = scalar_lea.sflag [#allocation3], 1
    %17 = vsyncpa %s16, 0
    %18 = vsyncpa [#allocation6], 0
    %s19 = scalar_lea.sflag [#allocation6], 1
    %20 = vsyncpa %s19, 0
    %21 = vsyncpa [#allocation9], 0
    %22 = vsyncpa [#allocation4], 0
    %s23 = scalar_lea.sflag [#allocation4], 1
    %24 = vsyncpa %s23, 0
    %25 = vsyncpa [#allocation12], 0
    %s26 = scalar_lea.sflag [#allocation12], 1
    %27 = vsyncpa %s26, 0
    %28 = vsyncpa [#allocation15], 0
    %s29 = scalar_lea.sflag [#allocation15], 1
    %30 = vsyncpa %s29, 0
    loop: start=0, step=1, limit=4
    $region2: #{tpu_custom_call.1} parent=1 // loop_pre_header
      _
    $region3: #{tpu_custom_call.1} parent=1 // loop_header
      %s32 = sphi 0, %s36
      %p33 = scmp.ge.s32.totalorder %s32, 4
      %s42 = sphi 0, %s44
      %s45 = sphi 0, %s42
      %s46 = sphi 0, %s45
      %s62 = sphi 0, %s46
      %s68 = sphi 0, %s70
      %s71 = sphi 0, %s68
      %s72 = sphi 0, %s71
      %s88 = sphi 0, %s72
      %s92 = sphi 0, %s92
      %s94 = sphi 0, %s92
      %s95 = sphi 0, %s94
      %s109 = sphi 0, %s95
      %s113 = sphi 0, %s113
      %s115 = sphi 0, %s113
      %s116 = sphi 0, %s115
      %s130 = sphi 0, %s116
      %s134 = sphi 0, %s134
      %s136 = sphi 0, %s134
      %s137 = sphi 0, %s136
      %s151 = sphi 0, %s137
      %s157 = sphi 0, %s159
      %s160 = sphi 0, %s157
      %s161 = sphi 0, %s160
      %s177 = sphi 0, %s161
      %s183 = sphi 0, %s185
      %s186 = sphi 0, %s183
      %s187 = sphi 0, %s186
      %s203 = sphi 0, %s187
      %s209 = sphi 0, %s211
      %s212 = sphi 0, %s209
      %s213 = sphi 0, %s212
      %s229 = sphi 0, %s213
      %s235 = sphi 0, %s237
      %s238 = sphi 0, %s235
      %s239 = sphi 0, %s238
      %s255 = sphi 0, %s239
      %s261 = sphi 0, %s263
      %s264 = sphi 0, %s261
      %s265 = sphi 0, %s264
      %s281 = sphi 0, %s265
    $region4: #{tpu_custom_call.1} parent=1 // loop_header_branch
      %35 = sbr.rel (%p33) target = $region8
    $region5: #{tpu_custom_call.1} parent=1 // loop_body
      %s37 = ssub.s32 %s32, 1
      %s38 = ssub.s32 %s32, 2
      %s39 = sadd.s32 %s32, 1
      %s40 = ssub.s32 %s32, %s39
      %p41 = scmp.eq.s32.totalorder %s40, 0
      %s43 = sadd.s32 %s42, 1
      %s44 = scalar_select %p41, %s42, %s43
      %p47 = pneg %p41
      %p48 = scmp.eq.s32.totalorder %s32, 1
      %p49 = por %p47, %p48
      %p50 = scmp.ne.s32.totalorder %s42, %s45
      %p51 = scmp.eq.s32.totalorder %s32, 0
      %p52 = por %p50, %p51
      %p53 = scmp.ne.s32.totalorder %s42, %s45
      %p54 = scmp.eq.s32.totalorder %s37, 1
      %p55 = por %p53, %p54
      %p56 = scmp.ne.s32.totalorder %s45, %s46
      %p57 = scmp.eq.s32.totalorder %s37, 0
      %p58 = por %p56, %p57
      %p59 = scmp.ne.s32.totalorder %s45, %s46
      %p60 = scmp.eq.s32.totalorder %s38, 1
      %p61 = por %p59, %p60
      %p63 = scmp.ne.s32.totalorder %s46, %s62
      %p64 = scmp.eq.s32.totalorder %s38, 0
      %p65 = por %p63, %p64
      %s66 = ssub.s32 %s32, %s39
      %p67 = scmp.eq.s32.totalorder %s66, 0
      %s69 = sadd.s32 %s68, 1
      %s70 = scalar_select %p67, %s68, %s69
      %p73 = pneg %p67
      %p74 = scmp.eq.s32.totalorder %s32, 1
      %p75 = por %p73, %p74
      %p76 = scmp.ne.s32.totalorder %s68, %s71
      %p77 = scmp.eq.s32.totalorder %s32, 0
      %p78 = por %p76, %p77
      %p79 = scmp.ne.s32.totalorder %s68, %s71
      %p80 = scmp.eq.s32.totalorder %s37, 1
      %p81 = por %p79, %p80
      %p82 = scmp.ne.s32.totalorder %s71, %s72
      %p83 = scmp.eq.s32.totalorder %s37, 0
      %p84 = por %p82, %p83
      %p85 = scmp.ne.s32.totalorder %s71, %s72
      %p86 = scmp.eq.s32.totalorder %s38, 1
      %p87 = por %p85, %p86
      %p89 = scmp.ne.s32.totalorder %s72, %s88
      %p90 = scmp.eq.s32.totalorder %s38, 0
      %p91 = por %p89, %p90
      %s93 = sadd.s32 %s92, 1
      %p96 = scmp.eq.s32.totalorder %s32, 1
      %p97 = scmp.ne.s32.totalorder %s92, %s94
      %p98 = scmp.eq.s32.totalorder %s32, 0
      %p99 = por %p97, %p98
      %p100 = scmp.ne.s32.totalorder %s92, %s94
      %p101 = scmp.eq.s32.totalorder %s37, 1
      %p102 = por %p100, %p101
      %p103 = scmp.ne.s32.totalorder %s94, %s95
      %p104 = scmp.eq.s32.totalorder %s37, 0
      %p105 = por %p103, %p104
      %p106 = scmp.ne.s32.totalorder %s94, %s95
      %p107 = scmp.eq.s32.totalorder %s38, 1
      %p108 = por %p106, %p107
      %p110 = scmp.ne.s32.totalorder %s95, %s109
      %p111 = scmp.eq.s32.totalorder %s38, 0
      %p112 = por %p110, %p111
      %s114 = sadd.s32 %s113, 1
      %p117 = scmp.eq.s32.totalorder %s32, 1
      %p118 = scmp.ne.s32.totalorder %s113, %s115
      %p119 = scmp.eq.s32.totalorder %s32, 0
      %p120 = por %p118, %p119
      %p121 = scmp.ne.s32.totalorder %s113, %s115
      %p122 = scmp.eq.s32.totalorder %s37, 1
      %p123 = por %p121, %p122
      %p124 = scmp.ne.s32.totalorder %s115, %s116
      %p125 = scmp.eq.s32.totalorder %s37, 0
      %p126 = por %p124, %p125
      %p127 = scmp.ne.s32.totalorder %s115, %s116
      %p128 = scmp.eq.s32.totalorder %s38, 1
      %p129 = por %p127, %p128
      %p131 = scmp.ne.s32.totalorder %s116, %s130
      %p132 = scmp.eq.s32.totalorder %s38, 0
      %p133 = por %p131, %p132
      %s135 = sadd.s32 %s134, 1
      %p138 = scmp.eq.s32.totalorder %s32, 1
      %p139 = scmp.ne.s32.totalorder %s134, %s136
      %p140 = scmp.eq.s32.totalorder %s32, 0
      %p141 = por %p139, %p140
      %p142 = scmp.ne.s32.totalorder %s134, %s136
      %p143 = scmp.eq.s32.totalorder %s37, 1
      %p144 = por %p142, %p143
      %p145 = scmp.ne.s32.totalorder %s136, %s137
      %p146 = scmp.eq.s32.totalorder %s37, 0
      %p147 = por %p145, %p146
      %p148 = scmp.ne.s32.totalorder %s136, %s137
      %p149 = scmp.eq.s32.totalorder %s38, 1
      %p150 = por %p148, %p149
      %p152 = scmp.ne.s32.totalorder %s137, %s151
      %p153 = scmp.eq.s32.totalorder %s38, 0
      %p154 = por %p152, %p153
      %s155 = ssub.s32 %s32, %s39
      %p156 = scmp.eq.s32.totalorder %s155, 0
      %s158 = sadd.s32 %s157, 1
      %s159 = scalar_select %p156, %s157, %s158
      %p162 = pneg %p156
      %p163 = scmp.eq.s32.totalorder %s32, 1
      %p164 = por %p162, %p163
      %p165 = scmp.ne.s32.totalorder %s157, %s160
      %p166 = scmp.eq.s32.totalorder %s32, 0
      %p167 = por %p165, %p166
      %p168 = scmp.ne.s32.totalorder %s157, %s160
      %p169 = scmp.eq.s32.totalorder %s37, 1
      %p170 = por %p168, %p169
      %p171 = scmp.ne.s32.totalorder %s160, %s161
      %p172 = scmp.eq.s32.totalorder %s37, 0
      %p173 = por %p171, %p172
      %p174 = scmp.ne.s32.totalorder %s160, %s161
      %p175 = scmp.eq.s32.totalorder %s38, 1
      %p176 = por %p174, %p175
      %p178 = scmp.ne.s32.totalorder %s161, %s177
      %p179 = scmp.eq.s32.totalorder %s38, 0
      %p180 = por %p178, %p179
      %s181 = ssub.s32 %s32, %s39
      %p182 = scmp.eq.s32.totalorder %s181, 0
      %s184 = sadd.s32 %s183, 1
      %s185 = scalar_select %p182, %s183, %s184
      %p188 = pneg %p182
      %p189 = scmp.eq.s32.totalorder %s32, 1
      %p190 = por %p188, %p189
      %p191 = scmp.ne.s32.totalorder %s183, %s186
      %p192 = scmp.eq.s32.totalorder %s32, 0
      %p193 = por %p191, %p192
      %p194 = scmp.ne.s32.totalorder %s183, %s186
      %p195 = scmp.eq.s32.totalorder %s37, 1
      %p196 = por %p194, %p195
      %p197 = scmp.ne.s32.totalorder %s186, %s187
      %p198 = scmp.eq.s32.totalorder %s37, 0
      %p199 = por %p197, %p198
      %p200 = scmp.ne.s32.totalorder %s186, %s187
      %p201 = scmp.eq.s32.totalorder %s38, 1
      %p202 = por %p200, %p201
      %p204 = scmp.ne.s32.totalorder %s187, %s203
      %p205 = scmp.eq.s32.totalorder %s38, 0
      %p206 = por %p204, %p205
      %s207 = ssub.s32 %s32, %s39
      %p208 = scmp.eq.s32.totalorder %s207, 0
      %s210 = sadd.s32 %s209, 1
      %s211 = scalar_select %p208, %s209, %s210
      %p214 = pneg %p208
      %p215 = scmp.eq.s32.totalorder %s32, 1
      %p216 = por %p214, %p215
      %p217 = scmp.ne.s32.totalorder %s209, %s212
      %p218 = scmp.eq.s32.totalorder %s32, 0
      %p219 = por %p217, %p218
      %p220 = scmp.ne.s32.totalorder %s209, %s212
      %p221 = scmp.eq.s32.totalorder %s37, 1
      %p222 = por %p220, %p221
      %p223 = scmp.ne.s32.totalorder %s212, %s213
      %p224 = scmp.eq.s32.totalorder %s37, 0
      %p225 = por %p223, %p224
      %p226 = scmp.ne.s32.totalorder %s212, %s213
      %p227 = scmp.eq.s32.totalorder %s38, 1
      %p228 = por %p226, %p227
      %p230 = scmp.ne.s32.totalorder %s213, %s229
      %p231 = scmp.eq.s32.totalorder %s38, 0
      %p232 = por %p230, %p231
      %s233 = ssub.s32 %s32, %s39
      %p234 = scmp.eq.s32.totalorder %s233, 0
      %s236 = sadd.s32 %s235, 1
      %s237 = scalar_select %p234, %s235, %s236
      %p240 = pneg %p234
      %p241 = scmp.eq.s32.totalorder %s32, 1
      %p242 = por %p240, %p241
      %p243 = scmp.ne.s32.totalorder %s235, %s238
      %p244 = scmp.eq.s32.totalorder %s32, 0
      %p245 = por %p243, %p244
      %p246 = scmp.ne.s32.totalorder %s235, %s238
      %p247 = scmp.eq.s32.totalorder %s37, 1
      %p248 = por %p246, %p247
      %p249 = scmp.ne.s32.totalorder %s238, %s239
      %p250 = scmp.eq.s32.totalorder %s37, 0
      %p251 = por %p249, %p250
      %p252 = scmp.ne.s32.totalorder %s238, %s239
      %p253 = scmp.eq.s32.totalorder %s38, 1
      %p254 = por %p252, %p253
      %p256 = scmp.ne.s32.totalorder %s239, %s255
      %p257 = scmp.eq.s32.totalorder %s38, 0
      %p258 = por %p256, %p257
      %s259 = ssub.s32 %s32, %s39
      %p260 = scmp.eq.s32.totalorder %s259, 0
      %s262 = sadd.s32 %s261, 1
      %s263 = scalar_select %p260, %s261, %s262
      %p266 = pneg %p260
      %p267 = scmp.eq.s32.totalorder %s32, 1
      %p268 = por %p266, %p267
      %p269 = scmp.ne.s32.totalorder %s261, %s264
      %p270 = scmp.eq.s32.totalorder %s32, 0
      %p271 = por %p269, %p270
      %p272 = scmp.ne.s32.totalorder %s261, %s264
      %p273 = scmp.eq.s32.totalorder %s37, 1
      %p274 = por %p272, %p273
      %p275 = scmp.ne.s32.totalorder %s264, %s265
      %p276 = scmp.eq.s32.totalorder %s37, 0
      %p277 = por %p275, %p276
      %p278 = scmp.ne.s32.totalorder %s264, %s265
      %p279 = scmp.eq.s32.totalorder %s38, 1
      %p280 = por %p278, %p279
      %p282 = scmp.ne.s32.totalorder %s265, %s281
      %p283 = scmp.eq.s32.totalorder %s38, 0
      %p284 = por %p282, %p283
      %p285 = scmp.le.s32.totalorder 1, %s32
      %p286 = scmp.lt.s32.totalorder %s32, 3
      %p287 = pnand %p285, %p286
      %p288 = pneg %p287
      // Predicated region
      $region9: #{tpu_custom_call.1} parent=5 // pred_check
        _
      $region10: #{tpu_custom_call.1} parent=5 // pred_check_branch
        %290 = sbr.rel (%p287) target = $region12
      $region11: #{tpu_custom_call.1} parent=5 // pred_region
        %s291 = ssub.s32 %s32, 1
        // Predicated region
        $region13: #{tpu_custom_call.1} parent=11 // pred_check
          %p292 = pneg %p105
        $region14: #{tpu_custom_call.1} parent=11 // pred_check_branch
          %294 = sbr.rel (%p292) target = $region16
        $region15: #{tpu_custom_call.1} parent=11 // pred_region
          %s296 = ssub.s32 1280, 1280
          %297 = vsyncadd [#allocation6], %s296
          %s298 = sshll.u32 [#allocation7], 4
          %s299 = int_to_ptr.vmem [resolvable:$true] %s298
          %304 = dma.hbm_to_vmem [thread:$0]  %s2, 1280, %s299, [#allocation6], 320, 320, 20
        $region16: #{tpu_custom_call.1} parent=11 // pred_fallthru
          _
        // Predicated region
        $region17: #{tpu_custom_call.1} parent=11 // pred_check
          %p305 = pneg %p126
        $region18: #{tpu_custom_call.1} parent=11 // pred_check_branch
          %307 = sbr.rel (%p305) target = $region20
        $region19: #{tpu_custom_call.1} parent=11 // pred_region
          _
        $region20: #{tpu_custom_call.1} parent=11 // pred_fallthru
          _
        // Predicated region
        $region21: #{tpu_custom_call.1} parent=11 // pred_check
          %p308 = pneg %p147
        $region22: #{tpu_custom_call.1} parent=11 // pred_check_branch
          %310 = sbr.rel (%p308) target = $region24
        $region23: #{tpu_custom_call.1} parent=11 // pred_region
          %s312 = ssub.s32 5120, 5120
          %313 = vsyncadd [#allocation9], %s312
          %s314 = sshll.u32 [#allocation8], 4
          %s315 = int_to_ptr.vmem [resolvable:$true] %s314
          %320 = dma.hbm_to_vmem [thread:$0]  %s4, 5120, %s315, [#allocation9], 64, 64, 4
        $region24: #{tpu_custom_call.1} parent=11 // pred_fallthru
          _
      $region12: #{tpu_custom_call.1} parent=5 // pred_fallthru
        _
      %p321 = scmp.lt.s32.totalorder %s32, 2
      // Predicated region
      $region25: #{tpu_custom_call.1} parent=5 // pred_check
        %p322 = pneg %p321
      $region26: #{tpu_custom_call.1} parent=5 // pred_check_branch
        %324 = sbr.rel (%p322) target = $region28
      $region27: #{tpu_custom_call.1} parent=5 // pred_region
        // Predicated region
        $region29: #{tpu_custom_call.1} parent=27 // pred_check
          %p325 = pneg %p52
        $region30: #{tpu_custom_call.1} parent=27 // pred_check_branch
          %327 = sbr.rel (%p325) target = $region32
        $region31: #{tpu_custom_call.1} parent=27 // pred_region
          %s328 = sand.u32 %s42, 1
          %s329 = scalar_lea.sflag [#allocation3], %s328
          %s330 = sand.u32 %s42, 1
          %s331 = smul.addr %s330, 8
          %s332 = scalar_lea.vmem [#allocation2], %s331
          %s334 = ssub.s32 128, 128
          %335 = vsyncadd %s329, %s334
          %s336 = smul.addr %s32, 128
          %s337 = scalar_lea.hbm %s0, %s336
          %s339 = sshll.u32 %s332, 4
          %s340 = int_to_ptr.vmem [resolvable:$true] %s339
          %342 = dma.hbm_to_vmem [thread:$0]  %s337, 128, %s340, %s329
        $region32: #{tpu_custom_call.1} parent=27 // pred_fallthru
          _
        // Predicated region
        $region33: #{tpu_custom_call.1} parent=27 // pred_check
          %p343 = pneg %p78
        $region34: #{tpu_custom_call.1} parent=27 // pred_check_branch
          %345 = sbr.rel (%p343) target = $region36
        $region35: #{tpu_custom_call.1} parent=27 // pred_region
          %s346 = sand.u32 %s32, 1
          %s347 = scalar_lea.sflag [#allocation6], %s346
          %s348 = sand.u32 %s68, 1
          %s349 = smul.addr %s348, 8
          %s350 = scalar_lea.vmem [#allocation5], %s349
          %s352 = ssub.s32 128, 128
          %353 = vsyncadd %s347, %s352
          %s354 = smul.addr %s32, 128
          %s355 = scalar_lea.hbm %s1, %s354
          %s357 = sshll.u32 %s350, 4
          %s358 = int_to_ptr.vmem [resolvable:$true] %s357
          %360 = dma.hbm_to_vmem [thread:$0]  %s355, 128, %s358, %s347
        $region36: #{tpu_custom_call.1} parent=27 // pred_fallthru
          _
      $region28: #{tpu_custom_call.1} parent=5 // pred_fallthru
        _
      %p361 = scmp.le.s32.totalorder 1, %s32
      %p362 = scmp.lt.s32.totalorder %s32, 3
      %p363 = pnand %p361, %p362
      %p364 = pneg %p363
      // Predicated region
      $region37: #{tpu_custom_call.1} parent=5 // pred_check
        _
      $region38: #{tpu_custom_call.1} parent=5 // pred_check_branch
        %366 = sbr.rel (%p363) target = $region40
      $region39: #{tpu_custom_call.1} parent=5 // pred_region
        %s367 = ssub.s32 %s32, 1
        %s368 = sand.u32 %s45, 1
        %s369 = scalar_lea.sflag [#allocation3], %s368
        %s370 = sand.u32 %s45, 1
        %s371 = smul.addr %s370, 8
        %s372 = scalar_lea.vmem [#allocation2], %s371
        // Predicated region
        $region41: #{tpu_custom_call.1} parent=39 // pred_check
          %p373 = pneg %p58
        $region42: #{tpu_custom_call.1} parent=39 // pred_check_branch
          %375 = sbr.rel (%p373) target = $region44
        $region43: #{tpu_custom_call.1} parent=39 // pred_region
          %376 = dma.done %s369, 128
        $region44: #{tpu_custom_call.1} parent=39 // pred_fallthru
          _
        %s377 = sand.u32 %s37, 1
        %s378 = scalar_lea.sflag [#allocation6], %s377
        %s379 = sand.u32 %s71, 1
        %s380 = smul.addr %s379, 8
        %s381 = scalar_lea.vmem [#allocation5], %s380
        // Predicated region
        $region45: #{tpu_custom_call.1} parent=39 // pred_check
          %p382 = pneg %p84
        $region46: #{tpu_custom_call.1} parent=39 // pred_check_branch
          %384 = sbr.rel (%p382) target = $region48
        $region47: #{tpu_custom_call.1} parent=39 // pred_region
          %385 = dma.done %s378, 128
        $region48: #{tpu_custom_call.1} parent=39 // pred_fallthru
          _
        // Predicated region
        $region49: #{tpu_custom_call.1} parent=39 // pred_check
          %p386 = pneg %p105
        $region50: #{tpu_custom_call.1} parent=39 // pred_check_branch
          %388 = sbr.rel (%p386) target = $region52
        $region51: #{tpu_custom_call.1} parent=39 // pred_region
          %389 = dma.done [#allocation6], 1280
        $region52: #{tpu_custom_call.1} parent=39 // pred_fallthru
          _
        // Predicated region
        $region53: #{tpu_custom_call.1} parent=39 // pred_check
          %p390 = pneg %p147
        $region54: #{tpu_custom_call.1} parent=39 // pred_check_branch
          %392 = sbr.rel (%p390) target = $region56
        $region55: #{tpu_custom_call.1} parent=39 // pred_region
          %393 = dma.done [#allocation9], 5120
        $region56: #{tpu_custom_call.1} parent=39 // pred_fallthru
          _
        %s394 = sand.u32 %s45, 1
        %s395 = scalar_lea.sflag [#allocation3], %s394
        %s396 = sand.u32 %s45, 1
        %s397 = smul.addr %s396, 8
        %s398 = scalar_lea.vmem [#allocation2], %s397
        %p399 = pneg %p58
        %p400 = pneg %p55
        %s401 = sand.u32 %s37, 1
        %s402 = scalar_lea.sflag [#allocation6], %s401
        %s403 = sand.u32 %s71, 1
        %s404 = smul.addr %s403, 8
        %s405 = scalar_lea.vmem [#allocation5], %s404
        %p406 = pneg %p84
        %p407 = pneg %p81
        %p408 = pneg %p105
        %p409 = pneg %p102
        %p410 = pneg %p126
        %p411 = pneg %p123
        %p412 = pneg %p147
        %p413 = pneg %p144
        %p414 = pneg %p173
        %p415 = pneg %p170
        %s416 = sand.u32 %s160, 1
        %s417 = scalar_lea.sflag [#allocation4], %s416
        %s418 = sand.u32 %s160, 1
        %s419 = smul.addr %s418, 8
        %s420 = scalar_lea.vmem [#allocation10], %s419
        %p421 = pneg %p199
        %p422 = pneg %p196
        %s423 = sand.u32 %s37, 1
        %s424 = scalar_lea.sflag [#allocation12], %s423
        %s425 = sand.u32 %s186, 1
        %s426 = smul.addr %s425, 8
        %s427 = scalar_lea.vmem [#allocation11], %s426
        %p428 = pneg %p225
        %p429 = pneg %p222
        %s430 = sand.u32 %s37, 1
        %s431 = scalar_lea.sflag [#allocation12], %s430
        %s432 = sand.u32 %s212, 1
        %s433 = smul.addr %s432, 8
        %s434 = scalar_lea.vmem [#allocation13], %s433
        %p435 = pneg %p251
        %p436 = pneg %p248
        %s437 = sand.u32 %s37, 1
        %s438 = scalar_lea.sflag [#allocation15], %s437
        %s439 = sand.u32 %s238, 1
        %s440 = smul.addr %s439, 8
        %s441 = scalar_lea.vmem [#allocation14], %s440
        %p442 = pneg %p277
        %p443 = pneg %p274
        %s444 = sand.u32 %s37, 1
        %s445 = scalar_lea.sflag [#allocation15], %s444
        %s446 = sand.u32 %s264, 1
        %s447 = smul.addr %s446, 8
        %s448 = scalar_lea.vmem [#allocation16], %s447
        %v450 = vld [vmem:[%s372] sm:$0xff]
        %v451 = vpack.c.bf16 %v450, %v450
        %v452 = vld [vmem:[%s381] sm:$0xff]
        %v453 = vpack.c.bf16 %v452, %v452
        %v454 = vld [vmem:[#allocation7] sm:$0xf]
        %v455 = vld [vmem:[#allocation7 + $0x14] sm:$0xf]
        %v456 = vld [vmem:[#allocation7 + $0x28] sm:$0xf]
        %v457 = vld [vmem:[#allocation7 + $0x3c] sm:$0xf]
        %v458 = vld [vmem:[%s3] sm:$0x1]
        %v460 = vlaneseq
        %v461 = vshrl.u32 %v460, 7
        %v462 = vsub.s32 0, %v461
        %v463 = vrot.slane %v458, %v462
        %v469 = vunpack.c.l.b16 %v454
        %v470 = vunpack.c.l.b16 %v455
        %v471 = vunpack.c.l.b16 %v456
        %v472 = vunpack.c.l.b16 %v457
        %v473 = vpack.c.b16 %v470, %v469
        %v474 = vpack.c.b16 %v472, %v471
        %vm477 = vcmask 261120
        %v479 = vsel %vm477, %v451, 0
        %481 = vmatprep.subr.bf16.mxu0 0
        %482 = vmatpush1.bf16.msra.mxu0 %v473
        %483 = vmatprep.subr.bf16.mxu0 0
        %484 = vmatpush1.bf16.msra.mxu0 %v474
        %485 = vmatprep.subr.bf16.mxu0 0
        %486 = vmatpush1.bf16.msra.mxu0 0
        %487 = vmatprep.subr.bf16.mxu0 0
        %488 = vmatpush1.bf16.msra.mxu0 0
        %489 = vmatprep.subr.bf16.mxu0 0
        %490 = vmatpush1.bf16.msra.mxu0 0
        %491 = vmatprep.subr.bf16.mxu0 0
        %492 = vmatpush1.bf16.msra.mxu0 0
        %493 = vmatprep.subr.bf16.mxu0 0
        %494 = vmatpush1.bf16.msra.mxu0 0
        %495 = vmatprep.subr.bf16.mxu0 0
        %496 = vmatpush1.bf16.msra.mxu0 0
        %497 = vmatprep.subr.bf16.mxu0 0
        %498 = vmatpush1.bf16.msra.mxu0 0
        %499 = vmatprep.subr.bf16.mxu0 0
        %500 = vmatpush1.bf16.msra.mxu0 0
        %501 = vmatprep.subr.bf16.mxu0 0
        %502 = vmatpush1.bf16.msra.mxu0 0
        %503 = vmatprep.subr.bf16.mxu0 0
        %504 = vmatpush1.bf16.msra.mxu0 0
        %505 = vmatprep.subr.bf16.mxu0 0
        %506 = vmatpush1.bf16.msra.mxu0 0
        %507 = vmatprep.subr.bf16.mxu0 0
        %508 = vmatpush1.bf16.msra.mxu0 0
        %509 = vmatprep.subr.bf16.mxu0 0
        %510 = vmatpush1.bf16.msra.mxu0 0
        %511 = vmatprep.subr.bf16.mxu0 0
        %512 = vmatpush1.bf16.msra.mxu0 0
        %513 = vmatprep.mubr.bf16.mxu0 0
        %514 = vmatmul.mubr.bf16.gmra.mrb[0].mxu0 %v479
        %v515 = vpop.f32.mrb[0].mxu0
        %v516 = vadd.f32 %v463, %v515
        %v517 = vpop.f32.mrb[0].mxu0
        %v518 = vpop.f32.mrb[0].mxu0
        %v519 = vpop.f32.mrb[0].mxu0
        %520 = vdwg.mxu0
        %v521 = vmul.f32 %v516, 0.1
        %v522 = vmax.f32 %v516, %v521
        %v523 = vpack.c.bf16 %v522, %v522
        %v524 = vld [vmem:[#allocation8] sm:$0xf]
        %v525 = vld [vmem:[#allocation8 + $0x4] sm:$0xf]
        %v526 = vld [vmem:[#allocation8 + $0x8] sm:$0xf]
        %v527 = vld [vmem:[#allocation8 + $0xc] sm:$0xf]
        %v528 = vld [vmem:[#allocation8 + $0x10] sm:$0xf]
        %v529 = vld [vmem:[#allocation8 + $0x14] sm:$0xf]
        %v530 = vld [vmem:[#allocation8 + $0x18] sm:$0xf]
        %v531 = vld [vmem:[#allocation8 + $0x1c] sm:$0xf]
        %v532 = vld [vmem:[#allocation8 + $0x20] sm:$0xf]
        %v533 = vld [vmem:[#allocation8 + $0x24] sm:$0xf]
        %v534 = vld [vmem:[#allocation8 + $0x28] sm:$0xf]
        %v535 = vld [vmem:[#allocation8 + $0x2c] sm:$0xf]
        %v536 = vld [vmem:[#allocation8 + $0x30] sm:$0xf]
        %v537 = vld [vmem:[#allocation8 + $0x34] sm:$0xf]
        %v538 = vld [vmem:[#allocation8 + $0x38] sm:$0xf]
        %v539 = vld [vmem:[#allocation8 + $0x3c] sm:$0xf]
        %v556 = vunpack.c.l.b16 %v524
        %v557 = vunpack.c.l.b16 %v525
        %v558 = vunpack.c.l.b16 %v526
        %v559 = vunpack.c.l.b16 %v527
        %v560 = vunpack.c.l.b16 %v528
        %v561 = vunpack.c.l.b16 %v529
        %v562 = vunpack.c.l.b16 %v530
        %v563 = vunpack.c.l.b16 %v531
        %v564 = vunpack.c.l.b16 %v532
        %v565 = vunpack.c.l.b16 %v533
        %v566 = vunpack.c.l.b16 %v534
        %v567 = vunpack.c.l.b16 %v535
        %v568 = vunpack.c.l.b16 %v536
        %v569 = vunpack.c.l.b16 %v537
        %v570 = vunpack.c.l.b16 %v538
        %v571 = vunpack.c.l.b16 %v539
        %v572 = vpack.c.b16 %v557, %v556
        %v573 = vpack.c.b16 %v559, %v558
        %v574 = vpack.c.b16 %v561, %v560
        %v575 = vpack.c.b16 %v563, %v562
        %v576 = vpack.c.b16 %v565, %v564
        %v577 = vpack.c.b16 %v567, %v566
        %v578 = vpack.c.b16 %v569, %v568
        %v579 = vpack.c.b16 %v571, %v570
        %588 = vmatprep.subr.bf16.mxu0 0
        %589 = vmatpush1.bf16.msra.mxu0 %v572
        %590 = vmatprep.subr.bf16.mxu0 0
        %591 = vmatpush1.bf16.msra.mxu0 %v573
        %592 = vmatprep.subr.bf16.mxu0 0
        %593 = vmatpush1.bf16.msra.mxu0 %v574
        %594 = vmatprep.subr.bf16.mxu0 0
        %595 = vmatpush1.bf16.msra.mxu0 %v575
        %596 = vmatprep.subr.bf16.mxu0 0
        %597 = vmatpush1.bf16.msra.mxu0 %v576
        %598 = vmatprep.subr.bf16.mxu0 0
        %599 = vmatpush1.bf16.msra.mxu0 %v577
        %600 = vmatprep.subr.bf16.mxu0 0
        %601 = vmatpush1.bf16.msra.mxu0 %v578
        %602 = vmatprep.subr.bf16.mxu0 0
        %603 = vmatpush1.bf16.msra.mxu0 %v579
        %604 = vmatprep.subr.bf16.mxu0 0
        %605 = vmatpush1.bf16.msra.mxu0 0
        %606 = vmatprep.subr.bf16.mxu0 0
        %607 = vmatpush1.bf16.msra.mxu0 0
        %608 = vmatprep.subr.bf16.mxu0 0
        %609 = vmatpush1.bf16.msra.mxu0 0
        %610 = vmatprep.subr.bf16.mxu0 0
        %611 = vmatpush1.bf16.msra.mxu0 0
        %612 = vmatprep.subr.bf16.mxu0 0
        %613 = vmatpush1.bf16.msra.mxu0 0
        %614 = vmatprep.subr.bf16.mxu0 0
        %615 = vmatpush1.bf16.msra.mxu0 0
        %616 = vmatprep.subr.bf16.mxu0 0
        %617 = vmatpush1.bf16.msra.mxu0 0
        %618 = vmatprep.subr.bf16.mxu0 0
        %619 = vmatpush1.bf16.msra.mxu0 0
        %620 = vmatprep.mubr.bf16.mxu0 0
        %621 = vmatmul.mubr.bf16.gmra.mrb[0].mxu0 %v523
        %v622 = vpop.f32.mrb[0].mxu0
        %v623 = vadd.f32 0.0, %v622
        %v624 = vpop.f32.mrb[0].mxu0
        %v625 = vpop.f32.mrb[0].mxu0
        %v626 = vpop.f32.mrb[0].mxu0
        %627 = vdwg.mxu0
        %628 = vst [vmem:[%s420] sm:$0xff] %v623
        %v629 = vld [vmem:[#allocation7 + $0x4] sm:$0xf]
        %v630 = vld [vmem:[#allocation7 + $0x18] sm:$0xf]
        %v631 = vld [vmem:[#allocation7 + $0x2c] sm:$0xf]
        %v632 = vld [vmem:[#allocation7 + $0x40] sm:$0xf]
        %v633 = vld [vmem:[%s3 + $0x1] sm:$0x1]
        %v635 = vlaneseq
        %v636 = vshrl.u32 %v635, 7
        %v637 = vsub.s32 0, %v636
        %v638 = vrot.slane %v633, %v637
        %v644 = vunpack.c.l.b16 %v629
        %v645 = vunpack.c.l.b16 %v630
        %v646 = vunpack.c.l.b16 %v631
        %v647 = vunpack.c.l.b16 %v632
        %v648 = vpack.c.b16 %v645, %v644
        %v649 = vpack.c.b16 %v647, %v646
        %652 = vmatprep.subr.bf16.mxu0 0
        %653 = vmatpush1.bf16.msra.mxu0 %v648
        %654 = vmatprep.subr.bf16.mxu0 0
        %655 = vmatpush1.bf16.msra.mxu0 %v649
        %656 = vmatprep.subr.bf16.mxu0 0
        %657 = vmatpush1.bf16.msra.mxu0 0
        %658 = vmatprep.subr.bf16.mxu0 0
        %659 = vmatpush1.bf16.msra.mxu0 0
        %660 = vmatprep.subr.bf16.mxu0 0
        %661 = vmatpush1.bf16.msra.mxu0 0
        %662 = vmatprep.subr.bf16.mxu0 0
        %663 = vmatpush1.bf16.msra.mxu0 0
        %664 = vmatprep.subr.bf16.mxu0 0
        %665 = vmatpush1.bf16.msra.mxu0 0
        %666 = vmatprep.subr.bf16.mxu0 0
        %667 = vmatpush1.bf16.msra.mxu0 0
        %668 = vmatprep.subr.bf16.mxu0 0
        %669 = vmatpush1.bf16.msra.mxu0 0
        %670 = vmatprep.subr.bf16.mxu0 0
        %671 = vmatpush1.bf16.msra.mxu0 0
        %672 = vmatprep.subr.bf16.mxu0 0
        %673 = vmatpush1.bf16.msra.mxu0 0
        %674 = vmatprep.subr.bf16.mxu0 0
        %675 = vmatpush1.bf16.msra.mxu0 0
        %676 = vmatprep.subr.bf16.mxu0 0
        %677 = vmatpush1.bf16.msra.mxu0 0
        %678 = vmatprep.subr.bf16.mxu0 0
        %679 = vmatpush1.bf16.msra.mxu0 0
        %680 = vmatprep.subr.bf16.mxu0 0
        %681 = vmatpush1.bf16.msra.mxu0 0
        %682 = vmatprep.subr.bf16.mxu0 0
        %683 = vmatpush1.bf16.msra.mxu0 0
        %684 = vmatprep.mubr.bf16.mxu0 0
        %685 = vmatmul.mubr.bf16.gmra.mrb[0].mxu0 %v479
        %v686 = vpop.f32.mrb[0].mxu0
        %v687 = vadd.f32 %v638, %v686
        %v688 = vpop.f32.mrb[0].mxu0
        %v689 = vpop.f32.mrb[0].mxu0
        %v690 = vpop.f32.mrb[0].mxu0
        %691 = vdwg.mxu0
        %v692 = vmul.f32 %v687, 0.1
        %v693 = vmax.f32 %v687, %v692
        %v694 = vpack.c.bf16 %v693, %v693
        %v695 = vld [vmem:[#allocation8 + $0x40] sm:$0xf]
        %v696 = vld [vmem:[#allocation8 + $0x44] sm:$0xf]
        %v697 = vld [vmem:[#allocation8 + $0x48] sm:$0xf]
        %v698 = vld [vmem:[#allocation8 + $0x4c] sm:$0xf]
        %v699 = vld [vmem:[#allocation8 + $0x50] sm:$0xf]
        %v700 = vld [vmem:[#allocation8 + $0x54] sm:$0xf]
        %v701 = vld [vmem:[#allocation8 + $0x58] sm:$0xf]
        %v702 = vld [vmem:[#allocation8 + $0x5c] sm:$0xf]
        %v703 = vld [vmem:[#allocation8 + $0x60] sm:$0xf]
        %v704 = vld [vmem:[#allocation8 + $0x64] sm:$0xf]
        %v705 = vld [vmem:[#allocation8 + $0x68] sm:$0xf]
        %v706 = vld [vmem:[#allocation8 + $0x6c] sm:$0xf]
        %v707 = vld [vmem:[#allocation8 + $0x70] sm:$0xf]
        %v708 = vld [vmem:[#allocation8 + $0x74] sm:$0xf]
        %v709 = vld [vmem:[#allocation8 + $0x78] sm:$0xf]
        %v710 = vld [vmem:[#allocation8 + $0x7c] sm:$0xf]
        %v727 = vunpack.c.l.b16 %v695
        %v728 = vunpack.c.l.b16 %v696
        %v729 = vunpack.c.l.b16 %v697
        %v730 = vunpack.c.l.b16 %v698
        %v731 = vunpack.c.l.b16 %v699
        %v732 = vunpack.c.l.b16 %v700
        %v733 = vunpack.c.l.b16 %v701
        %v734 = vunpack.c.l.b16 %v702
        %v735 = vunpack.c.l.b16 %v703
        %v736 = vunpack.c.l.b16 %v704
        %v737 = vunpack.c.l.b16 %v705
        %v738 = vunpack.c.l.b16 %v706
        %v739 = vunpack.c.l.b16 %v707
        %v740 = vunpack.c.l.b16 %v708
        %v741 = vunpack.c.l.b16 %v709
        %v742 = vunpack.c.l.b16 %v710
        %v743 = vpack.c.b16 %v728, %v727
        %v744 = vpack.c.b16 %v730, %v729
        %v745 = vpack.c.b16 %v732, %v731
        %v746 = vpack.c.b16 %v734, %v733
        %v747 = vpack.c.b16 %v736, %v735
        %v748 = vpack.c.b16 %v738, %v737
        %v749 = vpack.c.b16 %v740, %v739
        %v750 = vpack.c.b16 %v742, %v741
        %759 = vmatprep.subr.bf16.mxu0 0
        %760 = vmatpush1.bf16.msra.mxu0 %v743
        %761 = vmatprep.subr.bf16.mxu0 0
        %762 = vmatpush1.bf16.msra.mxu0 %v744
        %763 = vmatprep.subr.bf16.mxu0 0
        %764 = vmatpush1.bf16.msra.mxu0 %v745
        %765 = vmatprep.subr.bf16.mxu0 0
        %766 = vmatpush1.bf16.msra.mxu0 %v746
        %767 = vmatprep.subr.bf16.mxu0 0
        %768 = vmatpush1.bf16.msra.mxu0 %v747
        %769 = vmatprep.subr.bf16.mxu0 0
        %770 = vmatpush1.bf16.msra.mxu0 %v748
        %771 = vmatprep.subr.bf16.mxu0 0
        %772 = vmatpush1.bf16.msra.mxu0 %v749
        %773 = vmatprep.subr.bf16.mxu0 0
        %774 = vmatpush1.bf16.msra.mxu0 %v750
        %775 = vmatprep.subr.bf16.mxu0 0
        %776 = vmatpush1.bf16.msra.mxu0 0
        %777 = vmatprep.subr.bf16.mxu0 0
        %778 = vmatpush1.bf16.msra.mxu0 0
        %779 = vmatprep.subr.bf16.mxu0 0
        %780 = vmatpush1.bf16.msra.mxu0 0
        %781 = vmatprep.subr.bf16.mxu0 0
        %782 = vmatpush1.bf16.msra.mxu0 0
        %783 = vmatprep.subr.bf16.mxu0 0
        %784 = vmatpush1.bf16.msra.mxu0 0
        %785 = vmatprep.subr.bf16.mxu0 0
        %786 = vmatpush1.bf16.msra.mxu0 0
        %787 = vmatprep.subr.bf16.mxu0 0
        %788 = vmatpush1.bf16.msra.mxu0 0
        %789 = vmatprep.subr.bf16.mxu0 0
        %790 = vmatpush1.bf16.msra.mxu0 0
        %791 = vmatprep.mubr.bf16.mxu0 0
        %792 = vmatmul.mubr.bf16.gmra.mrb[0].mxu0 %v694
        %v793 = vpop.f32.mrb[0].mxu0
        %v794 = vadd.f32 0.0, %v793
        %v795 = vpop.f32.mrb[0].mxu0
        %v796 = vpop.f32.mrb[0].mxu0
        %v797 = vpop.f32.mrb[0].mxu0
        %798 = vdwg.mxu0
        %799 = vst [vmem:[%s427] sm:$0xff] %v794
        %v800 = vld [vmem:[#allocation7 + $0x8] sm:$0xf]
        %v801 = vld [vmem:[#allocation7 + $0x1c] sm:$0xf]
        %v802 = vld [vmem:[#allocation7 + $0x30] sm:$0xf]
        %v803 = vld [vmem:[#allocation7 + $0x44] sm:$0xf]
        %v804 = vld [vmem:[%s3 + $0x2] sm:$0x1]
        %v806 = vlaneseq
        %v807 = vshrl.u32 %v806, 7
        %v808 = vsub.s32 0, %v807
        %v809 = vrot.slane %v804, %v808
        %v815 = vunpack.c.l.b16 %v800
        %v816 = vunpack.c.l.b16 %v801
        %v817 = vunpack.c.l.b16 %v802
        %v818 = vunpack.c.l.b16 %v803
        %v819 = vpack.c.b16 %v816, %v815
        %v820 = vpack.c.b16 %v818, %v817
        %823 = vmatprep.subr.bf16.mxu0 0
        %824 = vmatpush1.bf16.msra.mxu0 %v819
        %825 = vmatprep.subr.bf16.mxu0 0
        %826 = vmatpush1.bf16.msra.mxu0 %v820
        %827 = vmatprep.subr.bf16.mxu0 0
        %828 = vmatpush1.bf16.msra.mxu0 0
        %829 = vmatprep.subr.bf16.mxu0 0
        %830 = vmatpush1.bf16.msra.mxu0 0
        %831 = vmatprep.subr.bf16.mxu0 0
        %832 = vmatpush1.bf16.msra.mxu0 0
        %833 = vmatprep.subr.bf16.mxu0 0
        %834 = vmatpush1.bf16.msra.mxu0 0
        %835 = vmatprep.subr.bf16.mxu0 0
        %836 = vmatpush1.bf16.msra.mxu0 0
        %837 = vmatprep.subr.bf16.mxu0 0
        %838 = vmatpush1.bf16.msra.mxu0 0
        %839 = vmatprep.subr.bf16.mxu0 0
        %840 = vmatpush1.bf16.msra.mxu0 0
        %841 = vmatprep.subr.bf16.mxu0 0
        %842 = vmatpush1.bf16.msra.mxu0 0
        %843 = vmatprep.subr.bf16.mxu0 0
        %844 = vmatpush1.bf16.msra.mxu0 0
        %845 = vmatprep.subr.bf16.mxu0 0
        %846 = vmatpush1.bf16.msra.mxu0 0
        %847 = vmatprep.subr.bf16.mxu0 0
        %848 = vmatpush1.bf16.msra.mxu0 0
        %849 = vmatprep.subr.bf16.mxu0 0
        %850 = vmatpush1.bf16.msra.mxu0 0
        %851 = vmatprep.subr.bf16.mxu0 0
        %852 = vmatpush1.bf16.msra.mxu0 0
        %853 = vmatprep.subr.bf16.mxu0 0
        %854 = vmatpush1.bf16.msra.mxu0 0
        %855 = vmatprep.mubr.bf16.mxu0 0
        %856 = vmatmul.mubr.bf16.gmra.mrb[0].mxu0 %v479
        %v857 = vpop.f32.mrb[0].mxu0
        %v858 = vadd.f32 %v809, %v857
        %v859 = vpop.f32.mrb[0].mxu0
        %v860 = vpop.f32.mrb[0].mxu0
        %v861 = vpop.f32.mrb[0].mxu0
        %862 = vdwg.mxu0
        %v863 = vmul.f32 %v858, 0.1
        %v864 = vmax.f32 %v858, %v863
        %v865 = vpack.c.bf16 %v864, %v864
        %v866 = vld [vmem:[#allocation8 + $0x80] sm:$0xf]
        %v867 = vld [vmem:[#allocation8 + $0x84] sm:$0xf]
        %v868 = vld [vmem:[#allocation8 + $0x88] sm:$0xf]
        %v869 = vld [vmem:[#allocation8 + $0x8c] sm:$0xf]
        %v870 = vld [vmem:[#allocation8 + $0x90] sm:$0xf]
        %v871 = vld [vmem:[#allocation8 + $0x94] sm:$0xf]
        %v872 = vld [vmem:[#allocation8 + $0x98] sm:$0xf]
        %v873 = vld [vmem:[#allocation8 + $0x9c] sm:$0xf]
        %v874 = vld [vmem:[#allocation8 + $0xa0] sm:$0xf]
        %v875 = vld [vmem:[#allocation8 + $0xa4] sm:$0xf]
        %v876 = vld [vmem:[#allocation8 + $0xa8] sm:$0xf]
        %v877 = vld [vmem:[#allocation8 + $0xac] sm:$0xf]
        %v878 = vld [vmem:[#allocation8 + $0xb0] sm:$0xf]
        %v879 = vld [vmem:[#allocation8 + $0xb4] sm:$0xf]
        %v880 = vld [vmem:[#allocation8 + $0xb8] sm:$0xf]
        %v881 = vld [vmem:[#allocation8 + $0xbc] sm:$0xf]
        %v898 = vunpack.c.l.b16 %v866
        %v899 = vunpack.c.l.b16 %v867
        %v900 = vunpack.c.l.b16 %v868
        %v901 = vunpack.c.l.b16 %v869
        %v902 = vunpack.c.l.b16 %v870
        %v903 = vunpack.c.l.b16 %v871
        %v904 = vunpack.c.l.b16 %v872
        %v905 = vunpack.c.l.b16 %v873
        %v906 = vunpack.c.l.b16 %v874
        %v907 = vunpack.c.l.b16 %v875
        %v908 = vunpack.c.l.b16 %v876
        %v909 = vunpack.c.l.b16 %v877
        %v910 = vunpack.c.l.b16 %v878
        %v911 = vunpack.c.l.b16 %v879
        %v912 = vunpack.c.l.b16 %v880
        %v913 = vunpack.c.l.b16 %v881
        %v914 = vpack.c.b16 %v899, %v898
        %v915 = vpack.c.b16 %v901, %v900
        %v916 = vpack.c.b16 %v903, %v902
        %v917 = vpack.c.b16 %v905, %v904
        %v918 = vpack.c.b16 %v907, %v906
        %v919 = vpack.c.b16 %v909, %v908
        %v920 = vpack.c.b16 %v911, %v910
        %v921 = vpack.c.b16 %v913, %v912
        %930 = vmatprep.subr.bf16.mxu0 0
        %931 = vmatpush1.bf16.msra.mxu0 %v914
        %932 = vmatprep.subr.bf16.mxu0 0
        %933 = vmatpush1.bf16.msra.mxu0 %v915
        %934 = vmatprep.subr.bf16.mxu0 0
        %935 = vmatpush1.bf16.msra.mxu0 %v916
        %936 = vmatprep.subr.bf16.mxu0 0
        %937 = vmatpush1.bf16.msra.mxu0 %v917
        %938 = vmatprep.subr.bf16.mxu0 0
        %939 = vmatpush1.bf16.msra.mxu0 %v918
        %940 = vmatprep.subr.bf16.mxu0 0
        %941 = vmatpush1.bf16.msra.mxu0 %v919
        %942 = vmatprep.subr.bf16.mxu0 0
        %943 = vmatpush1.bf16.msra.mxu0 %v920
        %944 = vmatprep.subr.bf16.mxu0 0
        %945 = vmatpush1.bf16.msra.mxu0 %v921
        %946 = vmatprep.subr.bf16.mxu0 0
        %947 = vmatpush1.bf16.msra.mxu0 0
        %948 = vmatprep.subr.bf16.mxu0 0
        %949 = vmatpush1.bf16.msra.mxu0 0
        %950 = vmatprep.subr.bf16.mxu0 0
        %951 = vmatpush1.bf16.msra.mxu0 0
        %952 = vmatprep.subr.bf16.mxu0 0
        %953 = vmatpush1.bf16.msra.mxu0 0
        %954 = vmatprep.subr.bf16.mxu0 0
        %955 = vmatpush1.bf16.msra.mxu0 0
        %956 = vmatprep.subr.bf16.mxu0 0
        %957 = vmatpush1.bf16.msra.mxu0 0
        %958 = vmatprep.subr.bf16.mxu0 0
        %959 = vmatpush1.bf16.msra.mxu0 0
        %960 = vmatprep.subr.bf16.mxu0 0
        %961 = vmatpush1.bf16.msra.mxu0 0
        %962 = vmatprep.mubr.bf16.mxu0 0
        %963 = vmatmul.mubr.bf16.gmra.mrb[0].mxu0 %v865
        %v964 = vpop.f32.mrb[0].mxu0
        %v965 = vadd.f32 0.0, %v964
        %v966 = vpop.f32.mrb[0].mxu0
        %v967 = vpop.f32.mrb[0].mxu0
        %v968 = vpop.f32.mrb[0].mxu0
        %969 = vdwg.mxu0
        %970 = vst [vmem:[%s434] sm:$0xff] %v965
        %v971 = vld [vmem:[#allocation7 + $0xc] sm:$0xf]
        %v972 = vld [vmem:[#allocation7 + $0x20] sm:$0xf]
        %v973 = vld [vmem:[#allocation7 + $0x34] sm:$0xf]
        %v974 = vld [vmem:[#allocation7 + $0x48] sm:$0xf]
        %v975 = vld [vmem:[%s3 + $0x3] sm:$0x1]
        %v977 = vlaneseq
        %v978 = vshrl.u32 %v977, 7
        %v979 = vsub.s32 0, %v978
        %v980 = vrot.slane %v975, %v979
        %v986 = vunpack.c.l.b16 %v971
        %v987 = vunpack.c.l.b16 %v972
        %v988 = vunpack.c.l.b16 %v973
        %v989 = vunpack.c.l.b16 %v974
        %v990 = vpack.c.b16 %v987, %v986
        %v991 = vpack.c.b16 %v989, %v988
        %v995 = vsel %vm477, %v453, 0
        %997 = vmatprep.subr.bf16.mxu0 0
        %998 = vmatpush1.bf16.msra.mxu0 %v990
        %999 = vmatprep.subr.bf16.mxu0 0
        %1000 = vmatpush1.bf16.msra.mxu0 %v991
        %1001 = vmatprep.subr.bf16.mxu0 0
        %1002 = vmatpush1.bf16.msra.mxu0 0
        %1003 = vmatprep.subr.bf16.mxu0 0
        %1004 = vmatpush1.bf16.msra.mxu0 0
        %1005 = vmatprep.subr.bf16.mxu0 0
        %1006 = vmatpush1.bf16.msra.mxu0 0
        %1007 = vmatprep.subr.bf16.mxu0 0
        %1008 = vmatpush1.bf16.msra.mxu0 0
        %1009 = vmatprep.subr.bf16.mxu0 0
        %1010 = vmatpush1.bf16.msra.mxu0 0
        %1011 = vmatprep.subr.bf16.mxu0 0
        %1012 = vmatpush1.bf16.msra.mxu0 0
        %1013 = vmatprep.subr.bf16.mxu0 0
        %1014 = vmatpush1.bf16.msra.mxu0 0
        %1015 = vmatprep.subr.bf16.mxu0 0
        %1016 = vmatpush1.bf16.msra.mxu0 0
        %1017 = vmatprep.subr.bf16.mxu0 0
        %1018 = vmatpush1.bf16.msra.mxu0 0
        %1019 = vmatprep.subr.bf16.mxu0 0
        %1020 = vmatpush1.bf16.msra.mxu0 0
        %1021 = vmatprep.subr.bf16.mxu0 0
        %1022 = vmatpush1.bf16.msra.mxu0 0
        %1023 = vmatprep.subr.bf16.mxu0 0
        %1024 = vmatpush1.bf16.msra.mxu0 0
        %1025 = vmatprep.subr.bf16.mxu0 0
        %1026 = vmatpush1.bf16.msra.mxu0 0
        %1027 = vmatprep.subr.bf16.mxu0 0
        %1028 = vmatpush1.bf16.msra.mxu0 0
        %1029 = vmatprep.mubr.bf16.mxu0 0
        %1030 = vmatmul.mubr.bf16.gmra.mrb[0].mxu0 %v995
        %v1031 = vpop.f32.mrb[0].mxu0
        %v1032 = vadd.f32 %v980, %v1031
        %v1033 = vpop.f32.mrb[0].mxu0
        %v1034 = vpop.f32.mrb[0].mxu0
        %v1035 = vpop.f32.mrb[0].mxu0
        %1036 = vdwg.mxu0
        %v1037 = vmul.f32 %v1032, 0.1
        %v1038 = vmax.f32 %v1032, %v1037
        %v1039 = vpack.c.bf16 %v1038, %v1038
        %v1040 = vld [vmem:[#allocation8 + $0xc0] sm:$0xf]
        %v1041 = vld [vmem:[#allocation8 + $0xc4] sm:$0xf]
        %v1042 = vld [vmem:[#allocation8 + $0xc8] sm:$0xf]
        %v1043 = vld [vmem:[#allocation8 + $0xcc] sm:$0xf]
        %v1044 = vld [vmem:[#allocation8 + $0xd0] sm:$0xf]
        %v1045 = vld [vmem:[#allocation8 + $0xd4] sm:$0xf]
        %v1046 = vld [vmem:[#allocation8 + $0xd8] sm:$0xf]
        %v1047 = vld [vmem:[#allocation8 + $0xdc] sm:$0xf]
        %v1048 = vld [vmem:[#allocation8 + $0xe0] sm:$0xf]
        %v1049 = vld [vmem:[#allocation8 + $0xe4] sm:$0xf]
        %v1050 = vld [vmem:[#allocation8 + $0xe8] sm:$0xf]
        %v1051 = vld [vmem:[#allocation8 + $0xec] sm:$0xf]
        %v1052 = vld [vmem:[#allocation8 + $0xf0] sm:$0xf]
        %v1053 = vld [vmem:[#allocation8 + $0xf4] sm:$0xf]
        %v1054 = vld [vmem:[#allocation8 + $0xf8] sm:$0xf]
        %v1055 = vld [vmem:[#allocation8 + $0xfc] sm:$0xf]
        %v1072 = vunpack.c.l.b16 %v1040
        %v1073 = vunpack.c.l.b16 %v1041
        %v1074 = vunpack.c.l.b16 %v1042
        %v1075 = vunpack.c.l.b16 %v1043
        %v1076 = vunpack.c.l.b16 %v1044
        %v1077 = vunpack.c.l.b16 %v1045
        %v1078 = vunpack.c.l.b16 %v1046
        %v1079 = vunpack.c.l.b16 %v1047
        %v1080 = vunpack.c.l.b16 %v1048
        %v1081 = vunpack.c.l.b16 %v1049
        %v1082 = vunpack.c.l.b16 %v1050
        %v1083 = vunpack.c.l.b16 %v1051
        %v1084 = vunpack.c.l.b16 %v1052
        %v1085 = vunpack.c.l.b16 %v1053
        %v1086 = vunpack.c.l.b16 %v1054
        %v1087 = vunpack.c.l.b16 %v1055
        %v1088 = vpack.c.b16 %v1073, %v1072
        %v1089 = vpack.c.b16 %v1075, %v1074
        %v1090 = vpack.c.b16 %v1077, %v1076
        %v1091 = vpack.c.b16 %v1079, %v1078
        %v1092 = vpack.c.b16 %v1081, %v1080
        %v1093 = vpack.c.b16 %v1083, %v1082
        %v1094 = vpack.c.b16 %v1085, %v1084
        %v1095 = vpack.c.b16 %v1087, %v1086
        %1104 = vmatprep.subr.bf16.mxu0 0
        %1105 = vmatpush1.bf16.msra.mxu0 %v1088
        %1106 = vmatprep.subr.bf16.mxu0 0
        %1107 = vmatpush1.bf16.msra.mxu0 %v1089
        %1108 = vmatprep.subr.bf16.mxu0 0
        %1109 = vmatpush1.bf16.msra.mxu0 %v1090
        %1110 = vmatprep.subr.bf16.mxu0 0
        %1111 = vmatpush1.bf16.msra.mxu0 %v1091
        %1112 = vmatprep.subr.bf16.mxu0 0
        %1113 = vmatpush1.bf16.msra.mxu0 %v1092
        %1114 = vmatprep.subr.bf16.mxu0 0
        %1115 = vmatpush1.bf16.msra.mxu0 %v1093
        %1116 = vmatprep.subr.bf16.mxu0 0
        %1117 = vmatpush1.bf16.msra.mxu0 %v1094
        %1118 = vmatprep.subr.bf16.mxu0 0
        %1119 = vmatpush1.bf16.msra.mxu0 %v1095
        %1120 = vmatprep.subr.bf16.mxu0 0
        %1121 = vmatpush1.bf16.msra.mxu0 0
        %1122 = vmatprep.subr.bf16.mxu0 0
        %1123 = vmatpush1.bf16.msra.mxu0 0
        %1124 = vmatprep.subr.bf16.mxu0 0
        %1125 = vmatpush1.bf16.msra.mxu0 0
        %1126 = vmatprep.subr.bf16.mxu0 0
        %1127 = vmatpush1.bf16.msra.mxu0 0
        %1128 = vmatprep.subr.bf16.mxu0 0
        %1129 = vmatpush1.bf16.msra.mxu0 0
        %1130 = vmatprep.subr.bf16.mxu0 0
        %1131 = vmatpush1.bf16.msra.mxu0 0
        %1132 = vmatprep.subr.bf16.mxu0 0
        %1133 = vmatpush1.bf16.msra.mxu0 0
        %1134 = vmatprep.subr.bf16.mxu0 0
        %1135 = vmatpush1.bf16.msra.mxu0 0
        %1136 = vmatprep.mubr.bf16.mxu0 0
        %1137 = vmatmul.mubr.bf16.gmra.mrb[0].mxu0 %v1039
        %v1138 = vpop.f32.mrb[0].mxu0
        %v1139 = vadd.f32 0.0, %v1138
        %v1140 = vpop.f32.mrb[0].mxu0
        %v1141 = vpop.f32.mrb[0].mxu0
        %v1142 = vpop.f32.mrb[0].mxu0
        %1143 = vdwg.mxu0
        %1144 = vst [vmem:[%s441] sm:$0xff] %v1139
        %v1145 = vld [vmem:[#allocation7 + $0x10] sm:$0xf]
        %v1146 = vld [vmem:[#allocation7 + $0x24] sm:$0xf]
        %v1147 = vld [vmem:[#allocation7 + $0x38] sm:$0xf]
        %v1148 = vld [vmem:[#allocation7 + $0x4c] sm:$0xf]
        %v1149 = vld [vmem:[%s3 + $0x4] sm:$0x1]
        %v1151 = vlaneseq
        %v1152 = vshrl.u32 %v1151, 7
        %v1153 = vsub.s32 0, %v1152
        %v1154 = vrot.slane %v1149, %v1153
        %v1160 = vunpack.c.l.b16 %v1145
        %v1161 = vunpack.c.l.b16 %v1146
        %v1162 = vunpack.c.l.b16 %v1147
        %v1163 = vunpack.c.l.b16 %v1148
        %v1164 = vpack.c.b16 %v1161, %v1160
        %v1165 = vpack.c.b16 %v1163, %v1162
        %1168 = vmatprep.subr.bf16.mxu0 0
        %1169 = vmatpush1.bf16.msra.mxu0 %v1164
        %1170 = vmatprep.subr.bf16.mxu0 0
        %1171 = vmatpush1.bf16.msra.mxu0 %v1165
        %1172 = vmatprep.subr.bf16.mxu0 0
        %1173 = vmatpush1.bf16.msra.mxu0 0
        %1174 = vmatprep.subr.bf16.mxu0 0
        %1175 = vmatpush1.bf16.msra.mxu0 0
        %1176 = vmatprep.subr.bf16.mxu0 0
        %1177 = vmatpush1.bf16.msra.mxu0 0
        %1178 = vmatprep.subr.bf16.mxu0 0
        %1179 = vmatpush1.bf16.msra.mxu0 0
        %1180 = vmatprep.subr.bf16.mxu0 0
        %1181 = vmatpush1.bf16.msra.mxu0 0
        %1182 = vmatprep.subr.bf16.mxu0 0
        %1183 = vmatpush1.bf16.msra.mxu0 0
        %1184 = vmatprep.subr.bf16.mxu0 0
        %1185 = vmatpush1.bf16.msra.mxu0 0
        %1186 = vmatprep.subr.bf16.mxu0 0
        %1187 = vmatpush1.bf16.msra.mxu0 0
        %1188 = vmatprep.subr.bf16.mxu0 0
        %1189 = vmatpush1.bf16.msra.mxu0 0
        %1190 = vmatprep.subr.bf16.mxu0 0
        %1191 = vmatpush1.bf16.msra.mxu0 0
        %1192 = vmatprep.subr.bf16.mxu0 0
        %1193 = vmatpush1.bf16.msra.mxu0 0
        %1194 = vmatprep.subr.bf16.mxu0 0
        %1195 = vmatpush1.bf16.msra.mxu0 0
        %1196 = vmatprep.subr.bf16.mxu0 0
        %1197 = vmatpush1.bf16.msra.mxu0 0
        %1198 = vmatprep.subr.bf16.mxu0 0
        %1199 = vmatpush1.bf16.msra.mxu0 0
        %1200 = vmatprep.mubr.bf16.mxu0 0
        %1201 = vmatmul.mubr.bf16.gmra.mrb[0].mxu0 %v995
        %v1202 = vpop.f32.mrb[0].mxu0
        %v1203 = vadd.f32 %v1154, %v1202
        %v1204 = vpop.f32.mrb[0].mxu0
        %v1205 = vpop.f32.mrb[0].mxu0
        %v1206 = vpop.f32.mrb[0].mxu0
        %1207 = vdwg.mxu0
        %v1208 = vmul.f32 %v1203, 0.1
        %v1209 = vmax.f32 %v1203, %v1208
        %v1210 = vpack.c.bf16 %v1209, %v1209
        %v1211 = vld [vmem:[#allocation8 + $0x100] sm:$0xf]
        %v1212 = vld [vmem:[#allocation8 + $0x104] sm:$0xf]
        %v1213 = vld [vmem:[#allocation8 + $0x108] sm:$0xf]
        %v1214 = vld [vmem:[#allocation8 + $0x10c] sm:$0xf]
        %v1215 = vld [vmem:[#allocation8 + $0x110] sm:$0xf]
        %v1216 = vld [vmem:[#allocation8 + $0x114] sm:$0xf]
        %v1217 = vld [vmem:[#allocation8 + $0x118] sm:$0xf]
        %v1218 = vld [vmem:[#allocation8 + $0x11c] sm:$0xf]
        %v1219 = vld [vmem:[#allocation8 + $0x120] sm:$0xf]
        %v1220 = vld [vmem:[#allocation8 + $0x124] sm:$0xf]
        %v1221 = vld [vmem:[#allocation8 + $0x128] sm:$0xf]
        %v1222 = vld [vmem:[#allocation8 + $0x12c] sm:$0xf]
        %v1223 = vld [vmem:[#allocation8 + $0x130] sm:$0xf]
        %v1224 = vld [vmem:[#allocation8 + $0x134] sm:$0xf]
        %v1225 = vld [vmem:[#allocation8 + $0x138] sm:$0xf]
        %v1226 = vld [vmem:[#allocation8 + $0x13c] sm:$0xf]
        %v1243 = vunpack.c.l.b16 %v1211
        %v1244 = vunpack.c.l.b16 %v1212
        %v1245 = vunpack.c.l.b16 %v1213
        %v1246 = vunpack.c.l.b16 %v1214
        %v1247 = vunpack.c.l.b16 %v1215
        %v1248 = vunpack.c.l.b16 %v1216
        %v1249 = vunpack.c.l.b16 %v1217
        %v1250 = vunpack.c.l.b16 %v1218
        %v1251 = vunpack.c.l.b16 %v1219
        %v1252 = vunpack.c.l.b16 %v1220
        %v1253 = vunpack.c.l.b16 %v1221
        %v1254 = vunpack.c.l.b16 %v1222
        %v1255 = vunpack.c.l.b16 %v1223
        %v1256 = vunpack.c.l.b16 %v1224
        %v1257 = vunpack.c.l.b16 %v1225
        %v1258 = vunpack.c.l.b16 %v1226
        %v1259 = vpack.c.b16 %v1244, %v1243
        %v1260 = vpack.c.b16 %v1246, %v1245
        %v1261 = vpack.c.b16 %v1248, %v1247
        %v1262 = vpack.c.b16 %v1250, %v1249
        %v1263 = vpack.c.b16 %v1252, %v1251
        %v1264 = vpack.c.b16 %v1254, %v1253
        %v1265 = vpack.c.b16 %v1256, %v1255
        %v1266 = vpack.c.b16 %v1258, %v1257
        %1275 = vmatprep.subr.bf16.mxu0 0
        %1276 = vmatpush1.bf16.msra.mxu0 %v1259
        %1277 = vmatprep.subr.bf16.mxu0 0
        %1278 = vmatpush1.bf16.msra.mxu0 %v1260
        %1279 = vmatprep.subr.bf16.mxu0 0
        %1280 = vmatpush1.bf16.msra.mxu0 %v1261
        %1281 = vmatprep.subr.bf16.mxu0 0
        %1282 = vmatpush1.bf16.msra.mxu0 %v1262
        %1283 = vmatprep.subr.bf16.mxu0 0
        %1284 = vmatpush1.bf16.msra.mxu0 %v1263
        %1285 = vmatprep.subr.bf16.mxu0 0
        %1286 = vmatpush1.bf16.msra.mxu0 %v1264
        %1287 = vmatprep.subr.bf16.mxu0 0
        %1288 = vmatpush1.bf16.msra.mxu0 %v1265
        %1289 = vmatprep.subr.bf16.mxu0 0
        %1290 = vmatpush1.bf16.msra.mxu0 %v1266
        %1291 = vmatprep.subr.bf16.mxu0 0
        %1292 = vmatpush1.bf16.msra.mxu0 0
        %1293 = vmatprep.subr.bf16.mxu0 0
        %1294 = vmatpush1.bf16.msra.mxu0 0
        %1295 = vmatprep.subr.bf16.mxu0 0
        %1296 = vmatpush1.bf16.msra.mxu0 0
        %1297 = vmatprep.subr.bf16.mxu0 0
        %1298 = vmatpush1.bf16.msra.mxu0 0
        %1299 = vmatprep.subr.bf16.mxu0 0
        %1300 = vmatpush1.bf16.msra.mxu0 0
        %1301 = vmatprep.subr.bf16.mxu0 0
        %1302 = vmatpush1.bf16.msra.mxu0 0
        %1303 = vmatprep.subr.bf16.mxu0 0
        %1304 = vmatpush1.bf16.msra.mxu0 0
        %1305 = vmatprep.subr.bf16.mxu0 0
        %1306 = vmatpush1.bf16.msra.mxu0 0
        %1307 = vmatprep.mubr.bf16.mxu0 0
        %1308 = vmatmul.mubr.bf16.gmra.mrb[0].mxu0 %v1210
        %v1309 = vpop.f32.mrb[0].mxu0
        %v1310 = vadd.f32 0.0, %v1309
        %v1311 = vpop.f32.mrb[0].mxu0
        %v1312 = vpop.f32.mrb[0].mxu0
        %v1313 = vpop.f32.mrb[0].mxu0
        %1314 = vdwg.mxu0
        %1315 = vst [vmem:[%s448] sm:$0xff] %v1310
        %s1316 = sand.u32 %s160, 1
        %s1317 = scalar_lea.sflag [#allocation4], %s1316
        %s1318 = sand.u32 %s160, 1
        %s1319 = smul.addr %s1318, 8
        %s1320 = scalar_lea.vmem [#allocation10], %s1319
        %s1321 = sand.u32 %s37, 1
        %s1322 = scalar_lea.sflag [#allocation12], %s1321
        %s1323 = sand.u32 %s186, 1
        %s1324 = smul.addr %s1323, 8
        %s1325 = scalar_lea.vmem [#allocation11], %s1324
        %s1326 = sand.u32 %s37, 1
        %s1327 = scalar_lea.sflag [#allocation12], %s1326
        %s1328 = sand.u32 %s212, 1
        %s1329 = smul.addr %s1328, 8
        %s1330 = scalar_lea.vmem [#allocation13], %s1329
        %s1331 = sand.u32 %s37, 1
        %s1332 = scalar_lea.sflag [#allocation15], %s1331
        %s1333 = sand.u32 %s238, 1
        %s1334 = smul.addr %s1333, 8
        %s1335 = scalar_lea.vmem [#allocation14], %s1334
        %s1336 = sand.u32 %s37, 1
        %s1337 = scalar_lea.sflag [#allocation15], %s1336
        %s1338 = sand.u32 %s264, 1
        %s1339 = smul.addr %s1338, 8
        %s1340 = scalar_lea.vmem [#allocation16], %s1339
        // Predicated region
        $region57: #{tpu_custom_call.1} parent=39 // pred_check
          %p1341 = pneg %p170
        $region58: #{tpu_custom_call.1} parent=39 // pred_check_branch
          %1343 = sbr.rel (%p1341) target = $region60
        $region59: #{tpu_custom_call.1} parent=39 // pred_region
          %s1345 = ssub.s32 128, 128
          %1346 = vsyncadd %s1317, %s1345
          %s1347 = smul.addr %s37, 128
          %s1348 = scalar_lea.hbm %s5, %s1347
          %s1350 = sshll.u32 %s1320, 4
          %s1351 = int_to_ptr.vmem [resolvable:$true] %s1350
          %1353 = dma.vmem_to_hbm [thread:$0]  %s1351, 128, %s1348, %s1317
        $region60: #{tpu_custom_call.1} parent=39 // pred_fallthru
          _
        // Predicated region
        $region61: #{tpu_custom_call.1} parent=39 // pred_check
          %p1354 = pneg %p196
        $region62: #{tpu_custom_call.1} parent=39 // pred_check_branch
          %1356 = sbr.rel (%p1354) target = $region64
        $region63: #{tpu_custom_call.1} parent=39 // pred_region
          %s1358 = ssub.s32 128, 128
          %1359 = vsyncadd %s1322, %s1358
          %s1360 = smul.addr %s37, 128
          %s1361 = scalar_lea.hbm %s6, %s1360
          %s1363 = sshll.u32 %s1325, 4
          %s1364 = int_to_ptr.vmem [resolvable:$true] %s1363
          %1366 = dma.vmem_to_hbm [thread:$0]  %s1364, 128, %s1361, %s1322
        $region64: #{tpu_custom_call.1} parent=39 // pred_fallthru
          _
        // Predicated region
        $region65: #{tpu_custom_call.1} parent=39 // pred_check
          %p1367 = pneg %p222
        $region66: #{tpu_custom_call.1} parent=39 // pred_check_branch
          %1369 = sbr.rel (%p1367) target = $region68
        $region67: #{tpu_custom_call.1} parent=39 // pred_region
          %s1371 = ssub.s32 128, 128
          %1372 = vsyncadd %s1327, %s1371
          %s1373 = smul.addr %s37, 128
          %s1374 = scalar_lea.hbm %s7, %s1373
          %s1376 = sshll.u32 %s1330, 4
          %s1377 = int_to_ptr.vmem [resolvable:$true] %s1376
          %1379 = dma.vmem_to_hbm [thread:$0]  %s1377, 128, %s1374, %s1327
        $region68: #{tpu_custom_call.1} parent=39 // pred_fallthru
          _
        // Predicated region
        $region69: #{tpu_custom_call.1} parent=39 // pred_check
          %p1380 = pneg %p248
        $region70: #{tpu_custom_call.1} parent=39 // pred_check_branch
          %1382 = sbr.rel (%p1380) target = $region72
        $region71: #{tpu_custom_call.1} parent=39 // pred_region
          %s1384 = ssub.s32 128, 128
          %1385 = vsyncadd %s1332, %s1384
          %s1386 = smul.addr %s37, 128
          %s1387 = scalar_lea.hbm %s8, %s1386
          %s1389 = sshll.u32 %s1335, 4
          %s1390 = int_to_ptr.vmem [resolvable:$true] %s1389
          %1392 = dma.vmem_to_hbm [thread:$0]  %s1390, 128, %s1387, %s1332
        $region72: #{tpu_custom_call.1} parent=39 // pred_fallthru
          _
        // Predicated region
        $region73: #{tpu_custom_call.1} parent=39 // pred_check
          %p1393 = pneg %p274
        $region74: #{tpu_custom_call.1} parent=39 // pred_check_branch
          %1395 = sbr.rel (%p1393) target = $region76
        $region75: #{tpu_custom_call.1} parent=39 // pred_region
          %s1397 = ssub.s32 128, 128
          %1398 = vsyncadd %s1337, %s1397
          %s1399 = smul.addr %s37, 128
          %s1400 = scalar_lea.hbm %s9, %s1399
          %s1402 = sshll.u32 %s1340, 4
          %s1403 = int_to_ptr.vmem [resolvable:$true] %s1402
          %1405 = dma.vmem_to_hbm [thread:$0]  %s1403, 128, %s1400, %s1337
        $region76: #{tpu_custom_call.1} parent=39 // pred_fallthru
          _
      $region40: #{tpu_custom_call.1} parent=5 // pred_fallthru
        _
      %p1406 = scmp.le.s32.totalorder 2, %s32
      // Predicated region
      $region77: #{tpu_custom_call.1} parent=5 // pred_check
        %p1407 = pneg %p1406
      $region78: #{tpu_custom_call.1} parent=5 // pred_check_branch
        %1409 = sbr.rel (%p1407) target = $region80
      $region79: #{tpu_custom_call.1} parent=5 // pred_region
        %s1410 = ssub.s32 %s32, 2
        // Predicated region
        $region81: #{tpu_custom_call.1} parent=79 // pred_check
          %p1411 = pneg %p176
        $region82: #{tpu_custom_call.1} parent=79 // pred_check_branch
          %1413 = sbr.rel (%p1411) target = $region84
        $region83: #{tpu_custom_call.1} parent=79 // pred_region
          %s1414 = sand.u32 %s161, 1
          %s1415 = scalar_lea.sflag [#allocation4], %s1414
          %s1416 = sand.u32 %s161, 1
          %s1417 = smul.addr %s1416, 8
          %s1418 = scalar_lea.vmem [#allocation10], %s1417
          %1419 = dma.done %s1415, 128
        $region84: #{tpu_custom_call.1} parent=79 // pred_fallthru
          _
        // Predicated region
        $region85: #{tpu_custom_call.1} parent=79 // pred_check
          %p1420 = pneg %p202
        $region86: #{tpu_custom_call.1} parent=79 // pred_check_branch
          %1422 = sbr.rel (%p1420) target = $region88
        $region87: #{tpu_custom_call.1} parent=79 // pred_region
          %s1423 = sand.u32 %s38, 1
          %s1424 = scalar_lea.sflag [#allocation12], %s1423
          %s1425 = sand.u32 %s187, 1
          %s1426 = smul.addr %s1425, 8
          %s1427 = scalar_lea.vmem [#allocation11], %s1426
          %1428 = dma.done %s1424, 128
        $region88: #{tpu_custom_call.1} parent=79 // pred_fallthru
          _
        // Predicated region
        $region89: #{tpu_custom_call.1} parent=79 // pred_check
          %p1429 = pneg %p228
        $region90: #{tpu_custom_call.1} parent=79 // pred_check_branch
          %1431 = sbr.rel (%p1429) target = $region92
        $region91: #{tpu_custom_call.1} parent=79 // pred_region
          %s1432 = sand.u32 %s38, 1
          %s1433 = scalar_lea.sflag [#allocation12], %s1432
          %s1434 = sand.u32 %s213, 1
          %s1435 = smul.addr %s1434, 8
          %s1436 = scalar_lea.vmem [#allocation13], %s1435
          %1437 = dma.done %s1433, 128
        $region92: #{tpu_custom_call.1} parent=79 // pred_fallthru
          _
        // Predicated region
        $region93: #{tpu_custom_call.1} parent=79 // pred_check
          %p1438 = pneg %p254
        $region94: #{tpu_custom_call.1} parent=79 // pred_check_branch
          %1440 = sbr.rel (%p1438) target = $region96
        $region95: #{tpu_custom_call.1} parent=79 // pred_region
          %s1441 = sand.u32 %s38, 1
          %s1442 = scalar_lea.sflag [#allocation15], %s1441
          %s1443 = sand.u32 %s239, 1
          %s1444 = smul.addr %s1443, 8
          %s1445 = scalar_lea.vmem [#allocation14], %s1444
          %1446 = dma.done %s1442, 128
        $region96: #{tpu_custom_call.1} parent=79 // pred_fallthru
          _
        // Predicated region
        $region97: #{tpu_custom_call.1} parent=79 // pred_check
          %p1447 = pneg %p280
        $region98: #{tpu_custom_call.1} parent=79 // pred_check_branch
          %1449 = sbr.rel (%p1447) target = $region100
        $region99: #{tpu_custom_call.1} parent=79 // pred_region
          %s1450 = sand.u32 %s38, 1
          %s1451 = scalar_lea.sflag [#allocation15], %s1450
          %s1452 = sand.u32 %s265, 1
          %s1453 = smul.addr %s1452, 8
          %s1454 = scalar_lea.vmem [#allocation16], %s1453
          %1455 = dma.done %s1451, 128
        $region100: #{tpu_custom_call.1} parent=79 // pred_fallthru
          _
      $region80: #{tpu_custom_call.1} parent=5 // pred_fallthru
        _
    $region6: #{tpu_custom_call.1} parent=1 // loop_footer
      %s36 = sadd.s32 1, %s32
    $region7: #{tpu_custom_call.1} parent=1 // loop_footer_branch
      %31 = sbr.rel target = $region3
    $region8: #{tpu_custom_call.1} parent=1 // loop_exit
      _
    %1456 = vsyncpa [#allocation3], 1
    %s1457 = scalar_lea.sflag [#allocation3], 1
    %1458 = vsyncpa %s1457, 1
    %1459 = vsyncpa [#allocation6], 1
    %s1460 = scalar_lea.sflag [#allocation6], 1
    %1461 = vsyncpa %s1460, 1
    %1462 = vsyncpa [#allocation9], 1
    %1463 = vsyncpa [#allocation4], 1
    %s1464 = scalar_lea.sflag [#allocation4], 1
    %1465 = vsyncpa %s1464, 1
    %1466 = vsyncpa [#allocation12], 1
    %s1467 = scalar_lea.sflag [#allocation12], 1
    %1468 = vsyncpa %s1467, 1
    %1469 = vsyncpa [#allocation15], 1
    %s1470 = scalar_lea.sflag [#allocation15], 1
    %1471 = vsyncpa %s1470, 1

</llo_original>
